<compile_context>
chip_gen: v7x
topology: tpu7x:2x2x1
jax: 0.10.0
libtpu: 0.0.40
codegen_flags: <defaults>
</compile_context>

<pallas_src>
import jax
import jax.numpy as jnp
from jax.experimental import pallas as pl
from jax.experimental.pallas import tpu as pltpu

K_ITERS = 6
EPS = 2e-08


def _nmf_kernel(x_ref, d_ref, c_ref, o_ref):
    # x_ref: (dim, M)  packed x, M = B_BLK * n, lane m = bi*n + j
    # d_ref: (dim, Br) "wide" D, column q = bi*r + k holds D_bi[:, k]
    # c_ref: (Br, M)   block-diagonal C, block bi = C_bi  (zero off-block)
    # o_ref: (dim, M)
    x = jnp.maximum(x_ref[...], 0.0)          # F.relu(x)
    D = d_ref[...]
    C = c_ref[...]
    f32 = jnp.float32

    # K multiplicative-update iterations.  The block-diagonal structure of C
    # (and the per-batch column blocks of D) keeps every batch element's
    # update independent, exactly matching the per-batch `repeat` semantics.
    # Off-block entries of DtX/DtDC are garbage but are multiplied by C == 0
    # (all quantities are non-negative, so denominators are >= EPS: no NaN/Inf).
    for _ in range(K_ITERS):
        DC = jnp.einsum('dq,qm->dm', D, C, preferred_element_type=f32)      # (dim, M)
        DtX = jnp.einsum('dq,dm->qm', D, x, preferred_element_type=f32)     # (Br, M)
        DtDC = jnp.einsum('dq,dm->qm', D, DC, preferred_element_type=f32)   # (Br, M)
        XCt = jnp.einsum('dm,qm->dq', x, C, preferred_element_type=f32)     # (dim, Br)
        DCCt = jnp.einsum('dm,qm->dq', DC, C, preferred_element_type=f32)   # (dim, Br)

        # Both updates use the OLD D and C (all products computed above).
        C = C * (DtX / (DtDC + EPS))
        D = D * (XCt / (DCCt + EPS))

    o_ref[...] = jnp.einsum('dq,qm->dm', D, C,
                            preferred_element_type=f32).astype(o_ref.dtype)


def _choose_batch_block(b, n):
    """How many batch elements to fold into the 128-lane axis per grid step."""
    if n >= 128:
        # Each batch element already fills >= one lane tile.
        return 1 if n % 128 == 0 else b
    blk = min(b, max(1, 128 // n))
    if blk < b and (blk * n) % 128 != 0:
        # A non-full block's lane extent must be a multiple of 128; fall back
        # to a single full-extent block.
        return b
    return blk


def nmf_forward(x, D, C, *, batch_block=None):
    b, dim, n = x.shape
    r = D.shape[1]
    if batch_block is None:
        batch_block = _choose_batch_block(b, n)
    b_pad = -(-b // batch_block) * batch_block
    if b_pad != b:
        # Zero-padded batches stay finite through the updates (x=0 -> out=0).
        x = jnp.pad(x, ((0, b_pad - b), (0, 0), (0, 0)))

    m = batch_block * n
    # Lane-dense packing: batch folded into the lane axis (layout plumbing only).
    x_p = jnp.transpose(x, (1, 0, 2)).reshape(dim, b_pad * n)          # (dim, b_pad*n)
    d_w = jnp.tile(D, (1, batch_block))                                 # (dim, blk*r)
    c_blk = (jnp.eye(batch_block, dtype=C.dtype)[:, None, :, None]
             * C[None, :, None, :]).reshape(batch_block * r, m)         # (blk*r, blk*n)

    grid = (b_pad // batch_block,)

    out_p = pl.pallas_call(
        _nmf_kernel,
        out_shape=jax.ShapeDtypeStruct((dim, b_pad * n), jnp.float32),
        grid_spec=pltpu.PrefetchScalarGridSpec(
            num_scalar_prefetch=0,
            grid=grid,
            in_specs=[
                pl.BlockSpec((dim, m), lambda i: (0, i)),                    # packed x block
                pl.BlockSpec((dim, batch_block * r), lambda i: (0, 0)),      # wide D (resident)
                pl.BlockSpec((batch_block * r, m), lambda i: (0, 0)),        # block-diag C (resident)
            ],
            out_specs=pl.BlockSpec((dim, m), lambda i: (0, i)),
        ),
        compiler_params=pltpu.CompilerParams(
            dimension_semantics=("parallel",),
            # Blocks are KB-scale; 32 MiB is a safe explicit cap on v5e/v6e/v7x.
            vmem_limit_bytes=32 * 1024 * 1024,
        ),
    )(x_p, d_w, c_blk)

    out = out_p.reshape(dim, b_pad, n).transpose(1, 0, 2)
    return out[:b]


def nmf_reference(x, D, C):
    # Pure-JAX mirror of the PyTorch forward, for a sanity check.
    b = x.shape[0]
    x = jnp.maximum(x, 0.0)
    Db = jnp.broadcast_to(D, (b,) + D.shape)
    Cb = jnp.broadcast_to(C, (b,) + C.shape)
    t = lambda a: jnp.swapaxes(a, -1, -2)
    for _ in range(K_ITERS):
        C_new = Cb * (t(Db) @ x / (t(Db) @ Db @ Cb + EPS))
        D_new = Db * (x @ t(Cb) / (Db @ Cb @ t(Cb) + EPS))
        Cb, Db = C_new, D_new
    return Db @ Cb


if __name__ == "__main__":
    # Small shapes consistent with the module: dim=32, ratio=8 -> r=4, n=16, batch=2.
    batch, dim, ratio, n = 2, 32, 8, 16
    r = dim // ratio

    key = jax.random.PRNGKey(0)
    kx, kd, kc = jax.random.split(key, 3)
    x = jax.random.normal(kx, (batch, dim, n), dtype=jnp.float32)
    # Deterministic parameter init mirroring torch.zeros(...).uniform_(0, 1)
    D = jax.random.uniform(kd, (dim, r), dtype=jnp.float32)
    C = jax.random.uniform(kc, (r, n), dtype=jnp.float32)

    out = nmf_forward(x, D, C)
    out = jax.block_until_ready(out)

    ref = nmf_reference(x, D, C)
    assert out.shape == (batch, dim, n)
    max_err = float(jnp.max(jnp.abs(out - ref)))
    assert jnp.allclose(out, ref, atol=1e-3, rtol=1e-3), max_err

    print("KERNEL_OK")
</pallas_src>

<mosaic_0001>
module attributes {stable_mosaic.version = 11 : i64} {
  func.func @_nmf_kernel(%arg0: i32, %arg1: memref<32x32xf32, #tpu.memory_space<vmem>>, %arg2: memref<32x8xf32, #tpu.memory_space<vmem>>, %arg3: memref<8x32xf32, #tpu.memory_space<vmem>>, %arg4: memref<32x32xf32, #tpu.memory_space<vmem>>) attributes {dimension_semantics = [#tpu.dimension_semantics<parallel>], iteration_bounds = array<i64: 1>, scalar_prefetch = 0 : i64, scratch_operands = 0 : i64, tpu.core_type = #tpu.core_type<tc>, window_params = [{transform_indices = @transform_0, window_bounds = array<i64: 32, 32>}, {pipeline_mode = #tpu.pipeline_mode<synchronous>, transform_indices = @transform_1, window_bounds = array<i64: 32, 8>}, {pipeline_mode = #tpu.pipeline_mode<synchronous>, transform_indices = @transform_2, window_bounds = array<i64: 8, 32>}, {transform_indices = @transform_3, window_bounds = array<i64: 32, 32>}]} {
    %c0 = arith.constant 0 : index
    %c0_0 = arith.constant 0 : index
    %0 = vector.load %arg1[%c0, %c0_0] : memref<32x32xf32, #tpu.memory_space<vmem>>, vector<32x32xf32>
    %cst = arith.constant 0.000000e+00 : f32
    %1 = vector.broadcast %cst : f32 to vector<32x32xf32>
    %2 = arith.maximumf %0, %1 : vector<32x32xf32>
    %c0_1 = arith.constant 0 : index
    %c0_2 = arith.constant 0 : index
    %3 = vector.load %arg2[%c0_1, %c0_2] : memref<32x8xf32, #tpu.memory_space<vmem>>, vector<32x8xf32>
    %c0_3 = arith.constant 0 : index
    %c0_4 = arith.constant 0 : index
    %4 = vector.load %arg3[%c0_3, %c0_4] : memref<8x32xf32, #tpu.memory_space<vmem>>, vector<8x32xf32>
    "tpu.trace_start"() <{level = 10 : i32, message = "dq,qm->dm"}> : () -> ()
    %cst_5 = arith.constant dense<0.000000e+00> : vector<32x32xf32>
    %5 = tpu.matmul %3, %4, %cst_5 {dimension_numbers = #tpu.dot_dimension_numbers<[1], [0], [0], [1], [0, 0, 1, 1], [], []>} : vector<32x8xf32>, vector<8x32xf32>, vector<32x32xf32> -> vector<32x32xf32>
    "tpu.trace_stop"() : () -> ()
    "tpu.trace_start"() <{level = 10 : i32, message = "dq,dm->qm"}> : () -> ()
    %cst_6 = arith.constant dense<0.000000e+00> : vector<8x32xf32>
    %6 = tpu.matmul %3, %2, %cst_6 {dimension_numbers = #tpu.dot_dimension_numbers<[0], [0], [1], [1], [0, 1, 1, 1], [], []>} : vector<32x8xf32>, vector<32x32xf32>, vector<8x32xf32> -> vector<8x32xf32>
    %cst_7 = arith.constant dense<0.000000e+00> : vector<8x32xf32>
    %7 = tpu.matmul %3, %5, %cst_7 {dimension_numbers = #tpu.dot_dimension_numbers<[0], [0], [1], [1], [0, 1, 1, 1], [], []>} : vector<32x8xf32>, vector<32x32xf32>, vector<8x32xf32> -> vector<8x32xf32>
    "tpu.trace_stop"() : () -> ()
    "tpu.trace_start"() <{level = 10 : i32, message = "dm,qm->dq"}> : () -> ()
    %cst_8 = arith.constant dense<0.000000e+00> : vector<32x8xf32>
    %8 = tpu.matmul %2, %4, %cst_8 {dimension_numbers = #tpu.dot_dimension_numbers<[1], [1], [0], [0], [0, 0, 1, 0], [], []>} : vector<32x32xf32>, vector<8x32xf32>, vector<32x8xf32> -> vector<32x8xf32>
    %cst_9 = arith.constant dense<0.000000e+00> : vector<32x8xf32>
    %9 = tpu.matmul %5, %4, %cst_9 {dimension_numbers = #tpu.dot_dimension_numbers<[1], [1], [0], [0], [0, 0, 1, 0], [], []>} : vector<32x32xf32>, vector<8x32xf32>, vector<32x8xf32> -> vector<32x8xf32>
    "tpu.trace_stop"() : () -> ()
    %cst_10 = arith.constant 2.000000e-08 : f32
    %10 = vector.broadcast %cst_10 : f32 to vector<8x32xf32>
    %11 = arith.addf %7, %10 : vector<8x32xf32>
    %12 = arith.divf %6, %11 : vector<8x32xf32>
    %13 = arith.mulf %4, %12 : vector<8x32xf32>
    %cst_11 = arith.constant 2.000000e-08 : f32
    %14 = vector.broadcast %cst_11 : f32 to vector<32x8xf32>
    %15 = arith.addf %9, %14 : vector<32x8xf32>
    %16 = arith.divf %8, %15 : vector<32x8xf32>
    %17 = arith.mulf %3, %16 : vector<32x8xf32>
    "tpu.trace_start"() <{level = 10 : i32, message = "dq,qm->dm"}> : () -> ()
    %cst_12 = arith.constant dense<0.000000e+00> : vector<32x32xf32>
    %18 = tpu.matmul %17, %13, %cst_12 {dimension_numbers = #tpu.dot_dimension_numbers<[1], [0], [0], [1], [0, 0, 1, 1], [], []>} : vector<32x8xf32>, vector<8x32xf32>, vector<32x32xf32> -> vector<32x32xf32>
    "tpu.trace_stop"() : () -> ()
    "tpu.trace_start"() <{level = 10 : i32, message = "dq,dm->qm"}> : () -> ()
    %cst_13 = arith.constant dense<0.000000e+00> : vector<8x32xf32>
    %19 = tpu.matmul %17, %2, %cst_13 {dimension_numbers = #tpu.dot_dimension_numbers<[0], [0], [1], [1], [0, 1, 1, 1], [], []>} : vector<32x8xf32>, vector<32x32xf32>, vector<8x32xf32> -> vector<8x32xf32>
    %cst_14 = arith.constant dense<0.000000e+00> : vector<8x32xf32>
    %20 = tpu.matmul %17, %18, %cst_14 {dimension_numbers = #tpu.dot_dimension_numbers<[0], [0], [1], [1], [0, 1, 1, 1], [], []>} : vector<32x8xf32>, vector<32x32xf32>, vector<8x32xf32> -> vector<8x32xf32>
    "tpu.trace_stop"() : () -> ()
    "tpu.trace_start"() <{level = 10 : i32, message = "dm,qm->dq"}> : () -> ()
    %cst_15 = arith.constant dense<0.000000e+00> : vector<32x8xf32>
    %21 = tpu.matmul %2, %13, %cst_15 {dimension_numbers = #tpu.dot_dimension_numbers<[1], [1], [0], [0], [0, 0, 1, 0], [], []>} : vector<32x32xf32>, vector<8x32xf32>, vector<32x8xf32> -> vector<32x8xf32>
    %cst_16 = arith.constant dense<0.000000e+00> : vector<32x8xf32>
    %22 = tpu.matmul %18, %13, %cst_16 {dimension_numbers = #tpu.dot_dimension_numbers<[1], [1], [0], [0], [0, 0, 1, 0], [], []>} : vector<32x32xf32>, vector<8x32xf32>, vector<32x8xf32> -> vector<32x8xf32>
    "tpu.trace_stop"() : () -> ()
    %cst_17 = arith.constant 2.000000e-08 : f32
    %23 = vector.broadcast %cst_17 : f32 to vector<8x32xf32>
    %24 = arith.addf %20, %23 : vector<8x32xf32>
    %25 = arith.divf %19, %24 : vector<8x32xf32>
    %26 = arith.mulf %13, %25 : vector<8x32xf32>
    %cst_18 = arith.constant 2.000000e-08 : f32
    %27 = vector.broadcast %cst_18 : f32 to vector<32x8xf32>
    %28 = arith.addf %22, %27 : vector<32x8xf32>
    %29 = arith.divf %21, %28 : vector<32x8xf32>
    %30 = arith.mulf %17, %29 : vector<32x8xf32>
    "tpu.trace_start"() <{level = 10 : i32, message = "dq,qm->dm"}> : () -> ()
    %cst_19 = arith.constant dense<0.000000e+00> : vector<32x32xf32>
    %31 = tpu.matmul %30, %26, %cst_19 {dimension_numbers = #tpu.dot_dimension_numbers<[1], [0], [0], [1], [0, 0, 1, 1], [], []>} : vector<32x8xf32>, vector<8x32xf32>, vector<32x32xf32> -> vector<32x32xf32>
    "tpu.trace_stop"() : () -> ()
    "tpu.trace_start"() <{level = 10 : i32, message = "dq,dm->qm"}> : () -> ()
    %cst_20 = arith.constant dense<0.000000e+00> : vector<8x32xf32>
    %32 = tpu.matmul %30, %2, %cst_20 {dimension_numbers = #tpu.dot_dimension_numbers<[0], [0], [1], [1], [0, 1, 1, 1], [], []>} : vector<32x8xf32>, vector<32x32xf32>, vector<8x32xf32> -> vector<8x32xf32>
    %cst_21 = arith.constant dense<0.000000e+00> : vector<8x32xf32>
    %33 = tpu.matmul %30, %31, %cst_21 {dimension_numbers = #tpu.dot_dimension_numbers<[0], [0], [1], [1], [0, 1, 1, 1], [], []>} : vector<32x8xf32>, vector<32x32xf32>, vector<8x32xf32> -> vector<8x32xf32>
    "tpu.trace_stop"() : () -> ()
    "tpu.trace_start"() <{level = 10 : i32, message = "dm,qm->dq"}> : () -> ()
    %cst_22 = arith.constant dense<0.000000e+00> : vector<32x8xf32>
    %34 = tpu.matmul %2, %26, %cst_22 {dimension_numbers = #tpu.dot_dimension_numbers<[1], [1], [0], [0], [0, 0, 1, 0], [], []>} : vector<32x32xf32>, vector<8x32xf32>, vector<32x8xf32> -> vector<32x8xf32>
    %cst_23 = arith.constant dense<0.000000e+00> : vector<32x8xf32>
    %35 = tpu.matmul %31, %26, %cst_23 {dimension_numbers = #tpu.dot_dimension_numbers<[1], [1], [0], [0], [0, 0, 1, 0], [], []>} : vector<32x32xf32>, vector<8x32xf32>, vector<32x8xf32> -> vector<32x8xf32>
    "tpu.trace_stop"() : () -> ()
    %cst_24 = arith.constant 2.000000e-08 : f32
    %36 = vector.broadcast %cst_24 : f32 to vector<8x32xf32>
    %37 = arith.addf %33, %36 : vector<8x32xf32>
    %38 = arith.divf %32, %37 : vector<8x32xf32>
    %39 = arith.mulf %26, %38 : vector<8x32xf32>
    %cst_25 = arith.constant 2.000000e-08 : f32
    %40 = vector.broadcast %cst_25 : f32 to vector<32x8xf32>
    %41 = arith.addf %35, %40 : vector<32x8xf32>
    %42 = arith.divf %34, %41 : vector<32x8xf32>
    %43 = arith.mulf %30, %42 : vector<32x8xf32>
    "tpu.trace_start"() <{level = 10 : i32, message = "dq,qm->dm"}> : () -> ()
    %cst_26 = arith.constant dense<0.000000e+00> : vector<32x32xf32>
    %44 = tpu.matmul %43, %39, %cst_26 {dimension_numbers = #tpu.dot_dimension_numbers<[1], [0], [0], [1], [0, 0, 1, 1], [], []>} : vector<32x8xf32>, vector<8x32xf32>, vector<32x32xf32> -> vector<32x32xf32>
    "tpu.trace_stop"() : () -> ()
    "tpu.trace_start"() <{level = 10 : i32, message = "dq,dm->qm"}> : () -> ()
    %cst_27 = arith.constant dense<0.000000e+00> : vector<8x32xf32>
    %45 = tpu.matmul %43, %2, %cst_27 {dimension_numbers = #tpu.dot_dimension_numbers<[0], [0], [1], [1], [0, 1, 1, 1], [], []>} : vector<32x8xf32>, vector<32x32xf32>, vector<8x32xf32> -> vector<8x32xf32>
    %cst_28 = arith.constant dense<0.000000e+00> : vector<8x32xf32>
    %46 = tpu.matmul %43, %44, %cst_28 {dimension_numbers = #tpu.dot_dimension_numbers<[0], [0], [1], [1], [0, 1, 1, 1], [], []>} : vector<32x8xf32>, vector<32x32xf32>, vector<8x32xf32> -> vector<8x32xf32>
    "tpu.trace_stop"() : () -> ()
    "tpu.trace_start"() <{level = 10 : i32, message = "dm,qm->dq"}> : () -> ()
    %cst_29 = arith.constant dense<0.000000e+00> : vector<32x8xf32>
    %47 = tpu.matmul %2, %39, %cst_29 {dimension_numbers = #tpu.dot_dimension_numbers<[1], [1], [0], [0], [0, 0, 1, 0], [], []>} : vector<32x32xf32>, vector<8x32xf32>, vector<32x8xf32> -> vector<32x8xf32>
    %cst_30 = arith.constant dense<0.000000e+00> : vector<32x8xf32>
    %48 = tpu.matmul %44, %39, %cst_30 {dimension_numbers = #tpu.dot_dimension_numbers<[1], [1], [0], [0], [0, 0, 1, 0], [], []>} : vector<32x32xf32>, vector<8x32xf32>, vector<32x8xf32> -> vector<32x8xf32>
    "tpu.trace_stop"() : () -> ()
    %cst_31 = arith.constant 2.000000e-08 : f32
    %49 = vector.broadcast %cst_31 : f32 to vector<8x32xf32>
    %50 = arith.addf %46, %49 : vector<8x32xf32>
    %51 = arith.divf %45, %50 : vector<8x32xf32>
    %52 = arith.mulf %39, %51 : vector<8x32xf32>
    %cst_32 = arith.constant 2.000000e-08 : f32
    %53 = vector.broadcast %cst_32 : f32 to vector<32x8xf32>
    %54 = arith.addf %48, %53 : vector<32x8xf32>
    %55 = arith.divf %47, %54 : vector<32x8xf32>
    %56 = arith.mulf %43, %55 : vector<32x8xf32>
    "tpu.trace_start"() <{level = 10 : i32, message = "dq,qm->dm"}> : () -> ()
    %cst_33 = arith.constant dense<0.000000e+00> : vector<32x32xf32>
    %57 = tpu.matmul %56, %52, %cst_33 {dimension_numbers = #tpu.dot_dimension_numbers<[1], [0], [0], [1], [0, 0, 1, 1], [], []>} : vector<32x8xf32>, vector<8x32xf32>, vector<32x32xf32> -> vector<32x32xf32>
    "tpu.trace_stop"() : () -> ()
    "tpu.trace_start"() <{level = 10 : i32, message = "dq,dm->qm"}> : () -> ()
    %cst_34 = arith.constant dense<0.000000e+00> : vector<8x32xf32>
    %58 = tpu.matmul %56, %2, %cst_34 {dimension_numbers = #tpu.dot_dimension_numbers<[0], [0], [1], [1], [0, 1, 1, 1], [], []>} : vector<32x8xf32>, vector<32x32xf32>, vector<8x32xf32> -> vector<8x32xf32>
    %cst_35 = arith.constant dense<0.000000e+00> : vector<8x32xf32>
    %59 = tpu.matmul %56, %57, %cst_35 {dimension_numbers = #tpu.dot_dimension_numbers<[0], [0], [1], [1], [0, 1, 1, 1], [], []>} : vector<32x8xf32>, vector<32x32xf32>, vector<8x32xf32> -> vector<8x32xf32>
    "tpu.trace_stop"() : () -> ()
    "tpu.trace_start"() <{level = 10 : i32, message = "dm,qm->dq"}> : () -> ()
    %cst_36 = arith.constant dense<0.000000e+00> : vector<32x8xf32>
    %60 = tpu.matmul %2, %52, %cst_36 {dimension_numbers = #tpu.dot_dimension_numbers<[1], [1], [0], [0], [0, 0, 1, 0], [], []>} : vector<32x32xf32>, vector<8x32xf32>, vector<32x8xf32> -> vector<32x8xf32>
    %cst_37 = arith.constant dense<0.000000e+00> : vector<32x8xf32>
    %61 = tpu.matmul %57, %52, %cst_37 {dimension_numbers = #tpu.dot_dimension_numbers<[1], [1], [0], [0], [0, 0, 1, 0], [], []>} : vector<32x32xf32>, vector<8x32xf32>, vector<32x8xf32> -> vector<32x8xf32>
    "tpu.trace_stop"() : () -> ()
    %cst_38 = arith.constant 2.000000e-08 : f32
    %62 = vector.broadcast %cst_38 : f32 to vector<8x32xf32>
    %63 = arith.addf %59, %62 : vector<8x32xf32>
    %64 = arith.divf %58, %63 : vector<8x32xf32>
    %65 = arith.mulf %52, %64 : vector<8x32xf32>
    %cst_39 = arith.constant 2.000000e-08 : f32
    %66 = vector.broadcast %cst_39 : f32 to vector<32x8xf32>
    %67 = arith.addf %61, %66 : vector<32x8xf32>
    %68 = arith.divf %60, %67 : vector<32x8xf32>
    %69 = arith.mulf %56, %68 : vector<32x8xf32>
    "tpu.trace_start"() <{level = 10 : i32, message = "dq,qm->dm"}> : () -> ()
    %cst_40 = arith.constant dense<0.000000e+00> : vector<32x32xf32>
    %70 = tpu.matmul %69, %65, %cst_40 {dimension_numbers = #tpu.dot_dimension_numbers<[1], [0], [0], [1], [0, 0, 1, 1], [], []>} : vector<32x8xf32>, vector<8x32xf32>, vector<32x32xf32> -> vector<32x32xf32>
    "tpu.trace_stop"() : () -> ()
    "tpu.trace_start"() <{level = 10 : i32, message = "dq,dm->qm"}> : () -> ()
    %cst_41 = arith.constant dense<0.000000e+00> : vector<8x32xf32>
    %71 = tpu.matmul %69, %2, %cst_41 {dimension_numbers = #tpu.dot_dimension_numbers<[0], [0], [1], [1], [0, 1, 1, 1], [], []>} : vector<32x8xf32>, vector<32x32xf32>, vector<8x32xf32> -> vector<8x32xf32>
    %cst_42 = arith.constant dense<0.000000e+00> : vector<8x32xf32>
    %72 = tpu.matmul %69, %70, %cst_42 {dimension_numbers = #tpu.dot_dimension_numbers<[0], [0], [1], [1], [0, 1, 1, 1], [], []>} : vector<32x8xf32>, vector<32x32xf32>, vector<8x32xf32> -> vector<8x32xf32>
    "tpu.trace_stop"() : () -> ()
    "tpu.trace_start"() <{level = 10 : i32, message = "dm,qm->dq"}> : () -> ()
    %cst_43 = arith.constant dense<0.000000e+00> : vector<32x8xf32>
    %73 = tpu.matmul %2, %65, %cst_43 {dimension_numbers = #tpu.dot_dimension_numbers<[1], [1], [0], [0], [0, 0, 1, 0], [], []>} : vector<32x32xf32>, vector<8x32xf32>, vector<32x8xf32> -> vector<32x8xf32>
    %cst_44 = arith.constant dense<0.000000e+00> : vector<32x8xf32>
    %74 = tpu.matmul %70, %65, %cst_44 {dimension_numbers = #tpu.dot_dimension_numbers<[1], [1], [0], [0], [0, 0, 1, 0], [], []>} : vector<32x32xf32>, vector<8x32xf32>, vector<32x8xf32> -> vector<32x8xf32>
    "tpu.trace_stop"() : () -> ()
    %cst_45 = arith.constant 2.000000e-08 : f32
    %75 = vector.broadcast %cst_45 : f32 to vector<8x32xf32>
    %76 = arith.addf %72, %75 : vector<8x32xf32>
    %77 = arith.divf %71, %76 : vector<8x32xf32>
    %78 = arith.mulf %65, %77 : vector<8x32xf32>
    %cst_46 = arith.constant 2.000000e-08 : f32
    %79 = vector.broadcast %cst_46 : f32 to vector<32x8xf32>
    %80 = arith.addf %74, %79 : vector<32x8xf32>
    %81 = arith.divf %73, %80 : vector<32x8xf32>
    %82 = arith.mulf %69, %81 : vector<32x8xf32>
    "tpu.trace_start"() <{level = 10 : i32, message = "dq,qm->dm"}> : () -> ()
    %cst_47 = arith.constant dense<0.000000e+00> : vector<32x32xf32>
    %83 = tpu.matmul %82, %78, %cst_47 {dimension_numbers = #tpu.dot_dimension_numbers<[1], [0], [0], [1], [0, 0, 1, 1], [], []>} : vector<32x8xf32>, vector<8x32xf32>, vector<32x32xf32> -> vector<32x32xf32>
    "tpu.trace_stop"() : () -> ()
    %c0_48 = arith.constant 0 : index
    %c0_49 = arith.constant 0 : index
    %84 = vector.load %arg4[%c0_48, %c0_49] : memref<32x32xf32, #tpu.memory_space<vmem>>, vector<32x32xf32>
    tpu.vector_store %arg4[%c0_48, %c0_49], %83 {strides = array<i32>} : memref<32x32xf32, #tpu.memory_space<vmem>>, vector<32x32xf32>,
    return
  }
  func.func @transform_0(%arg0: i32) -> (i32, i32) {
    %c0_i32 = arith.constant 0 : i32
    %c0_i32_0 = arith.constant 0 : i32
    return %c0_i32, %arg0 : i32, i32
  }
  func.func @transform_1(%arg0: i32) -> (i32, i32) {
    %c0_i32 = arith.constant 0 : i32
    %c0_i32_0 = arith.constant 0 : i32
    %c0_i32_1 = arith.constant 0 : i32
    return %c0_i32, %c0_i32_0 : i32, i32
  }
  func.func @transform_2(%arg0: i32) -> (i32, i32) {
    %c0_i32 = arith.constant 0 : i32
    %c0_i32_0 = arith.constant 0 : i32
    %c0_i32_1 = arith.constant 0 : i32
    return %c0_i32, %c0_i32_0 : i32, i32
  }
  func.func @transform_3(%arg0: i32) -> (i32, i32) {
    %c0_i32 = arith.constant 0 : i32
    %c0_i32_0 = arith.constant 0 : i32
    return %c0_i32, %arg0 : i32, i32
  }
}

</mosaic_0001>

<llo_original>
// kernel: tpu_custom_call.1
$region0: #{tpu_custom_call.1}
  #allocation0 [shape = 'u32[]', space=smem, size = 0x4, offset = 0x4, fixed_abs, tag = 'smem constant byte address 0x4 - core index']
  #allocation1 [shape = 'u32[144,128]{1,0:T(1,128)}', space=vmem, size = 0x12000, scoped, tag = 'internal scratch']
  %s0 = inlined_call_operand.vmem [shape: f32[32,32], index: 0, kind: input, shape index: {}]
  %s1 = inlined_call_operand.vmem [shape: f32[32,8], index: 1, kind: input, shape index: {}]
  %s2 = inlined_call_operand.vmem [shape: f32[8,32], index: 2, kind: input, shape index: {}]
  %s3 = inlined_call_operand.hbm [shape: f32[32,32], index: 3, kind: output, shape index: {}]
  %s4 = sld [smem:[#allocation0]]
  $region22: #{tpu_custom_call.1} parent=0
    _
  %s6 = ssub.s32 1, %s4
  %s7 = scalar_select 0, %s6, %s4
  $region1: #{tpu_custom_call.1} parent=0
    #allocation2 [shape = 'u8[16384]{0}', space=vmem, size = 0x4000, scoped, tag = 'output window, operand 0, single buffered']
    #allocation3 [shape = 's32[1]{0}', space=sflag, size = 0x4, scoped, tag = 'scoped memory for tpu_custom_call.1']
    %8 = vsyncpa [#allocation3], 0
    // Predicated region
    $region2: #{tpu_custom_call.1} parent=1 // pred_check
      _
    $region3: #{tpu_custom_call.1} parent=1 // pred_check_branch
      %10 = sbr.rel (0) target = $region5
    $region4: #{tpu_custom_call.1} parent=1 // pred_region
      _
    $region5: #{tpu_custom_call.1} parent=1 // pred_fallthru
      _
    // Predicated region
    $region6: #{tpu_custom_call.1} parent=1 // pred_check
      _
    $region7: #{tpu_custom_call.1} parent=1 // pred_check_branch
      %12 = sbr.rel (0) target = $region9
    $region8: #{tpu_custom_call.1} parent=1 // pred_region
      _
    $region9: #{tpu_custom_call.1} parent=1 // pred_fallthru
      _
    // Predicated region
    $region10: #{tpu_custom_call.1} parent=1 // pred_check
      _
    $region11: #{tpu_custom_call.1} parent=1 // pred_check_branch
      %14 = sbr.rel (0) target = $region13
    $region12: #{tpu_custom_call.1} parent=1 // pred_region
      _
    $region13: #{tpu_custom_call.1} parent=1 // pred_fallthru
      _
    %v15 = vld [vmem:[%s0] sm:$0xff]
    %v16 = vld [vmem:[%s0 + $0x8] sm:$0xff]
    %v17 = vld [vmem:[%s0 + $0x10] sm:$0xff]
    %v18 = vld [vmem:[%s0 + $0x18] sm:$0xff]
    %v19 = vmax.f32 %v15, 0.0
    %v20 = vmax.f32 %v16, 0.0
    %v21 = vmax.f32 %v17, 0.0
    %v22 = vmax.f32 %v18, 0.0
    %v23 = vld [vmem:[%s1] sm:$0xff]
    %v24 = vld [vmem:[%s1 + $0x8] sm:$0xff]
    %v25 = vld [vmem:[%s1 + $0x10] sm:$0xff]
    %v26 = vld [vmem:[%s1 + $0x18] sm:$0xff]
    %v27 = vld [vmem:[%s2] sm:$0xff]
    %vm28 = vcmask 64512
    %v30 = vsel %vm28, %v23, 0
    %v33 = vsel %vm28, %v24, 0
    %v36 = vsel %vm28, %v25, 0
    %v39 = vsel %vm28, %v26, 0
    %41 = vmatprep.subr.mxu0 0.0
    %42 = vmatpush1.msra.mxu0 %v27
    %43 = vmatprep.subr.mxu0 0.0
    %44 = vmatpush1.msra.mxu0 0.0
    %45 = vmatprep.subr.mxu0 0.0
    %46 = vmatpush1.msra.mxu0 0.0
    %47 = vmatprep.subr.mxu0 0.0
    %48 = vmatpush1.msra.mxu0 0.0
    %49 = vmatprep.subr.mxu0 0.0
    %50 = vmatpush1.msra.mxu0 0.0
    %51 = vmatprep.subr.mxu0 0.0
    %52 = vmatpush1.msra.mxu0 0.0
    %53 = vmatprep.subr.mxu0 0.0
    %54 = vmatpush1.msra.mxu0 0.0
    %55 = vmatprep.subr.mxu0 0.0
    %56 = vmatpush1.msra.mxu0 0.0
    %57 = vmatprep.subr.mxu0 0.0
    %58 = vmatpush1.msra.mxu0 0.0
    %59 = vmatprep.subr.mxu0 0.0
    %60 = vmatpush1.msra.mxu0 0.0
    %61 = vmatprep.subr.mxu0 0.0
    %62 = vmatpush1.msra.mxu0 0.0
    %63 = vmatprep.subr.mxu0 0.0
    %64 = vmatpush1.msra.mxu0 0.0
    %65 = vmatprep.subr.mxu0 0.0
    %66 = vmatpush1.msra.mxu0 0.0
    %67 = vmatprep.subr.mxu0 0.0
    %68 = vmatpush1.msra.mxu0 0.0
    %69 = vmatprep.subr.mxu0 0.0
    %70 = vmatpush1.msra.mxu0 0.0
    %71 = vmatprep.subr.mxu0 0.0
    %72 = vmatpush1.msra.mxu0 0.0
    %73 = vmatprep.subr.mxu0 0.0
    %74 = vmatpush1.msra.mxu0 0.0
    %75 = vmatprep.subr.mxu0 0.0
    %76 = vmatpush1.msra.mxu0 0.0
    %77 = vmatprep.subr.mxu0 0.0
    %78 = vmatpush1.msra.mxu0 0.0
    %79 = vmatprep.subr.mxu0 0.0
    %80 = vmatpush1.msra.mxu0 0.0
    %81 = vmatprep.subr.mxu0 0.0
    %82 = vmatpush1.msra.mxu0 0.0
    %83 = vmatprep.subr.mxu0 0.0
    %84 = vmatpush1.msra.mxu0 0.0
    %85 = vmatprep.subr.mxu0 0.0
    %86 = vmatpush1.msra.mxu0 0.0
    %87 = vmatprep.subr.mxu0 0.0
    %88 = vmatpush1.msra.mxu0 0.0
    %89 = vmatprep.subr.mxu0 0.0
    %90 = vmatpush1.msra.mxu0 0.0
    %91 = vmatprep.subr.mxu0 0.0
    %92 = vmatpush1.msra.mxu0 0.0
    %93 = vmatprep.subr.mxu0 0.0
    %94 = vmatpush1.msra.mxu0 0.0
    %95 = vmatprep.subr.mxu0 0.0
    %96 = vmatpush1.msra.mxu0 0.0
    %97 = vmatprep.subr.mxu0 0.0
    %98 = vmatpush1.msra.mxu0 0.0
    %99 = vmatprep.subr.mxu0 0.0
    %100 = vmatpush1.msra.mxu0 0.0
    %101 = vmatprep.subr.mxu0 0.0
    %102 = vmatpush1.msra.mxu0 0.0
    %103 = vmatprep.subr.mxu0 0.0
    %104 = vmatpush1.msra.mxu0 0.0
    %105 = vmatprep.mubr.f32.mxu0 0.0
    %106 = vmatmul.mubr.f32.gmra.mrb[0].mxu0 %v30
    %v107 = vpop.f32.mrb[0].mxu0
    %v108 = vadd.f32 0.0, %v107
    %v109 = vpop.f32.mrb[0].mxu0
    %110 = vmatprep.mubr.f32.mxu0 0.0
    %111 = vmatmul.mubr.f32.gmra.mrb[0].mxu0 %v33
    %v112 = vpop.f32.mrb[0].mxu0
    %v113 = vadd.f32 0.0, %v112
    %v114 = vpop.f32.mrb[0].mxu0
    %115 = vmatprep.mubr.f32.mxu0 0.0
    %116 = vmatmul.mubr.f32.gmra.mrb[0].mxu0 %v36
    %v117 = vpop.f32.mrb[0].mxu0
    %v118 = vadd.f32 0.0, %v117
    %v119 = vpop.f32.mrb[0].mxu0
    %120 = vmatprep.mubr.f32.mxu0 0.0
    %121 = vmatmul.mubr.f32.gmra.mrb[0].mxu0 %v39
    %v122 = vpop.f32.mrb[0].mxu0
    %v123 = vadd.f32 0.0, %v122
    %v124 = vpop.f32.mrb[0].mxu0
    %125 = vdwg.mxu0
    %126 = vxpose.xlu0.b32.start [1/16] %v23, 128
    %127 = vxpose.xlu0.b32.cont [2/16] %v24, 128
    %128 = vxpose.xlu0.b32.cont [3/16] %v25, 128
    %129 = vxpose.xlu0.b32.cont [4/16] %v26, 128
    %130 = vxpose.xlu0.b32.cont [5/16] 0.0, 128
    %131 = vxpose.xlu0.b32.cont [6/16] 0.0, 128
    %132 = vxpose.xlu0.b32.cont [7/16] 0.0, 128
    %133 = vxpose.xlu0.b32.cont [8/16] 0.0, 128
    %134 = vxpose.xlu0.b32.cont [9/16] 0.0, 128
    %135 = vxpose.xlu0.b32.cont [10/16] 0.0, 128
    %136 = vxpose.xlu0.b32.cont [11/16] 0.0, 128
    %137 = vxpose.xlu0.b32.cont [12/16] 0.0, 128
    %138 = vxpose.xlu0.b32.cont [13/16] 0.0, 128
    %139 = vxpose.xlu0.b32.cont [14/16] 0.0, 128
    %140 = vxpose.xlu0.b32.cont [15/16] 0.0, 128
    %141 = vxpose.xlu0.b32.end [16/16] 0.0, 128
    %v142 = vpop.trf.xlu0
    %v143 = vpop.trf.xlu0
    %v144 = vpop.trf.xlu0
    %v145 = vpop.trf.xlu0
    %v146 = vpop.trf.xlu0
    %v147 = vpop.trf.xlu0
    %v148 = vpop.trf.xlu0
    %v149 = vpop.trf.xlu0
    %v150 = vpop.trf.xlu0
    %v151 = vpop.trf.xlu0
    %v152 = vpop.trf.xlu0
    %v153 = vpop.trf.xlu0
    %v154 = vpop.trf.xlu0
    %v155 = vpop.trf.xlu0
    %v156 = vpop.trf.xlu0
    %v157 = vpop.trf.xlu0
    %vm158 = vcmask 261120
    %v160 = vsel %vm158, %v142, 0
    %162 = vmatprep.subr.mxu0 0.0
    %163 = vmatpush1.msra.mxu0 %v19
    %164 = vmatprep.subr.mxu0 0.0
    %165 = vmatpush1.msra.mxu0 %v20
    %166 = vmatprep.subr.mxu0 0.0
    %167 = vmatpush1.msra.mxu0 %v21
    %168 = vmatprep.subr.mxu0 0.0
    %169 = vmatpush1.msra.mxu0 %v22
    %170 = vmatprep.subr.mxu0 0.0
    %171 = vmatpush1.msra.mxu0 0.0
    %172 = vmatprep.subr.mxu0 0.0
    %173 = vmatpush1.msra.mxu0 0.0
    %174 = vmatprep.subr.mxu0 0.0
    %175 = vmatpush1.msra.mxu0 0.0
    %176 = vmatprep.subr.mxu0 0.0
    %177 = vmatpush1.msra.mxu0 0.0
    %178 = vmatprep.subr.mxu0 0.0
    %179 = vmatpush1.msra.mxu0 0.0
    %180 = vmatprep.subr.mxu0 0.0
    %181 = vmatpush1.msra.mxu0 0.0
    %182 = vmatprep.subr.mxu0 0.0
    %183 = vmatpush1.msra.mxu0 0.0
    %184 = vmatprep.subr.mxu0 0.0
    %185 = vmatpush1.msra.mxu0 0.0
    %186 = vmatprep.subr.mxu0 0.0
    %187 = vmatpush1.msra.mxu0 0.0
    %188 = vmatprep.subr.mxu0 0.0
    %189 = vmatpush1.msra.mxu0 0.0
    %190 = vmatprep.subr.mxu0 0.0
    %191 = vmatpush1.msra.mxu0 0.0
    %192 = vmatprep.subr.mxu0 0.0
    %193 = vmatpush1.msra.mxu0 0.0
    %194 = vmatprep.subr.mxu0 0.0
    %195 = vmatpush1.msra.mxu0 0.0
    %196 = vmatprep.subr.mxu0 0.0
    %197 = vmatpush1.msra.mxu0 0.0
    %198 = vmatprep.subr.mxu0 0.0
    %199 = vmatpush1.msra.mxu0 0.0
    %200 = vmatprep.subr.mxu0 0.0
    %201 = vmatpush1.msra.mxu0 0.0
    %202 = vmatprep.subr.mxu0 0.0
    %203 = vmatpush1.msra.mxu0 0.0
    %204 = vmatprep.subr.mxu0 0.0
    %205 = vmatpush1.msra.mxu0 0.0
    %206 = vmatprep.subr.mxu0 0.0
    %207 = vmatpush1.msra.mxu0 0.0
    %208 = vmatprep.subr.mxu0 0.0
    %209 = vmatpush1.msra.mxu0 0.0
    %210 = vmatprep.subr.mxu0 0.0
    %211 = vmatpush1.msra.mxu0 0.0
    %212 = vmatprep.subr.mxu0 0.0
    %213 = vmatpush1.msra.mxu0 0.0
    %214 = vmatprep.subr.mxu0 0.0
    %215 = vmatpush1.msra.mxu0 0.0
    %216 = vmatprep.subr.mxu0 0.0
    %217 = vmatpush1.msra.mxu0 0.0
    %218 = vmatprep.subr.mxu0 0.0
    %219 = vmatpush1.msra.mxu0 0.0
    %220 = vmatprep.subr.mxu0 0.0
    %221 = vmatpush1.msra.mxu0 0.0
    %222 = vmatprep.subr.mxu0 0.0
    %223 = vmatpush1.msra.mxu0 0.0
    %224 = vmatprep.subr.mxu0 0.0
    %225 = vmatpush1.msra.mxu0 0.0
    %226 = vmatprep.mubr.f32.mxu0 0.0
    %227 = vmatmul.mubr.f32.gmra.mrb[0].mxu0 %v160
    %v228 = vpop.f32.mrb[0].mxu0
    %v229 = vadd.f32 0.0, %v228
    %v230 = vpop.f32.mrb[0].mxu0
    %231 = vdwg.mxu0
    %v233 = vsel %vm158, %v19, 0
    %v236 = vsel %vm158, %v20, 0
    %v239 = vsel %vm158, %v21, 0
    %v242 = vsel %vm158, %v22, 0
    %v245 = vsel %vm158, %v27, 0
    %247 = vmatprep.subr.mxu0 0.0
    %248 = vmatpush1.xpose.msra.mxu0 %v245
    %249 = vmatprep.subr.mxu0 0.0
    %250 = vmatpush1.xpose.msra.mxu0 0.0
    %251 = vmatprep.subr.mxu0 0.0
    %252 = vmatpush1.xpose.msra.mxu0 0.0
    %253 = vmatprep.subr.mxu0 0.0
    %254 = vmatpush1.xpose.msra.mxu0 0.0
    %255 = vmatprep.subr.mxu0 0.0
    %256 = vmatpush1.xpose.msra.mxu0 0.0
    %257 = vmatprep.subr.mxu0 0.0
    %258 = vmatpush1.xpose.msra.mxu0 0.0
    %259 = vmatprep.subr.mxu0 0.0
    %260 = vmatpush1.xpose.msra.mxu0 0.0
    %261 = vmatprep.subr.mxu0 0.0
    %262 = vmatpush1.xpose.msra.mxu0 0.0
    %263 = vmatprep.subr.mxu0 0.0
    %264 = vmatpush1.xpose.msra.mxu0 0.0
    %265 = vmatprep.subr.mxu0 0.0
    %266 = vmatpush1.xpose.msra.mxu0 0.0
    %267 = vmatprep.subr.mxu0 0.0
    %268 = vmatpush1.xpose.msra.mxu0 0.0
    %269 = vmatprep.subr.mxu0 0.0
    %270 = vmatpush1.xpose.msra.mxu0 0.0
    %271 = vmatprep.subr.mxu0 0.0
    %272 = vmatpush1.xpose.msra.mxu0 0.0
    %273 = vmatprep.subr.mxu0 0.0
    %274 = vmatpush1.xpose.msra.mxu0 0.0
    %275 = vmatprep.subr.mxu0 0.0
    %276 = vmatpush1.xpose.msra.mxu0 0.0
    %277 = vmatprep.subr.mxu0 0.0
    %278 = vmatpush1.xpose.msra.mxu0 0.0
    %279 = vmatprep.subr.mxu0 0.0
    %280 = vmatpush1.xpose.msra.mxu0 0.0
    %281 = vmatprep.subr.mxu0 0.0
    %282 = vmatpush1.xpose.msra.mxu0 0.0
    %283 = vmatprep.subr.mxu0 0.0
    %284 = vmatpush1.xpose.msra.mxu0 0.0
    %285 = vmatprep.subr.mxu0 0.0
    %286 = vmatpush1.xpose.msra.mxu0 0.0
    %287 = vmatprep.subr.mxu0 0.0
    %288 = vmatpush1.xpose.msra.mxu0 0.0
    %289 = vmatprep.subr.mxu0 0.0
    %290 = vmatpush1.xpose.msra.mxu0 0.0
    %291 = vmatprep.subr.mxu0 0.0
    %292 = vmatpush1.xpose.msra.mxu0 0.0
    %293 = vmatprep.subr.mxu0 0.0
    %294 = vmatpush1.xpose.msra.mxu0 0.0
    %295 = vmatprep.subr.mxu0 0.0
    %296 = vmatpush1.xpose.msra.mxu0 0.0
    %297 = vmatprep.subr.mxu0 0.0
    %298 = vmatpush1.xpose.msra.mxu0 0.0
    %299 = vmatprep.subr.mxu0 0.0
    %300 = vmatpush1.xpose.msra.mxu0 0.0
    %301 = vmatprep.subr.mxu0 0.0
    %302 = vmatpush1.xpose.msra.mxu0 0.0
    %303 = vmatprep.subr.mxu0 0.0
    %304 = vmatpush1.xpose.msra.mxu0 0.0
    %305 = vmatprep.subr.mxu0 0.0
    %306 = vmatpush1.xpose.msra.mxu0 0.0
    %307 = vmatprep.subr.mxu0 0.0
    %308 = vmatpush1.xpose.msra.mxu0 0.0
    %309 = vmatprep.subr.mxu0 0.0
    %310 = vmatpush1.xpose.msra.mxu0 0.0
    %311 = vmatprep.mubr.f32.mxu0 0.0
    %312 = vmatmul.mubr.f32.gmra.mrb[0].mxu0 %v233
    %v313 = vpop.f32.mrb[0].mxu0
    %v314 = vadd.f32 0.0, %v313
    %v315 = vpop.f32.mrb[0].mxu0
    %316 = vmatprep.mubr.f32.mxu0 0.0
    %317 = vmatmul.mubr.f32.gmra.mrb[0].mxu0 %v236
    %v318 = vpop.f32.mrb[0].mxu0
    %v319 = vadd.f32 0.0, %v318
    %v320 = vpop.f32.mrb[0].mxu0
    %321 = vmatprep.mubr.f32.mxu0 0.0
    %322 = vmatmul.mubr.f32.gmra.mrb[0].mxu0 %v239
    %v323 = vpop.f32.mrb[0].mxu0
    %v324 = vadd.f32 0.0, %v323
    %v325 = vpop.f32.mrb[0].mxu0
    %326 = vmatprep.mubr.f32.mxu0 0.0
    %327 = vmatmul.mubr.f32.gmra.mrb[0].mxu0 %v242
    %v328 = vpop.f32.mrb[0].mxu0
    %v329 = vadd.f32 0.0, %v328
    %v330 = vpop.f32.mrb[0].mxu0
    %331 = vdwg.mxu0
    %332 = vmatprep.subr.mxu0 0.0
    %333 = vmatpush1.msra.mxu0 %v108
    %334 = vmatprep.subr.mxu0 0.0
    %335 = vmatpush1.msra.mxu0 %v113
    %336 = vmatprep.subr.mxu0 0.0
    %337 = vmatpush1.msra.mxu0 %v118
    %338 = vmatprep.subr.mxu0 0.0
    %339 = vmatpush1.msra.mxu0 %v123
    %340 = vmatprep.subr.mxu0 0.0
    %341 = vmatpush1.msra.mxu0 0.0
    %342 = vmatprep.subr.mxu0 0.0
    %343 = vmatpush1.msra.mxu0 0.0
    %344 = vmatprep.subr.mxu0 0.0
    %345 = vmatpush1.msra.mxu0 0.0
    %346 = vmatprep.subr.mxu0 0.0
    %347 = vmatpush1.msra.mxu0 0.0
    %348 = vmatprep.subr.mxu0 0.0
    %349 = vmatpush1.msra.mxu0 0.0
    %350 = vmatprep.subr.mxu0 0.0
    %351 = vmatpush1.msra.mxu0 0.0
    %352 = vmatprep.subr.mxu0 0.0
    %353 = vmatpush1.msra.mxu0 0.0
    %354 = vmatprep.subr.mxu0 0.0
    %355 = vmatpush1.msra.mxu0 0.0
    %356 = vmatprep.subr.mxu0 0.0
    %357 = vmatpush1.msra.mxu0 0.0
    %358 = vmatprep.subr.mxu0 0.0
    %359 = vmatpush1.msra.mxu0 0.0
    %360 = vmatprep.subr.mxu0 0.0
    %361 = vmatpush1.msra.mxu0 0.0
    %362 = vmatprep.subr.mxu0 0.0
    %363 = vmatpush1.msra.mxu0 0.0
    %364 = vmatprep.subr.mxu0 0.0
    %365 = vmatpush1.msra.mxu0 0.0
    %366 = vmatprep.subr.mxu0 0.0
    %367 = vmatpush1.msra.mxu0 0.0
    %368 = vmatprep.subr.mxu0 0.0
    %369 = vmatpush1.msra.mxu0 0.0
    %370 = vmatprep.subr.mxu0 0.0
    %371 = vmatpush1.msra.mxu0 0.0
    %372 = vmatprep.subr.mxu0 0.0
    %373 = vmatpush1.msra.mxu0 0.0
    %374 = vmatprep.subr.mxu0 0.0
    %375 = vmatpush1.msra.mxu0 0.0
    %376 = vmatprep.subr.mxu0 0.0
    %377 = vmatpush1.msra.mxu0 0.0
    %378 = vmatprep.subr.mxu0 0.0
    %379 = vmatpush1.msra.mxu0 0.0
    %380 = vmatprep.subr.mxu0 0.0
    %381 = vmatpush1.msra.mxu0 0.0
    %382 = vmatprep.subr.mxu0 0.0
    %383 = vmatpush1.msra.mxu0 0.0
    %384 = vmatprep.subr.mxu0 0.0
    %385 = vmatpush1.msra.mxu0 0.0
    %386 = vmatprep.subr.mxu0 0.0
    %387 = vmatpush1.msra.mxu0 0.0
    %388 = vmatprep.subr.mxu0 0.0
    %389 = vmatpush1.msra.mxu0 0.0
    %390 = vmatprep.subr.mxu0 0.0
    %391 = vmatpush1.msra.mxu0 0.0
    %392 = vmatprep.subr.mxu0 0.0
    %393 = vmatpush1.msra.mxu0 0.0
    %394 = vmatprep.subr.mxu0 0.0
    %395 = vmatpush1.msra.mxu0 0.0
    %396 = vmatprep.mubr.f32.mxu0 0.0
    %397 = vmatmul.mubr.f32.gmra.mrb[0].mxu0 %v160
    %v398 = vpop.f32.mrb[0].mxu0
    %v399 = vadd.f32 2e-08, %v398
    %v400 = vpop.f32.mrb[0].mxu0
    %401 = vdwg.mxu0
    %v402 = vrcp.pop %v399
    %v403 = vmul.f32 %v229, %v402
    %v404 = vmul.f32 %v27, %v403
    %v406 = vsel %vm158, %v108, 0
    %v409 = vsel %vm158, %v113, 0
    %v412 = vsel %vm158, %v118, 0
    %v415 = vsel %vm158, %v123, 0
    %417 = vmatprep.subr.mxu0 0.0
    %418 = vmatpush1.xpose.msra.mxu0 %v245
    %419 = vmatprep.subr.mxu0 0.0
    %420 = vmatpush1.xpose.msra.mxu0 0.0
    %421 = vmatprep.subr.mxu0 0.0
    %422 = vmatpush1.xpose.msra.mxu0 0.0
    %423 = vmatprep.subr.mxu0 0.0
    %424 = vmatpush1.xpose.msra.mxu0 0.0
    %425 = vmatprep.subr.mxu0 0.0
    %426 = vmatpush1.xpose.msra.mxu0 0.0
    %427 = vmatprep.subr.mxu0 0.0
    %428 = vmatpush1.xpose.msra.mxu0 0.0
    %429 = vmatprep.subr.mxu0 0.0
    %430 = vmatpush1.xpose.msra.mxu0 0.0
    %431 = vmatprep.subr.mxu0 0.0
    %432 = vmatpush1.xpose.msra.mxu0 0.0
    %433 = vmatprep.subr.mxu0 0.0
    %434 = vmatpush1.xpose.msra.mxu0 0.0
    %435 = vmatprep.subr.mxu0 0.0
    %436 = vmatpush1.xpose.msra.mxu0 0.0
    %437 = vmatprep.subr.mxu0 0.0
    %438 = vmatpush1.xpose.msra.mxu0 0.0
    %439 = vmatprep.subr.mxu0 0.0
    %440 = vmatpush1.xpose.msra.mxu0 0.0
    %441 = vmatprep.subr.mxu0 0.0
    %442 = vmatpush1.xpose.msra.mxu0 0.0
    %443 = vmatprep.subr.mxu0 0.0
    %444 = vmatpush1.xpose.msra.mxu0 0.0
    %445 = vmatprep.subr.mxu0 0.0
    %446 = vmatpush1.xpose.msra.mxu0 0.0
    %447 = vmatprep.subr.mxu0 0.0
    %448 = vmatpush1.xpose.msra.mxu0 0.0
    %449 = vmatprep.subr.mxu0 0.0
    %450 = vmatpush1.xpose.msra.mxu0 0.0
    %451 = vmatprep.subr.mxu0 0.0
    %452 = vmatpush1.xpose.msra.mxu0 0.0
    %453 = vmatprep.subr.mxu0 0.0
    %454 = vmatpush1.xpose.msra.mxu0 0.0
    %455 = vmatprep.subr.mxu0 0.0
    %456 = vmatpush1.xpose.msra.mxu0 0.0
    %457 = vmatprep.subr.mxu0 0.0
    %458 = vmatpush1.xpose.msra.mxu0 0.0
    %459 = vmatprep.subr.mxu0 0.0
    %460 = vmatpush1.xpose.msra.mxu0 0.0
    %461 = vmatprep.subr.mxu0 0.0
    %462 = vmatpush1.xpose.msra.mxu0 0.0
    %463 = vmatprep.subr.mxu0 0.0
    %464 = vmatpush1.xpose.msra.mxu0 0.0
    %465 = vmatprep.subr.mxu0 0.0
    %466 = vmatpush1.xpose.msra.mxu0 0.0
    %467 = vmatprep.subr.mxu0 0.0
    %468 = vmatpush1.xpose.msra.mxu0 0.0
    %469 = vmatprep.subr.mxu0 0.0
    %470 = vmatpush1.xpose.msra.mxu0 0.0
    %471 = vmatprep.subr.mxu0 0.0
    %472 = vmatpush1.xpose.msra.mxu0 0.0
    %473 = vmatprep.subr.mxu0 0.0
    %474 = vmatpush1.xpose.msra.mxu0 0.0
    %475 = vmatprep.subr.mxu0 0.0
    %476 = vmatpush1.xpose.msra.mxu0 0.0
    %477 = vmatprep.subr.mxu0 0.0
    %478 = vmatpush1.xpose.msra.mxu0 0.0
    %479 = vmatprep.subr.mxu0 0.0
    %480 = vmatpush1.xpose.msra.mxu0 0.0
    %481 = vmatprep.mubr.f32.mxu0 0.0
    %482 = vmatmul.mubr.f32.gmra.mrb[0].mxu0 %v406
    %v483 = vpop.f32.mrb[0].mxu0
    %v484 = vadd.f32 2e-08, %v483
    %v485 = vpop.f32.mrb[0].mxu0
    %486 = vmatprep.mubr.f32.mxu0 0.0
    %487 = vmatmul.mubr.f32.gmra.mrb[0].mxu0 %v409
    %v488 = vpop.f32.mrb[0].mxu0
    %v489 = vadd.f32 2e-08, %v488
    %v490 = vpop.f32.mrb[0].mxu0
    %491 = vmatprep.mubr.f32.mxu0 0.0
    %492 = vmatmul.mubr.f32.gmra.mrb[0].mxu0 %v412
    %v493 = vpop.f32.mrb[0].mxu0
    %v494 = vadd.f32 2e-08, %v493
    %v495 = vpop.f32.mrb[0].mxu0
    %496 = vmatprep.mubr.f32.mxu0 0.0
    %497 = vmatmul.mubr.f32.gmra.mrb[0].mxu0 %v415
    %v498 = vpop.f32.mrb[0].mxu0
    %v499 = vadd.f32 2e-08, %v498
    %v500 = vpop.f32.mrb[0].mxu0
    %501 = vdwg.mxu0
    %v502 = vrcp.pop %v484
    %v503 = vmul.f32 %v314, %v502
    %v504 = vrcp.pop %v489
    %v505 = vmul.f32 %v319, %v504
    %v506 = vrcp.pop %v494
    %v507 = vmul.f32 %v324, %v506
    %v508 = vrcp.pop %v499
    %v509 = vmul.f32 %v329, %v508
    %v510 = vmul.f32 %v23, %v503
    %v511 = vmul.f32 %v24, %v505
    %v512 = vmul.f32 %v25, %v507
    %v513 = vmul.f32 %v26, %v509
    %v515 = vsel %vm28, %v510, 0
    %v518 = vsel %vm28, %v511, 0
    %v521 = vsel %vm28, %v512, 0
    %v524 = vsel %vm28, %v513, 0
    %526 = vmatprep.subr.mxu0 0.0
    %527 = vmatpush1.msra.mxu0 %v404
    %528 = vmatprep.subr.mxu0 0.0
    %529 = vmatpush1.msra.mxu0 0.0
    %530 = vmatprep.subr.mxu0 0.0
    %531 = vmatpush1.msra.mxu0 0.0
    %532 = vmatprep.subr.mxu0 0.0
    %533 = vmatpush1.msra.mxu0 0.0
    %534 = vmatprep.subr.mxu0 0.0
    %535 = vmatpush1.msra.mxu0 0.0
    %536 = vmatprep.subr.mxu0 0.0
    %537 = vmatpush1.msra.mxu0 0.0
    %538 = vmatprep.subr.mxu0 0.0
    %539 = vmatpush1.msra.mxu0 0.0
    %540 = vmatprep.subr.mxu0 0.0
    %541 = vmatpush1.msra.mxu0 0.0
    %542 = vmatprep.subr.mxu0 0.0
    %543 = vmatpush1.msra.mxu0 0.0
    %544 = vmatprep.subr.mxu0 0.0
    %545 = vmatpush1.msra.mxu0 0.0
    %546 = vmatprep.subr.mxu0 0.0
    %547 = vmatpush1.msra.mxu0 0.0
    %548 = vmatprep.subr.mxu0 0.0
    %549 = vmatpush1.msra.mxu0 0.0
    %550 = vmatprep.subr.mxu0 0.0
    %551 = vmatpush1.msra.mxu0 0.0
    %552 = vmatprep.subr.mxu0 0.0
    %553 = vmatpush1.msra.mxu0 0.0
    %554 = vmatprep.subr.mxu0 0.0
    %555 = vmatpush1.msra.mxu0 0.0
    %556 = vmatprep.subr.mxu0 0.0
    %557 = vmatpush1.msra.mxu0 0.0
    %558 = vmatprep.subr.mxu0 0.0
    %559 = vmatpush1.msra.mxu0 0.0
    %560 = vmatprep.subr.mxu0 0.0
    %561 = vmatpush1.msra.mxu0 0.0
    %562 = vmatprep.subr.mxu0 0.0
    %563 = vmatpush1.msra.mxu0 0.0
    %564 = vmatprep.subr.mxu0 0.0
    %565 = vmatpush1.msra.mxu0 0.0
    %566 = vmatprep.subr.mxu0 0.0
    %567 = vmatpush1.msra.mxu0 0.0
    %568 = vmatprep.subr.mxu0 0.0
    %569 = vmatpush1.msra.mxu0 0.0
    %570 = vmatprep.subr.mxu0 0.0
    %571 = vmatpush1.msra.mxu0 0.0
    %572 = vmatprep.subr.mxu0 0.0
    %573 = vmatpush1.msra.mxu0 0.0
    %574 = vmatprep.subr.mxu0 0.0
    %575 = vmatpush1.msra.mxu0 0.0
    %576 = vmatprep.subr.mxu0 0.0
    %577 = vmatpush1.msra.mxu0 0.0
    %578 = vmatprep.subr.mxu0 0.0
    %579 = vmatpush1.msra.mxu0 0.0
    %580 = vmatprep.subr.mxu0 0.0
    %581 = vmatpush1.msra.mxu0 0.0
    %582 = vmatprep.subr.mxu0 0.0
    %583 = vmatpush1.msra.mxu0 0.0
    %584 = vmatprep.subr.mxu0 0.0
    %585 = vmatpush1.msra.mxu0 0.0
    %586 = vmatprep.subr.mxu0 0.0
    %587 = vmatpush1.msra.mxu0 0.0
    %588 = vmatprep.subr.mxu0 0.0
    %589 = vmatpush1.msra.mxu0 0.0
    %590 = vmatprep.mubr.f32.mxu0 0.0
    %591 = vmatmul.mubr.f32.gmra.mrb[0].mxu0 %v515
    %v592 = vpop.f32.mrb[0].mxu0
    %v593 = vadd.f32 0.0, %v592
    %v594 = vpop.f32.mrb[0].mxu0
    %595 = vmatprep.mubr.f32.mxu0 0.0
    %596 = vmatmul.mubr.f32.gmra.mrb[0].mxu0 %v518
    %v597 = vpop.f32.mrb[0].mxu0
    %v598 = vadd.f32 0.0, %v597
    %v599 = vpop.f32.mrb[0].mxu0
    %600 = vmatprep.mubr.f32.mxu0 0.0
    %601 = vmatmul.mubr.f32.gmra.mrb[0].mxu0 %v521
    %v602 = vpop.f32.mrb[0].mxu0
    %v603 = vadd.f32 0.0, %v602
    %v604 = vpop.f32.mrb[0].mxu0
    %605 = vmatprep.mubr.f32.mxu0 0.0
    %606 = vmatmul.mubr.f32.gmra.mrb[0].mxu0 %v524
    %v607 = vpop.f32.mrb[0].mxu0
    %v608 = vadd.f32 0.0, %v607
    %v609 = vpop.f32.mrb[0].mxu0
    %610 = vdwg.mxu0
    %611 = vxpose.xlu0.b32.start [1/16] %v510, 128
    %612 = vxpose.xlu0.b32.cont [2/16] %v511, 128
    %613 = vxpose.xlu0.b32.cont [3/16] %v512, 128
    %614 = vxpose.xlu0.b32.cont [4/16] %v513, 128
    %615 = vxpose.xlu0.b32.cont [5/16] 0.0, 128
    %616 = vxpose.xlu0.b32.cont [6/16] 0.0, 128
    %617 = vxpose.xlu0.b32.cont [7/16] 0.0, 128
    %618 = vxpose.xlu0.b32.cont [8/16] 0.0, 128
    %619 = vxpose.xlu0.b32.cont [9/16] 0.0, 128
    %620 = vxpose.xlu0.b32.cont [10/16] 0.0, 128
    %621 = vxpose.xlu0.b32.cont [11/16] 0.0, 128
    %622 = vxpose.xlu0.b32.cont [12/16] 0.0, 128
    %623 = vxpose.xlu0.b32.cont [13/16] 0.0, 128
    %624 = vxpose.xlu0.b32.cont [14/16] 0.0, 128
    %625 = vxpose.xlu0.b32.cont [15/16] 0.0, 128
    %626 = vxpose.xlu0.b32.end [16/16] 0.0, 128
    %v627 = vpop.trf.xlu0
    %v628 = vpop.trf.xlu0
    %v629 = vpop.trf.xlu0
    %v630 = vpop.trf.xlu0
    %v631 = vpop.trf.xlu0
    %v632 = vpop.trf.xlu0
    %v633 = vpop.trf.xlu0
    %v634 = vpop.trf.xlu0
    %v635 = vpop.trf.xlu0
    %v636 = vpop.trf.xlu0
    %v637 = vpop.trf.xlu0
    %v638 = vpop.trf.xlu0
    %v639 = vpop.trf.xlu0
    %v640 = vpop.trf.xlu0
    %v641 = vpop.trf.xlu0
    %v642 = vpop.trf.xlu0
    %v644 = vsel %vm158, %v627, 0
    %646 = vmatprep.subr.mxu0 0.0
    %647 = vmatpush1.msra.mxu0 %v19
    %648 = vmatprep.subr.mxu0 0.0
    %649 = vmatpush1.msra.mxu0 %v20
    %650 = vmatprep.subr.mxu0 0.0
    %651 = vmatpush1.msra.mxu0 %v21
    %652 = vmatprep.subr.mxu0 0.0
    %653 = vmatpush1.msra.mxu0 %v22
    %654 = vmatprep.subr.mxu0 0.0
    %655 = vmatpush1.msra.mxu0 0.0
    %656 = vmatprep.subr.mxu0 0.0
    %657 = vmatpush1.msra.mxu0 0.0
    %658 = vmatprep.subr.mxu0 0.0
    %659 = vmatpush1.msra.mxu0 0.0
    %660 = vmatprep.subr.mxu0 0.0
    %661 = vmatpush1.msra.mxu0 0.0
    %662 = vmatprep.subr.mxu0 0.0
    %663 = vmatpush1.msra.mxu0 0.0
    %664 = vmatprep.subr.mxu0 0.0
    %665 = vmatpush1.msra.mxu0 0.0
    %666 = vmatprep.subr.mxu0 0.0
    %667 = vmatpush1.msra.mxu0 0.0
    %668 = vmatprep.subr.mxu0 0.0
    %669 = vmatpush1.msra.mxu0 0.0
    %670 = vmatprep.subr.mxu0 0.0
    %671 = vmatpush1.msra.mxu0 0.0
    %672 = vmatprep.subr.mxu0 0.0
    %673 = vmatpush1.msra.mxu0 0.0
    %674 = vmatprep.subr.mxu0 0.0
    %675 = vmatpush1.msra.mxu0 0.0
    %676 = vmatprep.subr.mxu0 0.0
    %677 = vmatpush1.msra.mxu0 0.0
    %678 = vmatprep.subr.mxu0 0.0
    %679 = vmatpush1.msra.mxu0 0.0
    %680 = vmatprep.subr.mxu0 0.0
    %681 = vmatpush1.msra.mxu0 0.0
    %682 = vmatprep.subr.mxu0 0.0
    %683 = vmatpush1.msra.mxu0 0.0
    %684 = vmatprep.subr.mxu0 0.0
    %685 = vmatpush1.msra.mxu0 0.0
    %686 = vmatprep.subr.mxu0 0.0
    %687 = vmatpush1.msra.mxu0 0.0
    %688 = vmatprep.subr.mxu0 0.0
    %689 = vmatpush1.msra.mxu0 0.0
    %690 = vmatprep.subr.mxu0 0.0
    %691 = vmatpush1.msra.mxu0 0.0
    %692 = vmatprep.subr.mxu0 0.0
    %693 = vmatpush1.msra.mxu0 0.0
    %694 = vmatprep.subr.mxu0 0.0
    %695 = vmatpush1.msra.mxu0 0.0
    %696 = vmatprep.subr.mxu0 0.0
    %697 = vmatpush1.msra.mxu0 0.0
    %698 = vmatprep.subr.mxu0 0.0
    %699 = vmatpush1.msra.mxu0 0.0
    %700 = vmatprep.subr.mxu0 0.0
    %701 = vmatpush1.msra.mxu0 0.0
    %702 = vmatprep.subr.mxu0 0.0
    %703 = vmatpush1.msra.mxu0 0.0
    %704 = vmatprep.subr.mxu0 0.0
    %705 = vmatpush1.msra.mxu0 0.0
    %706 = vmatprep.subr.mxu0 0.0
    %707 = vmatpush1.msra.mxu0 0.0
    %708 = vmatprep.subr.mxu0 0.0
    %709 = vmatpush1.msra.mxu0 0.0
    %710 = vmatprep.mubr.f32.mxu0 0.0
    %711 = vmatmul.mubr.f32.gmra.mrb[0].mxu0 %v644
    %v712 = vpop.f32.mrb[0].mxu0
    %v713 = vadd.f32 0.0, %v712
    %v714 = vpop.f32.mrb[0].mxu0
    %715 = vdwg.mxu0
    %v717 = vsel %vm158, %v404, 0
    %719 = vmatprep.subr.mxu0 0.0
    %720 = vmatpush1.xpose.msra.mxu0 %v717
    %721 = vmatprep.subr.mxu0 0.0
    %722 = vmatpush1.xpose.msra.mxu0 0.0
    %723 = vmatprep.subr.mxu0 0.0
    %724 = vmatpush1.xpose.msra.mxu0 0.0
    %725 = vmatprep.subr.mxu0 0.0
    %726 = vmatpush1.xpose.msra.mxu0 0.0
    %727 = vmatprep.subr.mxu0 0.0
    %728 = vmatpush1.xpose.msra.mxu0 0.0
    %729 = vmatprep.subr.mxu0 0.0
    %730 = vmatpush1.xpose.msra.mxu0 0.0
    %731 = vmatprep.subr.mxu0 0.0
    %732 = vmatpush1.xpose.msra.mxu0 0.0
    %733 = vmatprep.subr.mxu0 0.0
    %734 = vmatpush1.xpose.msra.mxu0 0.0
    %735 = vmatprep.subr.mxu0 0.0
    %736 = vmatpush1.xpose.msra.mxu0 0.0
    %737 = vmatprep.subr.mxu0 0.0
    %738 = vmatpush1.xpose.msra.mxu0 0.0
    %739 = vmatprep.subr.mxu0 0.0
    %740 = vmatpush1.xpose.msra.mxu0 0.0
    %741 = vmatprep.subr.mxu0 0.0
    %742 = vmatpush1.xpose.msra.mxu0 0.0
    %743 = vmatprep.subr.mxu0 0.0
    %744 = vmatpush1.xpose.msra.mxu0 0.0
    %745 = vmatprep.subr.mxu0 0.0
    %746 = vmatpush1.xpose.msra.mxu0 0.0
    %747 = vmatprep.subr.mxu0 0.0
    %748 = vmatpush1.xpose.msra.mxu0 0.0
    %749 = vmatprep.subr.mxu0 0.0
    %750 = vmatpush1.xpose.msra.mxu0 0.0
    %751 = vmatprep.subr.mxu0 0.0
    %752 = vmatpush1.xpose.msra.mxu0 0.0
    %753 = vmatprep.subr.mxu0 0.0
    %754 = vmatpush1.xpose.msra.mxu0 0.0
    %755 = vmatprep.subr.mxu0 0.0
    %756 = vmatpush1.xpose.msra.mxu0 0.0
    %757 = vmatprep.subr.mxu0 0.0
    %758 = vmatpush1.xpose.msra.mxu0 0.0
    %759 = vmatprep.subr.mxu0 0.0
    %760 = vmatpush1.xpose.msra.mxu0 0.0
    %761 = vmatprep.subr.mxu0 0.0
    %762 = vmatpush1.xpose.msra.mxu0 0.0
    %763 = vmatprep.subr.mxu0 0.0
    %764 = vmatpush1.xpose.msra.mxu0 0.0
    %765 = vmatprep.subr.mxu0 0.0
    %766 = vmatpush1.xpose.msra.mxu0 0.0
    %767 = vmatprep.subr.mxu0 0.0
    %768 = vmatpush1.xpose.msra.mxu0 0.0
    %769 = vmatprep.subr.mxu0 0.0
    %770 = vmatpush1.xpose.msra.mxu0 0.0
    %771 = vmatprep.subr.mxu0 0.0
    %772 = vmatpush1.xpose.msra.mxu0 0.0
    %773 = vmatprep.subr.mxu0 0.0
    %774 = vmatpush1.xpose.msra.mxu0 0.0
    %775 = vmatprep.subr.mxu0 0.0
    %776 = vmatpush1.xpose.msra.mxu0 0.0
    %777 = vmatprep.subr.mxu0 0.0
    %778 = vmatpush1.xpose.msra.mxu0 0.0
    %779 = vmatprep.subr.mxu0 0.0
    %780 = vmatpush1.xpose.msra.mxu0 0.0
    %781 = vmatprep.subr.mxu0 0.0
    %782 = vmatpush1.xpose.msra.mxu0 0.0
    %783 = vmatprep.mubr.f32.mxu0 0.0
    %784 = vmatmul.mubr.f32.gmra.mrb[0].mxu0 %v233
    %v785 = vpop.f32.mrb[0].mxu0
    %v786 = vadd.f32 0.0, %v785
    %v787 = vpop.f32.mrb[0].mxu0
    %788 = vmatprep.mubr.f32.mxu0 0.0
    %789 = vmatmul.mubr.f32.gmra.mrb[0].mxu0 %v236
    %v790 = vpop.f32.mrb[0].mxu0
    %v791 = vadd.f32 0.0, %v790
    %v792 = vpop.f32.mrb[0].mxu0
    %793 = vmatprep.mubr.f32.mxu0 0.0
    %794 = vmatmul.mubr.f32.gmra.mrb[0].mxu0 %v239
    %v795 = vpop.f32.mrb[0].mxu0
    %v796 = vadd.f32 0.0, %v795
    %v797 = vpop.f32.mrb[0].mxu0
    %798 = vmatprep.mubr.f32.mxu0 0.0
    %799 = vmatmul.mubr.f32.gmra.mrb[0].mxu0 %v242
    %v800 = vpop.f32.mrb[0].mxu0
    %v801 = vadd.f32 0.0, %v800
    %v802 = vpop.f32.mrb[0].mxu0
    %803 = vdwg.mxu0
    %804 = vmatprep.subr.mxu0 0.0
    %805 = vmatpush1.msra.mxu0 %v593
    %806 = vmatprep.subr.mxu0 0.0
    %807 = vmatpush1.msra.mxu0 %v598
    %808 = vmatprep.subr.mxu0 0.0
    %809 = vmatpush1.msra.mxu0 %v603
    %810 = vmatprep.subr.mxu0 0.0
    %811 = vmatpush1.msra.mxu0 %v608
    %812 = vmatprep.subr.mxu0 0.0
    %813 = vmatpush1.msra.mxu0 0.0
    %814 = vmatprep.subr.mxu0 0.0
    %815 = vmatpush1.msra.mxu0 0.0
    %816 = vmatprep.subr.mxu0 0.0
    %817 = vmatpush1.msra.mxu0 0.0
    %818 = vmatprep.subr.mxu0 0.0
    %819 = vmatpush1.msra.mxu0 0.0
    %820 = vmatprep.subr.mxu0 0.0
    %821 = vmatpush1.msra.mxu0 0.0
    %822 = vmatprep.subr.mxu0 0.0
    %823 = vmatpush1.msra.mxu0 0.0
    %824 = vmatprep.subr.mxu0 0.0
    %825 = vmatpush1.msra.mxu0 0.0
    %826 = vmatprep.subr.mxu0 0.0
    %827 = vmatpush1.msra.mxu0 0.0
    %828 = vmatprep.subr.mxu0 0.0
    %829 = vmatpush1.msra.mxu0 0.0
    %830 = vmatprep.subr.mxu0 0.0
    %831 = vmatpush1.msra.mxu0 0.0
    %832 = vmatprep.subr.mxu0 0.0
    %833 = vmatpush1.msra.mxu0 0.0
    %834 = vmatprep.subr.mxu0 0.0
    %835 = vmatpush1.msra.mxu0 0.0
    %836 = vmatprep.subr.mxu0 0.0
    %837 = vmatpush1.msra.mxu0 0.0
    %838 = vmatprep.subr.mxu0 0.0
    %839 = vmatpush1.msra.mxu0 0.0
    %840 = vmatprep.subr.mxu0 0.0
    %841 = vmatpush1.msra.mxu0 0.0
    %842 = vmatprep.subr.mxu0 0.0
    %843 = vmatpush1.msra.mxu0 0.0
    %844 = vmatprep.subr.mxu0 0.0
    %845 = vmatpush1.msra.mxu0 0.0
    %846 = vmatprep.subr.mxu0 0.0
    %847 = vmatpush1.msra.mxu0 0.0
    %848 = vmatprep.subr.mxu0 0.0
    %849 = vmatpush1.msra.mxu0 0.0
    %850 = vmatprep.subr.mxu0 0.0
    %851 = vmatpush1.msra.mxu0 0.0
    %852 = vmatprep.subr.mxu0 0.0
    %853 = vmatpush1.msra.mxu0 0.0
    %854 = vmatprep.subr.mxu0 0.0
    %855 = vmatpush1.msra.mxu0 0.0
    %856 = vmatprep.subr.mxu0 0.0
    %857 = vmatpush1.msra.mxu0 0.0
    %858 = vmatprep.subr.mxu0 0.0
    %859 = vmatpush1.msra.mxu0 0.0
    %860 = vmatprep.subr.mxu0 0.0
    %861 = vmatpush1.msra.mxu0 0.0
    %862 = vmatprep.subr.mxu0 0.0
    %863 = vmatpush1.msra.mxu0 0.0
    %864 = vmatprep.subr.mxu0 0.0
    %865 = vmatpush1.msra.mxu0 0.0
    %866 = vmatprep.subr.mxu0 0.0
    %867 = vmatpush1.msra.mxu0 0.0
    %868 = vmatprep.mubr.f32.mxu0 0.0
    %869 = vmatmul.mubr.f32.gmra.mrb[0].mxu0 %v644
    %v870 = vpop.f32.mrb[0].mxu0
    %v871 = vadd.f32 2e-08, %v870
    %v872 = vpop.f32.mrb[0].mxu0
    %873 = vdwg.mxu0
    %v874 = vrcp.pop %v871
    %v875 = vmul.f32 %v713, %v874
    %v876 = vmul.f32 %v404, %v875
    %v878 = vsel %vm158, %v593, 0
    %v881 = vsel %vm158, %v598, 0
    %v884 = vsel %vm158, %v603, 0
    %v887 = vsel %vm158, %v608, 0
    %889 = vmatprep.subr.mxu0 0.0
    %890 = vmatpush1.xpose.msra.mxu0 %v717
    %891 = vmatprep.subr.mxu0 0.0
    %892 = vmatpush1.xpose.msra.mxu0 0.0
    %893 = vmatprep.subr.mxu0 0.0
    %894 = vmatpush1.xpose.msra.mxu0 0.0
    %895 = vmatprep.subr.mxu0 0.0
    %896 = vmatpush1.xpose.msra.mxu0 0.0
    %897 = vmatprep.subr.mxu0 0.0
    %898 = vmatpush1.xpose.msra.mxu0 0.0
    %899 = vmatprep.subr.mxu0 0.0
    %900 = vmatpush1.xpose.msra.mxu0 0.0
    %901 = vmatprep.subr.mxu0 0.0
    %902 = vmatpush1.xpose.msra.mxu0 0.0
    %903 = vmatprep.subr.mxu0 0.0
    %904 = vmatpush1.xpose.msra.mxu0 0.0
    %905 = vmatprep.subr.mxu0 0.0
    %906 = vmatpush1.xpose.msra.mxu0 0.0
    %907 = vmatprep.subr.mxu0 0.0
    %908 = vmatpush1.xpose.msra.mxu0 0.0
    %909 = vmatprep.subr.mxu0 0.0
    %910 = vmatpush1.xpose.msra.mxu0 0.0
    %911 = vmatprep.subr.mxu0 0.0
    %912 = vmatpush1.xpose.msra.mxu0 0.0
    %913 = vmatprep.subr.mxu0 0.0
    %914 = vmatpush1.xpose.msra.mxu0 0.0
    %915 = vmatprep.subr.mxu0 0.0
    %916 = vmatpush1.xpose.msra.mxu0 0.0
    %917 = vmatprep.subr.mxu0 0.0
    %918 = vmatpush1.xpose.msra.mxu0 0.0
    %919 = vmatprep.subr.mxu0 0.0
    %920 = vmatpush1.xpose.msra.mxu0 0.0
    %921 = vmatprep.subr.mxu0 0.0
    %922 = vmatpush1.xpose.msra.mxu0 0.0
    %923 = vmatprep.subr.mxu0 0.0
    %924 = vmatpush1.xpose.msra.mxu0 0.0
    %925 = vmatprep.subr.mxu0 0.0
    %926 = vmatpush1.xpose.msra.mxu0 0.0
    %927 = vmatprep.subr.mxu0 0.0
    %928 = vmatpush1.xpose.msra.mxu0 0.0
    %929 = vmatprep.subr.mxu0 0.0
    %930 = vmatpush1.xpose.msra.mxu0 0.0
    %931 = vmatprep.subr.mxu0 0.0
    %932 = vmatpush1.xpose.msra.mxu0 0.0
    %933 = vmatprep.subr.mxu0 0.0
    %934 = vmatpush1.xpose.msra.mxu0 0.0
    %935 = vmatprep.subr.mxu0 0.0
    %936 = vmatpush1.xpose.msra.mxu0 0.0
    %937 = vmatprep.subr.mxu0 0.0
    %938 = vmatpush1.xpose.msra.mxu0 0.0
    %939 = vmatprep.subr.mxu0 0.0
    %940 = vmatpush1.xpose.msra.mxu0 0.0
    %941 = vmatprep.subr.mxu0 0.0
    %942 = vmatpush1.xpose.msra.mxu0 0.0
    %943 = vmatprep.subr.mxu0 0.0
    %944 = vmatpush1.xpose.msra.mxu0 0.0
    %945 = vmatprep.subr.mxu0 0.0
    %946 = vmatpush1.xpose.msra.mxu0 0.0
    %947 = vmatprep.subr.mxu0 0.0
    %948 = vmatpush1.xpose.msra.mxu0 0.0
    %949 = vmatprep.subr.mxu0 0.0
    %950 = vmatpush1.xpose.msra.mxu0 0.0
    %951 = vmatprep.subr.mxu0 0.0
    %952 = vmatpush1.xpose.msra.mxu0 0.0
    %953 = vmatprep.mubr.f32.mxu0 0.0
    %954 = vmatmul.mubr.f32.gmra.mrb[0].mxu0 %v878
    %v955 = vpop.f32.mrb[0].mxu0
    %v956 = vadd.f32 2e-08, %v955
    %v957 = vpop.f32.mrb[0].mxu0
    %958 = vmatprep.mubr.f32.mxu0 0.0
    %959 = vmatmul.mubr.f32.gmra.mrb[0].mxu0 %v881
    %v960 = vpop.f32.mrb[0].mxu0
    %v961 = vadd.f32 2e-08, %v960
    %v962 = vpop.f32.mrb[0].mxu0
    %963 = vmatprep.mubr.f32.mxu0 0.0
    %964 = vmatmul.mubr.f32.gmra.mrb[0].mxu0 %v884
    %v965 = vpop.f32.mrb[0].mxu0
    %v966 = vadd.f32 2e-08, %v965
    %v967 = vpop.f32.mrb[0].mxu0
    %968 = vmatprep.mubr.f32.mxu0 0.0
    %969 = vmatmul.mubr.f32.gmra.mrb[0].mxu0 %v887
    %v970 = vpop.f32.mrb[0].mxu0
    %v971 = vadd.f32 2e-08, %v970
    %v972 = vpop.f32.mrb[0].mxu0
    %973 = vdwg.mxu0
    %v974 = vrcp.pop %v956
    %v975 = vmul.f32 %v786, %v974
    %v976 = vrcp.pop %v961
    %v977 = vmul.f32 %v791, %v976
    %v978 = vrcp.pop %v966
    %v979 = vmul.f32 %v796, %v978
    %v980 = vrcp.pop %v971
    %v981 = vmul.f32 %v801, %v980
    %v982 = vmul.f32 %v510, %v975
    %v983 = vmul.f32 %v511, %v977
    %v984 = vmul.f32 %v512, %v979
    %v985 = vmul.f32 %v513, %v981
    %v987 = vsel %vm28, %v982, 0
    %v990 = vsel %vm28, %v983, 0
    %v993 = vsel %vm28, %v984, 0
    %v996 = vsel %vm28, %v985, 0
    %998 = vmatprep.subr.mxu0 0.0
    %999 = vmatpush1.msra.mxu0 %v876
    %1000 = vmatprep.subr.mxu0 0.0
    %1001 = vmatpush1.msra.mxu0 0.0
    %1002 = vmatprep.subr.mxu0 0.0
    %1003 = vmatpush1.msra.mxu0 0.0
    %1004 = vmatprep.subr.mxu0 0.0
    %1005 = vmatpush1.msra.mxu0 0.0
    %1006 = vmatprep.subr.mxu0 0.0
    %1007 = vmatpush1.msra.mxu0 0.0
    %1008 = vmatprep.subr.mxu0 0.0
    %1009 = vmatpush1.msra.mxu0 0.0
    %1010 = vmatprep.subr.mxu0 0.0
    %1011 = vmatpush1.msra.mxu0 0.0
    %1012 = vmatprep.subr.mxu0 0.0
    %1013 = vmatpush1.msra.mxu0 0.0
    %1014 = vmatprep.subr.mxu0 0.0
    %1015 = vmatpush1.msra.mxu0 0.0
    %1016 = vmatprep.subr.mxu0 0.0
    %1017 = vmatpush1.msra.mxu0 0.0
    %1018 = vmatprep.subr.mxu0 0.0
    %1019 = vmatpush1.msra.mxu0 0.0
    %1020 = vmatprep.subr.mxu0 0.0
    %1021 = vmatpush1.msra.mxu0 0.0
    %1022 = vmatprep.subr.mxu0 0.0
    %1023 = vmatpush1.msra.mxu0 0.0
    %1024 = vmatprep.subr.mxu0 0.0
    %1025 = vmatpush1.msra.mxu0 0.0
    %1026 = vmatprep.subr.mxu0 0.0
    %1027 = vmatpush1.msra.mxu0 0.0
    %1028 = vmatprep.subr.mxu0 0.0
    %1029 = vmatpush1.msra.mxu0 0.0
    %1030 = vmatprep.subr.mxu0 0.0
    %1031 = vmatpush1.msra.mxu0 0.0
    %1032 = vmatprep.subr.mxu0 0.0
    %1033 = vmatpush1.msra.mxu0 0.0
    %1034 = vmatprep.subr.mxu0 0.0
    %1035 = vmatpush1.msra.mxu0 0.0
    %1036 = vmatprep.subr.mxu0 0.0
    %1037 = vmatpush1.msra.mxu0 0.0
    %1038 = vmatprep.subr.mxu0 0.0
    %1039 = vmatpush1.msra.mxu0 0.0
    %1040 = vmatprep.subr.mxu0 0.0
    %1041 = vmatpush1.msra.mxu0 0.0
    %1042 = vmatprep.subr.mxu0 0.0
    %1043 = vmatpush1.msra.mxu0 0.0
    %1044 = vmatprep.subr.mxu0 0.0
    %1045 = vmatpush1.msra.mxu0 0.0
    %1046 = vmatprep.subr.mxu0 0.0
    %1047 = vmatpush1.msra.mxu0 0.0
    %1048 = vmatprep.subr.mxu0 0.0
    %1049 = vmatpush1.msra.mxu0 0.0
    %1050 = vmatprep.subr.mxu0 0.0
    %1051 = vmatpush1.msra.mxu0 0.0
    %1052 = vmatprep.subr.mxu0 0.0
    %1053 = vmatpush1.msra.mxu0 0.0
    %1054 = vmatprep.subr.mxu0 0.0
    %1055 = vmatpush1.msra.mxu0 0.0
    %1056 = vmatprep.subr.mxu0 0.0
    %1057 = vmatpush1.msra.mxu0 0.0
    %1058 = vmatprep.subr.mxu0 0.0
    %1059 = vmatpush1.msra.mxu0 0.0
    %1060 = vmatprep.subr.mxu0 0.0
    %1061 = vmatpush1.msra.mxu0 0.0
    %1062 = vmatprep.mubr.f32.mxu0 0.0
    %1063 = vmatmul.mubr.f32.gmra.mrb[0].mxu0 %v987
    %v1064 = vpop.f32.mrb[0].mxu0
    %v1065 = vadd.f32 0.0, %v1064
    %v1066 = vpop.f32.mrb[0].mxu0
    %1067 = vmatprep.mubr.f32.mxu0 0.0
    %1068 = vmatmul.mubr.f32.gmra.mrb[0].mxu0 %v990
    %v1069 = vpop.f32.mrb[0].mxu0
    %v1070 = vadd.f32 0.0, %v1069
    %v1071 = vpop.f32.mrb[0].mxu0
    %1072 = vmatprep.mubr.f32.mxu0 0.0
    %1073 = vmatmul.mubr.f32.gmra.mrb[0].mxu0 %v993
    %v1074 = vpop.f32.mrb[0].mxu0
    %v1075 = vadd.f32 0.0, %v1074
    %v1076 = vpop.f32.mrb[0].mxu0
    %1077 = vmatprep.mubr.f32.mxu0 0.0
    %1078 = vmatmul.mubr.f32.gmra.mrb[0].mxu0 %v996
    %v1079 = vpop.f32.mrb[0].mxu0
    %v1080 = vadd.f32 0.0, %v1079
    %v1081 = vpop.f32.mrb[0].mxu0
    %1082 = vdwg.mxu0
    %1083 = vxpose.xlu0.b32.start [1/16] %v982, 128
    %1084 = vxpose.xlu0.b32.cont [2/16] %v983, 128
    %1085 = vxpose.xlu0.b32.cont [3/16] %v984, 128
    %1086 = vxpose.xlu0.b32.cont [4/16] %v985, 128
    %1087 = vxpose.xlu0.b32.cont [5/16] 0.0, 128
    %1088 = vxpose.xlu0.b32.cont [6/16] 0.0, 128
    %1089 = vxpose.xlu0.b32.cont [7/16] 0.0, 128
    %1090 = vxpose.xlu0.b32.cont [8/16] 0.0, 128
    %1091 = vxpose.xlu0.b32.cont [9/16] 0.0, 128
    %1092 = vxpose.xlu0.b32.cont [10/16] 0.0, 128
    %1093 = vxpose.xlu0.b32.cont [11/16] 0.0, 128
    %1094 = vxpose.xlu0.b32.cont [12/16] 0.0, 128
    %1095 = vxpose.xlu0.b32.cont [13/16] 0.0, 128
    %1096 = vxpose.xlu0.b32.cont [14/16] 0.0, 128
    %1097 = vxpose.xlu0.b32.cont [15/16] 0.0, 128
    %1098 = vxpose.xlu0.b32.end [16/16] 0.0, 128
    %v1099 = vpop.trf.xlu0
    %v1100 = vpop.trf.xlu0
    %v1101 = vpop.trf.xlu0
    %v1102 = vpop.trf.xlu0
    %v1103 = vpop.trf.xlu0
    %v1104 = vpop.trf.xlu0
    %v1105 = vpop.trf.xlu0
    %v1106 = vpop.trf.xlu0
    %v1107 = vpop.trf.xlu0
    %v1108 = vpop.trf.xlu0
    %v1109 = vpop.trf.xlu0
    %v1110 = vpop.trf.xlu0
    %v1111 = vpop.trf.xlu0
    %v1112 = vpop.trf.xlu0
    %v1113 = vpop.trf.xlu0
    %v1114 = vpop.trf.xlu0
    %v1116 = vsel %vm158, %v1099, 0
    %1118 = vmatprep.subr.mxu0 0.0
    %1119 = vmatpush1.msra.mxu0 %v19
    %1120 = vmatprep.subr.mxu0 0.0
    %1121 = vmatpush1.msra.mxu0 %v20
    %1122 = vmatprep.subr.mxu0 0.0
    %1123 = vmatpush1.msra.mxu0 %v21
    %1124 = vmatprep.subr.mxu0 0.0
    %1125 = vmatpush1.msra.mxu0 %v22
    %1126 = vmatprep.subr.mxu0 0.0
    %1127 = vmatpush1.msra.mxu0 0.0
    %1128 = vmatprep.subr.mxu0 0.0
    %1129 = vmatpush1.msra.mxu0 0.0
    %1130 = vmatprep.subr.mxu0 0.0
    %1131 = vmatpush1.msra.mxu0 0.0
    %1132 = vmatprep.subr.mxu0 0.0
    %1133 = vmatpush1.msra.mxu0 0.0
    %1134 = vmatprep.subr.mxu0 0.0
    %1135 = vmatpush1.msra.mxu0 0.0
    %1136 = vmatprep.subr.mxu0 0.0
    %1137 = vmatpush1.msra.mxu0 0.0
    %1138 = vmatprep.subr.mxu0 0.0
    %1139 = vmatpush1.msra.mxu0 0.0
    %1140 = vmatprep.subr.mxu0 0.0
    %1141 = vmatpush1.msra.mxu0 0.0
    %1142 = vmatprep.subr.mxu0 0.0
    %1143 = vmatpush1.msra.mxu0 0.0
    %1144 = vmatprep.subr.mxu0 0.0
    %1145 = vmatpush1.msra.mxu0 0.0
    %1146 = vmatprep.subr.mxu0 0.0
    %1147 = vmatpush1.msra.mxu0 0.0
    %1148 = vmatprep.subr.mxu0 0.0
    %1149 = vmatpush1.msra.mxu0 0.0
    %1150 = vmatprep.subr.mxu0 0.0
    %1151 = vmatpush1.msra.mxu0 0.0
    %1152 = vmatprep.subr.mxu0 0.0
    %1153 = vmatpush1.msra.mxu0 0.0
    %1154 = vmatprep.subr.mxu0 0.0
    %1155 = vmatpush1.msra.mxu0 0.0
    %1156 = vmatprep.subr.mxu0 0.0
    %1157 = vmatpush1.msra.mxu0 0.0
    %1158 = vmatprep.subr.mxu0 0.0
    %1159 = vmatpush1.msra.mxu0 0.0
    %1160 = vmatprep.subr.mxu0 0.0
    %1161 = vmatpush1.msra.mxu0 0.0
    %1162 = vmatprep.subr.mxu0 0.0
    %1163 = vmatpush1.msra.mxu0 0.0
    %1164 = vmatprep.subr.mxu0 0.0
    %1165 = vmatpush1.msra.mxu0 0.0
    %1166 = vmatprep.subr.mxu0 0.0
    %1167 = vmatpush1.msra.mxu0 0.0
    %1168 = vmatprep.subr.mxu0 0.0
    %1169 = vmatpush1.msra.mxu0 0.0
    %1170 = vmatprep.subr.mxu0 0.0
    %1171 = vmatpush1.msra.mxu0 0.0
    %1172 = vmatprep.subr.mxu0 0.0
    %1173 = vmatpush1.msra.mxu0 0.0
    %1174 = vmatprep.subr.mxu0 0.0
    %1175 = vmatpush1.msra.mxu0 0.0
    %1176 = vmatprep.subr.mxu0 0.0
    %1177 = vmatpush1.msra.mxu0 0.0
    %1178 = vmatprep.subr.mxu0 0.0
    %1179 = vmatpush1.msra.mxu0 0.0
    %1180 = vmatprep.subr.mxu0 0.0
    %1181 = vmatpush1.msra.mxu0 0.0
    %1182 = vmatprep.mubr.f32.mxu0 0.0
    %1183 = vmatmul.mubr.f32.gmra.mrb[0].mxu0 %v1116
    %v1184 = vpop.f32.mrb[0].mxu0
    %v1185 = vadd.f32 0.0, %v1184
    %v1186 = vpop.f32.mrb[0].mxu0
    %1187 = vdwg.mxu0
    %v1189 = vsel %vm158, %v876, 0
    %1191 = vmatprep.subr.mxu0 0.0
    %1192 = vmatpush1.xpose.msra.mxu0 %v1189
    %1193 = vmatprep.subr.mxu0 0.0
    %1194 = vmatpush1.xpose.msra.mxu0 0.0
    %1195 = vmatprep.subr.mxu0 0.0
    %1196 = vmatpush1.xpose.msra.mxu0 0.0
    %1197 = vmatprep.subr.mxu0 0.0
    %1198 = vmatpush1.xpose.msra.mxu0 0.0
    %1199 = vmatprep.subr.mxu0 0.0
    %1200 = vmatpush1.xpose.msra.mxu0 0.0
    %1201 = vmatprep.subr.mxu0 0.0
    %1202 = vmatpush1.xpose.msra.mxu0 0.0
    %1203 = vmatprep.subr.mxu0 0.0
    %1204 = vmatpush1.xpose.msra.mxu0 0.0
    %1205 = vmatprep.subr.mxu0 0.0
    %1206 = vmatpush1.xpose.msra.mxu0 0.0
    %1207 = vmatprep.subr.mxu0 0.0
    %1208 = vmatpush1.xpose.msra.mxu0 0.0
    %1209 = vmatprep.subr.mxu0 0.0
    %1210 = vmatpush1.xpose.msra.mxu0 0.0
    %1211 = vmatprep.subr.mxu0 0.0
    %1212 = vmatpush1.xpose.msra.mxu0 0.0
    %1213 = vmatprep.subr.mxu0 0.0
    %1214 = vmatpush1.xpose.msra.mxu0 0.0
    %1215 = vmatprep.subr.mxu0 0.0
    %1216 = vmatpush1.xpose.msra.mxu0 0.0
    %1217 = vmatprep.subr.mxu0 0.0
    %1218 = vmatpush1.xpose.msra.mxu0 0.0
    %1219 = vmatprep.subr.mxu0 0.0
    %1220 = vmatpush1.xpose.msra.mxu0 0.0
    %1221 = vmatprep.subr.mxu0 0.0
    %1222 = vmatpush1.xpose.msra.mxu0 0.0
    %1223 = vmatprep.subr.mxu0 0.0
    %1224 = vmatpush1.xpose.msra.mxu0 0.0
    %1225 = vmatprep.subr.mxu0 0.0
    %1226 = vmatpush1.xpose.msra.mxu0 0.0
    %1227 = vmatprep.subr.mxu0 0.0
    %1228 = vmatpush1.xpose.msra.mxu0 0.0
    %1229 = vmatprep.subr.mxu0 0.0
    %1230 = vmatpush1.xpose.msra.mxu0 0.0
    %1231 = vmatprep.subr.mxu0 0.0
    %1232 = vmatpush1.xpose.msra.mxu0 0.0
    %1233 = vmatprep.subr.mxu0 0.0
    %1234 = vmatpush1.xpose.msra.mxu0 0.0
    %1235 = vmatprep.subr.mxu0 0.0
    %1236 = vmatpush1.xpose.msra.mxu0 0.0
    %1237 = vmatprep.subr.mxu0 0.0
    %1238 = vmatpush1.xpose.msra.mxu0 0.0
    %1239 = vmatprep.subr.mxu0 0.0
    %1240 = vmatpush1.xpose.msra.mxu0 0.0
    %1241 = vmatprep.subr.mxu0 0.0
    %1242 = vmatpush1.xpose.msra.mxu0 0.0
    %1243 = vmatprep.subr.mxu0 0.0
    %1244 = vmatpush1.xpose.msra.mxu0 0.0
    %1245 = vmatprep.subr.mxu0 0.0
    %1246 = vmatpush1.xpose.msra.mxu0 0.0
    %1247 = vmatprep.subr.mxu0 0.0
    %1248 = vmatpush1.xpose.msra.mxu0 0.0
    %1249 = vmatprep.subr.mxu0 0.0
    %1250 = vmatpush1.xpose.msra.mxu0 0.0
    %1251 = vmatprep.subr.mxu0 0.0
    %1252 = vmatpush1.xpose.msra.mxu0 0.0
    %1253 = vmatprep.subr.mxu0 0.0
    %1254 = vmatpush1.xpose.msra.mxu0 0.0
    %1255 = vmatprep.mubr.f32.mxu0 0.0
    %1256 = vmatmul.mubr.f32.gmra.mrb[0].mxu0 %v233
    %v1257 = vpop.f32.mrb[0].mxu0
    %v1258 = vadd.f32 0.0, %v1257
    %v1259 = vpop.f32.mrb[0].mxu0
    %1260 = vmatprep.mubr.f32.mxu0 0.0
    %1261 = vmatmul.mubr.f32.gmra.mrb[0].mxu0 %v236
    %v1262 = vpop.f32.mrb[0].mxu0
    %v1263 = vadd.f32 0.0, %v1262
    %v1264 = vpop.f32.mrb[0].mxu0
    %1265 = vmatprep.mubr.f32.mxu0 0.0
    %1266 = vmatmul.mubr.f32.gmra.mrb[0].mxu0 %v239
    %v1267 = vpop.f32.mrb[0].mxu0
    %v1268 = vadd.f32 0.0, %v1267
    %v1269 = vpop.f32.mrb[0].mxu0
    %1270 = vmatprep.mubr.f32.mxu0 0.0
    %1271 = vmatmul.mubr.f32.gmra.mrb[0].mxu0 %v242
    %v1272 = vpop.f32.mrb[0].mxu0
    %v1273 = vadd.f32 0.0, %v1272
    %v1274 = vpop.f32.mrb[0].mxu0
    %1275 = vdwg.mxu0
    %1276 = vmatprep.subr.mxu0 0.0
    %1277 = vmatpush1.msra.mxu0 %v1065
    %1278 = vmatprep.subr.mxu0 0.0
    %1279 = vmatpush1.msra.mxu0 %v1070
    %1280 = vmatprep.subr.mxu0 0.0
    %1281 = vmatpush1.msra.mxu0 %v1075
    %1282 = vmatprep.subr.mxu0 0.0
    %1283 = vmatpush1.msra.mxu0 %v1080
    %1284 = vmatprep.subr.mxu0 0.0
    %1285 = vmatpush1.msra.mxu0 0.0
    %1286 = vmatprep.subr.mxu0 0.0
    %1287 = vmatpush1.msra.mxu0 0.0
    %1288 = vmatprep.subr.mxu0 0.0
    %1289 = vmatpush1.msra.mxu0 0.0
    %1290 = vmatprep.subr.mxu0 0.0
    %1291 = vmatpush1.msra.mxu0 0.0
    %1292 = vmatprep.subr.mxu0 0.0
    %1293 = vmatpush1.msra.mxu0 0.0
    %1294 = vmatprep.subr.mxu0 0.0
    %1295 = vmatpush1.msra.mxu0 0.0
    %1296 = vmatprep.subr.mxu0 0.0
    %1297 = vmatpush1.msra.mxu0 0.0
    %1298 = vmatprep.subr.mxu0 0.0
    %1299 = vmatpush1.msra.mxu0 0.0
    %1300 = vmatprep.subr.mxu0 0.0
    %1301 = vmatpush1.msra.mxu0 0.0
    %1302 = vmatprep.subr.mxu0 0.0
    %1303 = vmatpush1.msra.mxu0 0.0
    %1304 = vmatprep.subr.mxu0 0.0
    %1305 = vmatpush1.msra.mxu0 0.0
    %1306 = vmatprep.subr.mxu0 0.0
    %1307 = vmatpush1.msra.mxu0 0.0
    %1308 = vmatprep.subr.mxu0 0.0
    %1309 = vmatpush1.msra.mxu0 0.0
    %1310 = vmatprep.subr.mxu0 0.0
    %1311 = vmatpush1.msra.mxu0 0.0
    %1312 = vmatprep.subr.mxu0 0.0
    %1313 = vmatpush1.msra.mxu0 0.0
    %1314 = vmatprep.subr.mxu0 0.0
    %1315 = vmatpush1.msra.mxu0 0.0
    %1316 = vmatprep.subr.mxu0 0.0
    %1317 = vmatpush1.msra.mxu0 0.0
    %1318 = vmatprep.subr.mxu0 0.0
    %1319 = vmatpush1.msra.mxu0 0.0
    %1320 = vmatprep.subr.mxu0 0.0
    %1321 = vmatpush1.msra.mxu0 0.0
    %1322 = vmatprep.subr.mxu0 0.0
    %1323 = vmatpush1.msra.mxu0 0.0
    %1324 = vmatprep.subr.mxu0 0.0
    %1325 = vmatpush1.msra.mxu0 0.0
    %1326 = vmatprep.subr.mxu0 0.0
    %1327 = vmatpush1.msra.mxu0 0.0
    %1328 = vmatprep.subr.mxu0 0.0
    %1329 = vmatpush1.msra.mxu0 0.0
    %1330 = vmatprep.subr.mxu0 0.0
    %1331 = vmatpush1.msra.mxu0 0.0
    %1332 = vmatprep.subr.mxu0 0.0
    %1333 = vmatpush1.msra.mxu0 0.0
    %1334 = vmatprep.subr.mxu0 0.0
    %1335 = vmatpush1.msra.mxu0 0.0
    %1336 = vmatprep.subr.mxu0 0.0
    %1337 = vmatpush1.msra.mxu0 0.0
    %1338 = vmatprep.subr.mxu0 0.0
    %1339 = vmatpush1.msra.mxu0 0.0
    %1340 = vmatprep.mubr.f32.mxu0 0.0
    %1341 = vmatmul.mubr.f32.gmra.mrb[0].mxu0 %v1116
    %v1342 = vpop.f32.mrb[0].mxu0
    %v1343 = vadd.f32 2e-08, %v1342
    %v1344 = vpop.f32.mrb[0].mxu0
    %1345 = vdwg.mxu0
    %v1346 = vrcp.pop %v1343
    %v1347 = vmul.f32 %v1185, %v1346
    %v1348 = vmul.f32 %v876, %v1347
    %v1350 = vsel %vm158, %v1065, 0
    %v1353 = vsel %vm158, %v1070, 0
    %v1356 = vsel %vm158, %v1075, 0
    %v1359 = vsel %vm158, %v1080, 0
    %1361 = vmatprep.subr.mxu0 0.0
    %1362 = vmatpush1.xpose.msra.mxu0 %v1189
    %1363 = vmatprep.subr.mxu0 0.0
    %1364 = vmatpush1.xpose.msra.mxu0 0.0
    %1365 = vmatprep.subr.mxu0 0.0
    %1366 = vmatpush1.xpose.msra.mxu0 0.0
    %1367 = vmatprep.subr.mxu0 0.0
    %1368 = vmatpush1.xpose.msra.mxu0 0.0
    %1369 = vmatprep.subr.mxu0 0.0
    %1370 = vmatpush1.xpose.msra.mxu0 0.0
    %1371 = vmatprep.subr.mxu0 0.0
    %1372 = vmatpush1.xpose.msra.mxu0 0.0
    %1373 = vmatprep.subr.mxu0 0.0
    %1374 = vmatpush1.xpose.msra.mxu0 0.0
    %1375 = vmatprep.subr.mxu0 0.0
    %1376 = vmatpush1.xpose.msra.mxu0 0.0
    %1377 = vmatprep.subr.mxu0 0.0
    %1378 = vmatpush1.xpose.msra.mxu0 0.0
    %1379 = vmatprep.subr.mxu0 0.0
    %1380 = vmatpush1.xpose.msra.mxu0 0.0
    %1381 = vmatprep.subr.mxu0 0.0
    %1382 = vmatpush1.xpose.msra.mxu0 0.0
    %1383 = vmatprep.subr.mxu0 0.0
    %1384 = vmatpush1.xpose.msra.mxu0 0.0
    %1385 = vmatprep.subr.mxu0 0.0
    %1386 = vmatpush1.xpose.msra.mxu0 0.0
    %1387 = vmatprep.subr.mxu0 0.0
    %1388 = vmatpush1.xpose.msra.mxu0 0.0
    %1389 = vmatprep.subr.mxu0 0.0
    %1390 = vmatpush1.xpose.msra.mxu0 0.0
    %1391 = vmatprep.subr.mxu0 0.0
    %1392 = vmatpush1.xpose.msra.mxu0 0.0
    %1393 = vmatprep.subr.mxu0 0.0
    %1394 = vmatpush1.xpose.msra.mxu0 0.0
    %1395 = vmatprep.subr.mxu0 0.0
    %1396 = vmatpush1.xpose.msra.mxu0 0.0
    %1397 = vmatprep.subr.mxu0 0.0
    %1398 = vmatpush1.xpose.msra.mxu0 0.0
    %1399 = vmatprep.subr.mxu0 0.0
    %1400 = vmatpush1.xpose.msra.mxu0 0.0
    %1401 = vmatprep.subr.mxu0 0.0
    %1402 = vmatpush1.xpose.msra.mxu0 0.0
    %1403 = vmatprep.subr.mxu0 0.0
    %1404 = vmatpush1.xpose.msra.mxu0 0.0
    %1405 = vmatprep.subr.mxu0 0.0
    %1406 = vmatpush1.xpose.msra.mxu0 0.0
    %1407 = vmatprep.subr.mxu0 0.0
    %1408 = vmatpush1.xpose.msra.mxu0 0.0
    %1409 = vmatprep.subr.mxu0 0.0
    %1410 = vmatpush1.xpose.msra.mxu0 0.0
    %1411 = vmatprep.subr.mxu0 0.0
    %1412 = vmatpush1.xpose.msra.mxu0 0.0
    %1413 = vmatprep.subr.mxu0 0.0
    %1414 = vmatpush1.xpose.msra.mxu0 0.0
    %1415 = vmatprep.subr.mxu0 0.0
    %1416 = vmatpush1.xpose.msra.mxu0 0.0
    %1417 = vmatprep.subr.mxu0 0.0
    %1418 = vmatpush1.xpose.msra.mxu0 0.0
    %1419 = vmatprep.subr.mxu0 0.0
    %1420 = vmatpush1.xpose.msra.mxu0 0.0
    %1421 = vmatprep.subr.mxu0 0.0
    %1422 = vmatpush1.xpose.msra.mxu0 0.0
    %1423 = vmatprep.subr.mxu0 0.0
    %1424 = vmatpush1.xpose.msra.mxu0 0.0
    %1425 = vmatprep.mubr.f32.mxu0 0.0
    %1426 = vmatmul.mubr.f32.gmra.mrb[0].mxu0 %v1350
    %v1427 = vpop.f32.mrb[0].mxu0
    %v1428 = vadd.f32 2e-08, %v1427
    %v1429 = vpop.f32.mrb[0].mxu0
    %1430 = vmatprep.mubr.f32.mxu0 0.0
    %1431 = vmatmul.mubr.f32.gmra.mrb[0].mxu0 %v1353
    %v1432 = vpop.f32.mrb[0].mxu0
    %v1433 = vadd.f32 2e-08, %v1432
    %v1434 = vpop.f32.mrb[0].mxu0
    %1435 = vmatprep.mubr.f32.mxu0 0.0
    %1436 = vmatmul.mubr.f32.gmra.mrb[0].mxu0 %v1356
    %v1437 = vpop.f32.mrb[0].mxu0
    %v1438 = vadd.f32 2e-08, %v1437
    %v1439 = vpop.f32.mrb[0].mxu0
    %1440 = vmatprep.mubr.f32.mxu0 0.0
    %1441 = vmatmul.mubr.f32.gmra.mrb[0].mxu0 %v1359
    %v1442 = vpop.f32.mrb[0].mxu0
    %v1443 = vadd.f32 2e-08, %v1442
    %v1444 = vpop.f32.mrb[0].mxu0
    %1445 = vdwg.mxu0
    %v1446 = vrcp.pop %v1428
    %v1447 = vmul.f32 %v1258, %v1446
    %v1448 = vrcp.pop %v1433
    %v1449 = vmul.f32 %v1263, %v1448
    %v1450 = vrcp.pop %v1438
    %v1451 = vmul.f32 %v1268, %v1450
    %v1452 = vrcp.pop %v1443
    %v1453 = vmul.f32 %v1273, %v1452
    %v1454 = vmul.f32 %v982, %v1447
    %v1455 = vmul.f32 %v983, %v1449
    %v1456 = vmul.f32 %v984, %v1451
    %v1457 = vmul.f32 %v985, %v1453
    %v1459 = vsel %vm28, %v1454, 0
    %v1462 = vsel %vm28, %v1455, 0
    %v1465 = vsel %vm28, %v1456, 0
    %v1468 = vsel %vm28, %v1457, 0
    %1470 = vmatprep.subr.mxu0 0.0
    %1471 = vmatpush1.msra.mxu0 %v1348
    %1472 = vmatprep.subr.mxu0 0.0
    %1473 = vmatpush1.msra.mxu0 0.0
    %1474 = vmatprep.subr.mxu0 0.0
    %1475 = vmatpush1.msra.mxu0 0.0
    %1476 = vmatprep.subr.mxu0 0.0
    %1477 = vmatpush1.msra.mxu0 0.0
    %1478 = vmatprep.subr.mxu0 0.0
    %1479 = vmatpush1.msra.mxu0 0.0
    %1480 = vmatprep.subr.mxu0 0.0
    %1481 = vmatpush1.msra.mxu0 0.0
    %1482 = vmatprep.subr.mxu0 0.0
    %1483 = vmatpush1.msra.mxu0 0.0
    %1484 = vmatprep.subr.mxu0 0.0
    %1485 = vmatpush1.msra.mxu0 0.0
    %1486 = vmatprep.subr.mxu0 0.0
    %1487 = vmatpush1.msra.mxu0 0.0
    %1488 = vmatprep.subr.mxu0 0.0
    %1489 = vmatpush1.msra.mxu0 0.0
    %1490 = vmatprep.subr.mxu0 0.0
    %1491 = vmatpush1.msra.mxu0 0.0
    %1492 = vmatprep.subr.mxu0 0.0
    %1493 = vmatpush1.msra.mxu0 0.0
    %1494 = vmatprep.subr.mxu0 0.0
    %1495 = vmatpush1.msra.mxu0 0.0
    %1496 = vmatprep.subr.mxu0 0.0
    %1497 = vmatpush1.msra.mxu0 0.0
    %1498 = vmatprep.subr.mxu0 0.0
    %1499 = vmatpush1.msra.mxu0 0.0
    %1500 = vmatprep.subr.mxu0 0.0
    %1501 = vmatpush1.msra.mxu0 0.0
    %1502 = vmatprep.subr.mxu0 0.0
    %1503 = vmatpush1.msra.mxu0 0.0
    %1504 = vmatprep.subr.mxu0 0.0
    %1505 = vmatpush1.msra.mxu0 0.0
    %1506 = vmatprep.subr.mxu0 0.0
    %1507 = vmatpush1.msra.mxu0 0.0
    %1508 = vmatprep.subr.mxu0 0.0
    %1509 = vmatpush1.msra.mxu0 0.0
    %1510 = vmatprep.subr.mxu0 0.0
    %1511 = vmatpush1.msra.mxu0 0.0
    %1512 = vmatprep.subr.mxu0 0.0
    %1513 = vmatpush1.msra.mxu0 0.0
    %1514 = vmatprep.subr.mxu0 0.0
    %1515 = vmatpush1.msra.mxu0 0.0
    %1516 = vmatprep.subr.mxu0 0.0
    %1517 = vmatpush1.msra.mxu0 0.0
    %1518 = vmatprep.subr.mxu0 0.0
    %1519 = vmatpush1.msra.mxu0 0.0
    %1520 = vmatprep.subr.mxu0 0.0
    %1521 = vmatpush1.msra.mxu0 0.0
    %1522 = vmatprep.subr.mxu0 0.0
    %1523 = vmatpush1.msra.mxu0 0.0
    %1524 = vmatprep.subr.mxu0 0.0
    %1525 = vmatpush1.msra.mxu0 0.0
    %1526 = vmatprep.subr.mxu0 0.0
    %1527 = vmatpush1.msra.mxu0 0.0
    %1528 = vmatprep.subr.mxu0 0.0
    %1529 = vmatpush1.msra.mxu0 0.0
    %1530 = vmatprep.subr.mxu0 0.0
    %1531 = vmatpush1.msra.mxu0 0.0
    %1532 = vmatprep.subr.mxu0 0.0
    %1533 = vmatpush1.msra.mxu0 0.0
    %1534 = vmatprep.mubr.f32.mxu0 0.0
    %1535 = vmatmul.mubr.f32.gmra.mrb[0].mxu0 %v1459
    %v1536 = vpop.f32.mrb[0].mxu0
    %v1537 = vadd.f32 0.0, %v1536
    %v1538 = vpop.f32.mrb[0].mxu0
    %1539 = vmatprep.mubr.f32.mxu0 0.0
    %1540 = vmatmul.mubr.f32.gmra.mrb[0].mxu0 %v1462
    %v1541 = vpop.f32.mrb[0].mxu0
    %v1542 = vadd.f32 0.0, %v1541
    %v1543 = vpop.f32.mrb[0].mxu0
    %1544 = vmatprep.mubr.f32.mxu0 0.0
    %1545 = vmatmul.mubr.f32.gmra.mrb[0].mxu0 %v1465
    %v1546 = vpop.f32.mrb[0].mxu0
    %v1547 = vadd.f32 0.0, %v1546
    %v1548 = vpop.f32.mrb[0].mxu0
    %1549 = vmatprep.mubr.f32.mxu0 0.0
    %1550 = vmatmul.mubr.f32.gmra.mrb[0].mxu0 %v1468
    %v1551 = vpop.f32.mrb[0].mxu0
    %v1552 = vadd.f32 0.0, %v1551
    %v1553 = vpop.f32.mrb[0].mxu0
    %1554 = vdwg.mxu0
    %1555 = vxpose.xlu0.b32.start [1/16] %v1454, 128
    %1556 = vxpose.xlu0.b32.cont [2/16] %v1455, 128
    %1557 = vxpose.xlu0.b32.cont [3/16] %v1456, 128
    %1558 = vxpose.xlu0.b32.cont [4/16] %v1457, 128
    %1559 = vxpose.xlu0.b32.cont [5/16] 0.0, 128
    %1560 = vxpose.xlu0.b32.cont [6/16] 0.0, 128
    %1561 = vxpose.xlu0.b32.cont [7/16] 0.0, 128
    %1562 = vxpose.xlu0.b32.cont [8/16] 0.0, 128
    %1563 = vxpose.xlu0.b32.cont [9/16] 0.0, 128
    %1564 = vxpose.xlu0.b32.cont [10/16] 0.0, 128
    %1565 = vxpose.xlu0.b32.cont [11/16] 0.0, 128
    %1566 = vxpose.xlu0.b32.cont [12/16] 0.0, 128
    %1567 = vxpose.xlu0.b32.cont [13/16] 0.0, 128
    %1568 = vxpose.xlu0.b32.cont [14/16] 0.0, 128
    %1569 = vxpose.xlu0.b32.cont [15/16] 0.0, 128
    %1570 = vxpose.xlu0.b32.end [16/16] 0.0, 128
    %v1571 = vpop.trf.xlu0
    %v1572 = vpop.trf.xlu0
    %v1573 = vpop.trf.xlu0
    %v1574 = vpop.trf.xlu0
    %v1575 = vpop.trf.xlu0
    %v1576 = vpop.trf.xlu0
    %v1577 = vpop.trf.xlu0
    %v1578 = vpop.trf.xlu0
    %v1579 = vpop.trf.xlu0
    %v1580 = vpop.trf.xlu0
    %v1581 = vpop.trf.xlu0
    %v1582 = vpop.trf.xlu0
    %v1583 = vpop.trf.xlu0
    %v1584 = vpop.trf.xlu0
    %v1585 = vpop.trf.xlu0
    %v1586 = vpop.trf.xlu0
    %v1588 = vsel %vm158, %v1571, 0
    %1590 = vmatprep.subr.mxu0 0.0
    %1591 = vmatpush1.msra.mxu0 %v19
    %1592 = vmatprep.subr.mxu0 0.0
    %1593 = vmatpush1.msra.mxu0 %v20
    %1594 = vmatprep.subr.mxu0 0.0
    %1595 = vmatpush1.msra.mxu0 %v21
    %1596 = vmatprep.subr.mxu0 0.0
    %1597 = vmatpush1.msra.mxu0 %v22
    %1598 = vmatprep.subr.mxu0 0.0
    %1599 = vmatpush1.msra.mxu0 0.0
    %1600 = vmatprep.subr.mxu0 0.0
    %1601 = vmatpush1.msra.mxu0 0.0
    %1602 = vmatprep.subr.mxu0 0.0
    %1603 = vmatpush1.msra.mxu0 0.0
    %1604 = vmatprep.subr.mxu0 0.0
    %1605 = vmatpush1.msra.mxu0 0.0
    %1606 = vmatprep.subr.mxu0 0.0
    %1607 = vmatpush1.msra.mxu0 0.0
    %1608 = vmatprep.subr.mxu0 0.0
    %1609 = vmatpush1.msra.mxu0 0.0
    %1610 = vmatprep.subr.mxu0 0.0
    %1611 = vmatpush1.msra.mxu0 0.0
    %1612 = vmatprep.subr.mxu0 0.0
    %1613 = vmatpush1.msra.mxu0 0.0
    %1614 = vmatprep.subr.mxu0 0.0
    %1615 = vmatpush1.msra.mxu0 0.0
    %1616 = vmatprep.subr.mxu0 0.0
    %1617 = vmatpush1.msra.mxu0 0.0
    %1618 = vmatprep.subr.mxu0 0.0
    %1619 = vmatpush1.msra.mxu0 0.0
    %1620 = vmatprep.subr.mxu0 0.0
    %1621 = vmatpush1.msra.mxu0 0.0
    %1622 = vmatprep.subr.mxu0 0.0
    %1623 = vmatpush1.msra.mxu0 0.0
    %1624 = vmatprep.subr.mxu0 0.0
    %1625 = vmatpush1.msra.mxu0 0.0
    %1626 = vmatprep.subr.mxu0 0.0
    %1627 = vmatpush1.msra.mxu0 0.0
    %1628 = vmatprep.subr.mxu0 0.0
    %1629 = vmatpush1.msra.mxu0 0.0
    %1630 = vmatprep.subr.mxu0 0.0
    %1631 = vmatpush1.msra.mxu0 0.0
    %1632 = vmatprep.subr.mxu0 0.0
    %1633 = vmatpush1.msra.mxu0 0.0
    %1634 = vmatprep.subr.mxu0 0.0
    %1635 = vmatpush1.msra.mxu0 0.0
    %1636 = vmatprep.subr.mxu0 0.0
    %1637 = vmatpush1.msra.mxu0 0.0
    %1638 = vmatprep.subr.mxu0 0.0
    %1639 = vmatpush1.msra.mxu0 0.0
    %1640 = vmatprep.subr.mxu0 0.0
    %1641 = vmatpush1.msra.mxu0 0.0
    %1642 = vmatprep.subr.mxu0 0.0
    %1643 = vmatpush1.msra.mxu0 0.0
    %1644 = vmatprep.subr.mxu0 0.0
    %1645 = vmatpush1.msra.mxu0 0.0
    %1646 = vmatprep.subr.mxu0 0.0
    %1647 = vmatpush1.msra.mxu0 0.0
    %1648 = vmatprep.subr.mxu0 0.0
    %1649 = vmatpush1.msra.mxu0 0.0
    %1650 = vmatprep.subr.mxu0 0.0
    %1651 = vmatpush1.msra.mxu0 0.0
    %1652 = vmatprep.subr.mxu0 0.0
    %1653 = vmatpush1.msra.mxu0 0.0
    %1654 = vmatprep.mubr.f32.mxu0 0.0
    %1655 = vmatmul.mubr.f32.gmra.mrb[0].mxu0 %v1588
    %v1656 = vpop.f32.mrb[0].mxu0
    %v1657 = vadd.f32 0.0, %v1656
    %v1658 = vpop.f32.mrb[0].mxu0
    %1659 = vdwg.mxu0
    %v1661 = vsel %vm158, %v1348, 0
    %1663 = vmatprep.subr.mxu0 0.0
    %1664 = vmatpush1.xpose.msra.mxu0 %v1661
    %1665 = vmatprep.subr.mxu0 0.0
    %1666 = vmatpush1.xpose.msra.mxu0 0.0
    %1667 = vmatprep.subr.mxu0 0.0
    %1668 = vmatpush1.xpose.msra.mxu0 0.0
    %1669 = vmatprep.subr.mxu0 0.0
    %1670 = vmatpush1.xpose.msra.mxu0 0.0
    %1671 = vmatprep.subr.mxu0 0.0
    %1672 = vmatpush1.xpose.msra.mxu0 0.0
    %1673 = vmatprep.subr.mxu0 0.0
    %1674 = vmatpush1.xpose.msra.mxu0 0.0
    %1675 = vmatprep.subr.mxu0 0.0
    %1676 = vmatpush1.xpose.msra.mxu0 0.0
    %1677 = vmatprep.subr.mxu0 0.0
    %1678 = vmatpush1.xpose.msra.mxu0 0.0
    %1679 = vmatprep.subr.mxu0 0.0
    %1680 = vmatpush1.xpose.msra.mxu0 0.0
    %1681 = vmatprep.subr.mxu0 0.0
    %1682 = vmatpush1.xpose.msra.mxu0 0.0
    %1683 = vmatprep.subr.mxu0 0.0
    %1684 = vmatpush1.xpose.msra.mxu0 0.0
    %1685 = vmatprep.subr.mxu0 0.0
    %1686 = vmatpush1.xpose.msra.mxu0 0.0
    %1687 = vmatprep.subr.mxu0 0.0
    %1688 = vmatpush1.xpose.msra.mxu0 0.0
    %1689 = vmatprep.subr.mxu0 0.0
    %1690 = vmatpush1.xpose.msra.mxu0 0.0
    %1691 = vmatprep.subr.mxu0 0.0
    %1692 = vmatpush1.xpose.msra.mxu0 0.0
    %1693 = vmatprep.subr.mxu0 0.0
    %1694 = vmatpush1.xpose.msra.mxu0 0.0
    %1695 = vmatprep.subr.mxu0 0.0
    %1696 = vmatpush1.xpose.msra.mxu0 0.0
    %1697 = vmatprep.subr.mxu0 0.0
    %1698 = vmatpush1.xpose.msra.mxu0 0.0
    %1699 = vmatprep.subr.mxu0 0.0
    %1700 = vmatpush1.xpose.msra.mxu0 0.0
    %1701 = vmatprep.subr.mxu0 0.0
    %1702 = vmatpush1.xpose.msra.mxu0 0.0
    %1703 = vmatprep.subr.mxu0 0.0
    %1704 = vmatpush1.xpose.msra.mxu0 0.0
    %1705 = vmatprep.subr.mxu0 0.0
    %1706 = vmatpush1.xpose.msra.mxu0 0.0
    %1707 = vmatprep.subr.mxu0 0.0
    %1708 = vmatpush1.xpose.msra.mxu0 0.0
    %1709 = vmatprep.subr.mxu0 0.0
    %1710 = vmatpush1.xpose.msra.mxu0 0.0
    %1711 = vmatprep.subr.mxu0 0.0
    %1712 = vmatpush1.xpose.msra.mxu0 0.0
    %1713 = vmatprep.subr.mxu0 0.0
    %1714 = vmatpush1.xpose.msra.mxu0 0.0
    %1715 = vmatprep.subr.mxu0 0.0
    %1716 = vmatpush1.xpose.msra.mxu0 0.0
    %1717 = vmatprep.subr.mxu0 0.0
    %1718 = vmatpush1.xpose.msra.mxu0 0.0
    %1719 = vmatprep.subr.mxu0 0.0
    %1720 = vmatpush1.xpose.msra.mxu0 0.0
    %1721 = vmatprep.subr.mxu0 0.0
    %1722 = vmatpush1.xpose.msra.mxu0 0.0
    %1723 = vmatprep.subr.mxu0 0.0
    %1724 = vmatpush1.xpose.msra.mxu0 0.0
    %1725 = vmatprep.subr.mxu0 0.0
    %1726 = vmatpush1.xpose.msra.mxu0 0.0
    %1727 = vmatprep.mubr.f32.mxu0 0.0
    %1728 = vmatmul.mubr.f32.gmra.mrb[0].mxu0 %v233
    %v1729 = vpop.f32.mrb[0].mxu0
    %v1730 = vadd.f32 0.0, %v1729
    %v1731 = vpop.f32.mrb[0].mxu0
    %1732 = vmatprep.mubr.f32.mxu0 0.0
    %1733 = vmatmul.mubr.f32.gmra.mrb[0].mxu0 %v236
    %v1734 = vpop.f32.mrb[0].mxu0
    %v1735 = vadd.f32 0.0, %v1734
    %v1736 = vpop.f32.mrb[0].mxu0
    %1737 = vmatprep.mubr.f32.mxu0 0.0
    %1738 = vmatmul.mubr.f32.gmra.mrb[0].mxu0 %v239
    %v1739 = vpop.f32.mrb[0].mxu0
    %v1740 = vadd.f32 0.0, %v1739
    %v1741 = vpop.f32.mrb[0].mxu0
    %1742 = vmatprep.mubr.f32.mxu0 0.0
    %1743 = vmatmul.mubr.f32.gmra.mrb[0].mxu0 %v242
    %v1744 = vpop.f32.mrb[0].mxu0
    %v1745 = vadd.f32 0.0, %v1744
    %v1746 = vpop.f32.mrb[0].mxu0
    %1747 = vdwg.mxu0
    %1748 = vmatprep.subr.mxu0 0.0
    %1749 = vmatpush1.msra.mxu0 %v1537
    %1750 = vmatprep.subr.mxu0 0.0
    %1751 = vmatpush1.msra.mxu0 %v1542
    %1752 = vmatprep.subr.mxu0 0.0
    %1753 = vmatpush1.msra.mxu0 %v1547
    %1754 = vmatprep.subr.mxu0 0.0
    %1755 = vmatpush1.msra.mxu0 %v1552
    %1756 = vmatprep.subr.mxu0 0.0
    %1757 = vmatpush1.msra.mxu0 0.0
    %1758 = vmatprep.subr.mxu0 0.0
    %1759 = vmatpush1.msra.mxu0 0.0
    %1760 = vmatprep.subr.mxu0 0.0
    %1761 = vmatpush1.msra.mxu0 0.0
    %1762 = vmatprep.subr.mxu0 0.0
    %1763 = vmatpush1.msra.mxu0 0.0
    %1764 = vmatprep.subr.mxu0 0.0
    %1765 = vmatpush1.msra.mxu0 0.0
    %1766 = vmatprep.subr.mxu0 0.0
    %1767 = vmatpush1.msra.mxu0 0.0
    %1768 = vmatprep.subr.mxu0 0.0
    %1769 = vmatpush1.msra.mxu0 0.0
    %1770 = vmatprep.subr.mxu0 0.0
    %1771 = vmatpush1.msra.mxu0 0.0
    %1772 = vmatprep.subr.mxu0 0.0
    %1773 = vmatpush1.msra.mxu0 0.0
    %1774 = vmatprep.subr.mxu0 0.0
    %1775 = vmatpush1.msra.mxu0 0.0
    %1776 = vmatprep.subr.mxu0 0.0
    %1777 = vmatpush1.msra.mxu0 0.0
    %1778 = vmatprep.subr.mxu0 0.0
    %1779 = vmatpush1.msra.mxu0 0.0
    %1780 = vmatprep.subr.mxu0 0.0
    %1781 = vmatpush1.msra.mxu0 0.0
    %1782 = vmatprep.subr.mxu0 0.0
    %1783 = vmatpush1.msra.mxu0 0.0
    %1784 = vmatprep.subr.mxu0 0.0
    %1785 = vmatpush1.msra.mxu0 0.0
    %1786 = vmatprep.subr.mxu0 0.0
    %1787 = vmatpush1.msra.mxu0 0.0
    %1788 = vmatprep.subr.mxu0 0.0
    %1789 = vmatpush1.msra.mxu0 0.0
    %1790 = vmatprep.subr.mxu0 0.0
    %1791 = vmatpush1.msra.mxu0 0.0
    %1792 = vmatprep.subr.mxu0 0.0
    %1793 = vmatpush1.msra.mxu0 0.0
    %1794 = vmatprep.subr.mxu0 0.0
    %1795 = vmatpush1.msra.mxu0 0.0
    %1796 = vmatprep.subr.mxu0 0.0
    %1797 = vmatpush1.msra.mxu0 0.0
    %1798 = vmatprep.subr.mxu0 0.0
    %1799 = vmatpush1.msra.mxu0 0.0
    %1800 = vmatprep.subr.mxu0 0.0
    %1801 = vmatpush1.msra.mxu0 0.0
    %1802 = vmatprep.subr.mxu0 0.0
    %1803 = vmatpush1.msra.mxu0 0.0
    %1804 = vmatprep.subr.mxu0 0.0
    %1805 = vmatpush1.msra.mxu0 0.0
    %1806 = vmatprep.subr.mxu0 0.0
    %1807 = vmatpush1.msra.mxu0 0.0
    %1808 = vmatprep.subr.mxu0 0.0
    %1809 = vmatpush1.msra.mxu0 0.0
    %1810 = vmatprep.subr.mxu0 0.0
    %1811 = vmatpush1.msra.mxu0 0.0
    %1812 = vmatprep.mubr.f32.mxu0 0.0
    %1813 = vmatmul.mubr.f32.gmra.mrb[0].mxu0 %v1588
    %v1814 = vpop.f32.mrb[0].mxu0
    %v1815 = vadd.f32 2e-08, %v1814
    %v1816 = vpop.f32.mrb[0].mxu0
    %1817 = vdwg.mxu0
    %v1818 = vrcp.pop %v1815
    %v1819 = vmul.f32 %v1657, %v1818
    %v1820 = vmul.f32 %v1348, %v1819
    %v1822 = vsel %vm158, %v1537, 0
    %v1825 = vsel %vm158, %v1542, 0
    %v1828 = vsel %vm158, %v1547, 0
    %v1831 = vsel %vm158, %v1552, 0
    %1833 = vmatprep.subr.mxu0 0.0
    %1834 = vmatpush1.xpose.msra.mxu0 %v1661
    %1835 = vmatprep.subr.mxu0 0.0
    %1836 = vmatpush1.xpose.msra.mxu0 0.0
    %1837 = vmatprep.subr.mxu0 0.0
    %1838 = vmatpush1.xpose.msra.mxu0 0.0
    %1839 = vmatprep.subr.mxu0 0.0
    %1840 = vmatpush1.xpose.msra.mxu0 0.0
    %1841 = vmatprep.subr.mxu0 0.0
    %1842 = vmatpush1.xpose.msra.mxu0 0.0
    %1843 = vmatprep.subr.mxu0 0.0
    %1844 = vmatpush1.xpose.msra.mxu0 0.0
    %1845 = vmatprep.subr.mxu0 0.0
    %1846 = vmatpush1.xpose.msra.mxu0 0.0
    %1847 = vmatprep.subr.mxu0 0.0
    %1848 = vmatpush1.xpose.msra.mxu0 0.0
    %1849 = vmatprep.subr.mxu0 0.0
    %1850 = vmatpush1.xpose.msra.mxu0 0.0
    %1851 = vmatprep.subr.mxu0 0.0
    %1852 = vmatpush1.xpose.msra.mxu0 0.0
    %1853 = vmatprep.subr.mxu0 0.0
    %1854 = vmatpush1.xpose.msra.mxu0 0.0
    %1855 = vmatprep.subr.mxu0 0.0
    %1856 = vmatpush1.xpose.msra.mxu0 0.0
    %1857 = vmatprep.subr.mxu0 0.0
    %1858 = vmatpush1.xpose.msra.mxu0 0.0
    %1859 = vmatprep.subr.mxu0 0.0
    %1860 = vmatpush1.xpose.msra.mxu0 0.0
    %1861 = vmatprep.subr.mxu0 0.0
    %1862 = vmatpush1.xpose.msra.mxu0 0.0
    %1863 = vmatprep.subr.mxu0 0.0
    %1864 = vmatpush1.xpose.msra.mxu0 0.0
    %1865 = vmatprep.subr.mxu0 0.0
    %1866 = vmatpush1.xpose.msra.mxu0 0.0
    %1867 = vmatprep.subr.mxu0 0.0
    %1868 = vmatpush1.xpose.msra.mxu0 0.0
    %1869 = vmatprep.subr.mxu0 0.0
    %1870 = vmatpush1.xpose.msra.mxu0 0.0
    %1871 = vmatprep.subr.mxu0 0.0
    %1872 = vmatpush1.xpose.msra.mxu0 0.0
    %1873 = vmatprep.subr.mxu0 0.0
    %1874 = vmatpush1.xpose.msra.mxu0 0.0
    %1875 = vmatprep.subr.mxu0 0.0
    %1876 = vmatpush1.xpose.msra.mxu0 0.0
    %1877 = vmatprep.subr.mxu0 0.0
    %1878 = vmatpush1.xpose.msra.mxu0 0.0
    %1879 = vmatprep.subr.mxu0 0.0
    %1880 = vmatpush1.xpose.msra.mxu0 0.0
    %1881 = vmatprep.subr.mxu0 0.0
    %1882 = vmatpush1.xpose.msra.mxu0 0.0
    %1883 = vmatprep.subr.mxu0 0.0
    %1884 = vmatpush1.xpose.msra.mxu0 0.0
    %1885 = vmatprep.subr.mxu0 0.0
    %1886 = vmatpush1.xpose.msra.mxu0 0.0
    %1887 = vmatprep.subr.mxu0 0.0
    %1888 = vmatpush1.xpose.msra.mxu0 0.0
    %1889 = vmatprep.subr.mxu0 0.0
    %1890 = vmatpush1.xpose.msra.mxu0 0.0
    %1891 = vmatprep.subr.mxu0 0.0
    %1892 = vmatpush1.xpose.msra.mxu0 0.0
    %1893 = vmatprep.subr.mxu0 0.0
    %1894 = vmatpush1.xpose.msra.mxu0 0.0
    %1895 = vmatprep.subr.mxu0 0.0
    %1896 = vmatpush1.xpose.msra.mxu0 0.0
    %1897 = vmatprep.mubr.f32.mxu0 0.0
    %1898 = vmatmul.mubr.f32.gmra.mrb[0].mxu0 %v1822
    %v1899 = vpop.f32.mrb[0].mxu0
    %v1900 = vadd.f32 2e-08, %v1899
    %v1901 = vpop.f32.mrb[0].mxu0
    %1902 = vmatprep.mubr.f32.mxu0 0.0
    %1903 = vmatmul.mubr.f32.gmra.mrb[0].mxu0 %v1825
    %v1904 = vpop.f32.mrb[0].mxu0
    %v1905 = vadd.f32 2e-08, %v1904
    %v1906 = vpop.f32.mrb[0].mxu0
    %1907 = vmatprep.mubr.f32.mxu0 0.0
    %1908 = vmatmul.mubr.f32.gmra.mrb[0].mxu0 %v1828
    %v1909 = vpop.f32.mrb[0].mxu0
    %v1910 = vadd.f32 2e-08, %v1909
    %v1911 = vpop.f32.mrb[0].mxu0
    %1912 = vmatprep.mubr.f32.mxu0 0.0
    %1913 = vmatmul.mubr.f32.gmra.mrb[0].mxu0 %v1831
    %v1914 = vpop.f32.mrb[0].mxu0
    %v1915 = vadd.f32 2e-08, %v1914
    %v1916 = vpop.f32.mrb[0].mxu0
    %1917 = vdwg.mxu0
    %v1918 = vrcp.pop %v1900
    %v1919 = vmul.f32 %v1730, %v1918
    %v1920 = vrcp.pop %v1905
    %v1921 = vmul.f32 %v1735, %v1920
    %v1922 = vrcp.pop %v1910
    %v1923 = vmul.f32 %v1740, %v1922
    %v1924 = vrcp.pop %v1915
    %v1925 = vmul.f32 %v1745, %v1924
    %v1926 = vmul.f32 %v1454, %v1919
    %v1927 = vmul.f32 %v1455, %v1921
    %v1928 = vmul.f32 %v1456, %v1923
    %v1929 = vmul.f32 %v1457, %v1925
    %v1931 = vsel %vm28, %v1926, 0
    %v1934 = vsel %vm28, %v1927, 0
    %v1937 = vsel %vm28, %v1928, 0
    %v1940 = vsel %vm28, %v1929, 0
    %1942 = vmatprep.subr.mxu0 0.0
    %1943 = vmatpush1.msra.mxu0 %v1820
    %1944 = vmatprep.subr.mxu0 0.0
    %1945 = vmatpush1.msra.mxu0 0.0
    %1946 = vmatprep.subr.mxu0 0.0
    %1947 = vmatpush1.msra.mxu0 0.0
    %1948 = vmatprep.subr.mxu0 0.0
    %1949 = vmatpush1.msra.mxu0 0.0
    %1950 = vmatprep.subr.mxu0 0.0
    %1951 = vmatpush1.msra.mxu0 0.0
    %1952 = vmatprep.subr.mxu0 0.0
    %1953 = vmatpush1.msra.mxu0 0.0
    %1954 = vmatprep.subr.mxu0 0.0
    %1955 = vmatpush1.msra.mxu0 0.0
    %1956 = vmatprep.subr.mxu0 0.0
    %1957 = vmatpush1.msra.mxu0 0.0
    %1958 = vmatprep.subr.mxu0 0.0
    %1959 = vmatpush1.msra.mxu0 0.0
    %1960 = vmatprep.subr.mxu0 0.0
    %1961 = vmatpush1.msra.mxu0 0.0
    %1962 = vmatprep.subr.mxu0 0.0
    %1963 = vmatpush1.msra.mxu0 0.0
    %1964 = vmatprep.subr.mxu0 0.0
    %1965 = vmatpush1.msra.mxu0 0.0
    %1966 = vmatprep.subr.mxu0 0.0
    %1967 = vmatpush1.msra.mxu0 0.0
    %1968 = vmatprep.subr.mxu0 0.0
    %1969 = vmatpush1.msra.mxu0 0.0
    %1970 = vmatprep.subr.mxu0 0.0
    %1971 = vmatpush1.msra.mxu0 0.0
    %1972 = vmatprep.subr.mxu0 0.0
    %1973 = vmatpush1.msra.mxu0 0.0
    %1974 = vmatprep.subr.mxu0 0.0
    %1975 = vmatpush1.msra.mxu0 0.0
    %1976 = vmatprep.subr.mxu0 0.0
    %1977 = vmatpush1.msra.mxu0 0.0
    %1978 = vmatprep.subr.mxu0 0.0
    %1979 = vmatpush1.msra.mxu0 0.0
    %1980 = vmatprep.subr.mxu0 0.0
    %1981 = vmatpush1.msra.mxu0 0.0
    %1982 = vmatprep.subr.mxu0 0.0
    %1983 = vmatpush1.msra.mxu0 0.0
    %1984 = vmatprep.subr.mxu0 0.0
    %1985 = vmatpush1.msra.mxu0 0.0
    %1986 = vmatprep.subr.mxu0 0.0
    %1987 = vmatpush1.msra.mxu0 0.0
    %1988 = vmatprep.subr.mxu0 0.0
    %1989 = vmatpush1.msra.mxu0 0.0
    %1990 = vmatprep.subr.mxu0 0.0
    %1991 = vmatpush1.msra.mxu0 0.0
    %1992 = vmatprep.subr.mxu0 0.0
    %1993 = vmatpush1.msra.mxu0 0.0
    %1994 = vmatprep.subr.mxu0 0.0
    %1995 = vmatpush1.msra.mxu0 0.0
    %1996 = vmatprep.subr.mxu0 0.0
    %1997 = vmatpush1.msra.mxu0 0.0
    %1998 = vmatprep.subr.mxu0 0.0
    %1999 = vmatpush1.msra.mxu0 0.0
    %2000 = vmatprep.subr.mxu0 0.0
    %2001 = vmatpush1.msra.mxu0 0.0
    %2002 = vmatprep.subr.mxu0 0.0
    %2003 = vmatpush1.msra.mxu0 0.0
    %2004 = vmatprep.subr.mxu0 0.0
    %2005 = vmatpush1.msra.mxu0 0.0
    %2006 = vmatprep.mubr.f32.mxu0 0.0
    %2007 = vmatmul.mubr.f32.gmra.mrb[0].mxu0 %v1931
    %v2008 = vpop.f32.mrb[0].mxu0
    %v2009 = vadd.f32 0.0, %v2008
    %v2010 = vpop.f32.mrb[0].mxu0
    %2011 = vmatprep.mubr.f32.mxu0 0.0
    %2012 = vmatmul.mubr.f32.gmra.mrb[0].mxu0 %v1934
    %v2013 = vpop.f32.mrb[0].mxu0
    %v2014 = vadd.f32 0.0, %v2013
    %v2015 = vpop.f32.mrb[0].mxu0
    %2016 = vmatprep.mubr.f32.mxu0 0.0
    %2017 = vmatmul.mubr.f32.gmra.mrb[0].mxu0 %v1937
    %v2018 = vpop.f32.mrb[0].mxu0
    %v2019 = vadd.f32 0.0, %v2018
    %v2020 = vpop.f32.mrb[0].mxu0
    %2021 = vmatprep.mubr.f32.mxu0 0.0
    %2022 = vmatmul.mubr.f32.gmra.mrb[0].mxu0 %v1940
    %v2023 = vpop.f32.mrb[0].mxu0
    %v2024 = vadd.f32 0.0, %v2023
    %v2025 = vpop.f32.mrb[0].mxu0
    %2026 = vdwg.mxu0
    %2027 = vxpose.xlu0.b32.start [1/16] %v1926, 128
    %2028 = vxpose.xlu0.b32.cont [2/16] %v1927, 128
    %2029 = vxpose.xlu0.b32.cont [3/16] %v1928, 128
    %2030 = vxpose.xlu0.b32.cont [4/16] %v1929, 128
    %2031 = vxpose.xlu0.b32.cont [5/16] 0.0, 128
    %2032 = vxpose.xlu0.b32.cont [6/16] 0.0, 128
    %2033 = vxpose.xlu0.b32.cont [7/16] 0.0, 128
    %2034 = vxpose.xlu0.b32.cont [8/16] 0.0, 128
    %2035 = vxpose.xlu0.b32.cont [9/16] 0.0, 128
    %2036 = vxpose.xlu0.b32.cont [10/16] 0.0, 128
    %2037 = vxpose.xlu0.b32.cont [11/16] 0.0, 128
    %2038 = vxpose.xlu0.b32.cont [12/16] 0.0, 128
    %2039 = vxpose.xlu0.b32.cont [13/16] 0.0, 128
    %2040 = vxpose.xlu0.b32.cont [14/16] 0.0, 128
    %2041 = vxpose.xlu0.b32.cont [15/16] 0.0, 128
    %2042 = vxpose.xlu0.b32.end [16/16] 0.0, 128
    %v2043 = vpop.trf.xlu0
    %v2044 = vpop.trf.xlu0
    %v2045 = vpop.trf.xlu0
    %v2046 = vpop.trf.xlu0
    %v2047 = vpop.trf.xlu0
    %v2048 = vpop.trf.xlu0
    %v2049 = vpop.trf.xlu0
    %v2050 = vpop.trf.xlu0
    %v2051 = vpop.trf.xlu0
    %v2052 = vpop.trf.xlu0
    %v2053 = vpop.trf.xlu0
    %v2054 = vpop.trf.xlu0
    %v2055 = vpop.trf.xlu0
    %v2056 = vpop.trf.xlu0
    %v2057 = vpop.trf.xlu0
    %v2058 = vpop.trf.xlu0
    %v2060 = vsel %vm158, %v2043, 0
    %2062 = vmatprep.subr.mxu0 0.0
    %2063 = vmatpush1.msra.mxu0 %v19
    %2064 = vmatprep.subr.mxu0 0.0
    %2065 = vmatpush1.msra.mxu0 %v20
    %2066 = vmatprep.subr.mxu0 0.0
    %2067 = vmatpush1.msra.mxu0 %v21
    %2068 = vmatprep.subr.mxu0 0.0
    %2069 = vmatpush1.msra.mxu0 %v22
    %2070 = vmatprep.subr.mxu0 0.0
    %2071 = vmatpush1.msra.mxu0 0.0
    %2072 = vmatprep.subr.mxu0 0.0
    %2073 = vmatpush1.msra.mxu0 0.0
    %2074 = vmatprep.subr.mxu0 0.0
    %2075 = vmatpush1.msra.mxu0 0.0
    %2076 = vmatprep.subr.mxu0 0.0
    %2077 = vmatpush1.msra.mxu0 0.0
    %2078 = vmatprep.subr.mxu0 0.0
    %2079 = vmatpush1.msra.mxu0 0.0
    %2080 = vmatprep.subr.mxu0 0.0
    %2081 = vmatpush1.msra.mxu0 0.0
    %2082 = vmatprep.subr.mxu0 0.0
    %2083 = vmatpush1.msra.mxu0 0.0
    %2084 = vmatprep.subr.mxu0 0.0
    %2085 = vmatpush1.msra.mxu0 0.0
    %2086 = vmatprep.subr.mxu0 0.0
    %2087 = vmatpush1.msra.mxu0 0.0
    %2088 = vmatprep.subr.mxu0 0.0
    %2089 = vmatpush1.msra.mxu0 0.0
    %2090 = vmatprep.subr.mxu0 0.0
    %2091 = vmatpush1.msra.mxu0 0.0
    %2092 = vmatprep.subr.mxu0 0.0
    %2093 = vmatpush1.msra.mxu0 0.0
    %2094 = vmatprep.subr.mxu0 0.0
    %2095 = vmatpush1.msra.mxu0 0.0
    %2096 = vmatprep.subr.mxu0 0.0
    %2097 = vmatpush1.msra.mxu0 0.0
    %2098 = vmatprep.subr.mxu0 0.0
    %2099 = vmatpush1.msra.mxu0 0.0
    %2100 = vmatprep.subr.mxu0 0.0
    %2101 = vmatpush1.msra.mxu0 0.0
    %2102 = vmatprep.subr.mxu0 0.0
    %2103 = vmatpush1.msra.mxu0 0.0
    %2104 = vmatprep.subr.mxu0 0.0
    %2105 = vmatpush1.msra.mxu0 0.0
    %2106 = vmatprep.subr.mxu0 0.0
    %2107 = vmatpush1.msra.mxu0 0.0
    %2108 = vmatprep.subr.mxu0 0.0
    %2109 = vmatpush1.msra.mxu0 0.0
    %2110 = vmatprep.subr.mxu0 0.0
    %2111 = vmatpush1.msra.mxu0 0.0
    %2112 = vmatprep.subr.mxu0 0.0
    %2113 = vmatpush1.msra.mxu0 0.0
    %2114 = vmatprep.subr.mxu0 0.0
    %2115 = vmatpush1.msra.mxu0 0.0
    %2116 = vmatprep.subr.mxu0 0.0
    %2117 = vmatpush1.msra.mxu0 0.0
    %2118 = vmatprep.subr.mxu0 0.0
    %2119 = vmatpush1.msra.mxu0 0.0
    %2120 = vmatprep.subr.mxu0 0.0
    %2121 = vmatpush1.msra.mxu0 0.0
    %2122 = vmatprep.subr.mxu0 0.0
    %2123 = vmatpush1.msra.mxu0 0.0
    %2124 = vmatprep.subr.mxu0 0.0
    %2125 = vmatpush1.msra.mxu0 0.0
    %2126 = vmatprep.mubr.f32.mxu0 0.0
    %2127 = vmatmul.mubr.f32.gmra.mrb[0].mxu0 %v2060
    %v2128 = vpop.f32.mrb[0].mxu0
    %v2129 = vadd.f32 0.0, %v2128
    %v2130 = vpop.f32.mrb[0].mxu0
    %2131 = vdwg.mxu0
    %v2133 = vsel %vm158, %v1820, 0
    %2135 = vmatprep.subr.mxu0 0.0
    %2136 = vmatpush1.xpose.msra.mxu0 %v2133
    %2137 = vmatprep.subr.mxu0 0.0
    %2138 = vmatpush1.xpose.msra.mxu0 0.0
    %2139 = vmatprep.subr.mxu0 0.0
    %2140 = vmatpush1.xpose.msra.mxu0 0.0
    %2141 = vmatprep.subr.mxu0 0.0
    %2142 = vmatpush1.xpose.msra.mxu0 0.0
    %2143 = vmatprep.subr.mxu0 0.0
    %2144 = vmatpush1.xpose.msra.mxu0 0.0
    %2145 = vmatprep.subr.mxu0 0.0
    %2146 = vmatpush1.xpose.msra.mxu0 0.0
    %2147 = vmatprep.subr.mxu0 0.0
    %2148 = vmatpush1.xpose.msra.mxu0 0.0
    %2149 = vmatprep.subr.mxu0 0.0
    %2150 = vmatpush1.xpose.msra.mxu0 0.0
    %2151 = vmatprep.subr.mxu0 0.0
    %2152 = vmatpush1.xpose.msra.mxu0 0.0
    %2153 = vmatprep.subr.mxu0 0.0
    %2154 = vmatpush1.xpose.msra.mxu0 0.0
    %2155 = vmatprep.subr.mxu0 0.0
    %2156 = vmatpush1.xpose.msra.mxu0 0.0
    %2157 = vmatprep.subr.mxu0 0.0
    %2158 = vmatpush1.xpose.msra.mxu0 0.0
    %2159 = vmatprep.subr.mxu0 0.0
    %2160 = vmatpush1.xpose.msra.mxu0 0.0
    %2161 = vmatprep.subr.mxu0 0.0
    %2162 = vmatpush1.xpose.msra.mxu0 0.0
    %2163 = vmatprep.subr.mxu0 0.0
    %2164 = vmatpush1.xpose.msra.mxu0 0.0
    %2165 = vmatprep.subr.mxu0 0.0
    %2166 = vmatpush1.xpose.msra.mxu0 0.0
    %2167 = vmatprep.subr.mxu0 0.0
    %2168 = vmatpush1.xpose.msra.mxu0 0.0
    %2169 = vmatprep.subr.mxu0 0.0
    %2170 = vmatpush1.xpose.msra.mxu0 0.0
    %2171 = vmatprep.subr.mxu0 0.0
    %2172 = vmatpush1.xpose.msra.mxu0 0.0
    %2173 = vmatprep.subr.mxu0 0.0
    %2174 = vmatpush1.xpose.msra.mxu0 0.0
    %2175 = vmatprep.subr.mxu0 0.0
    %2176 = vmatpush1.xpose.msra.mxu0 0.0
    %2177 = vmatprep.subr.mxu0 0.0
    %2178 = vmatpush1.xpose.msra.mxu0 0.0
    %2179 = vmatprep.subr.mxu0 0.0
    %2180 = vmatpush1.xpose.msra.mxu0 0.0
    %2181 = vmatprep.subr.mxu0 0.0
    %2182 = vmatpush1.xpose.msra.mxu0 0.0
    %2183 = vmatprep.subr.mxu0 0.0
    %2184 = vmatpush1.xpose.msra.mxu0 0.0
    %2185 = vmatprep.subr.mxu0 0.0
    %2186 = vmatpush1.xpose.msra.mxu0 0.0
    %2187 = vmatprep.subr.mxu0 0.0
    %2188 = vmatpush1.xpose.msra.mxu0 0.0
    %2189 = vmatprep.subr.mxu0 0.0
    %2190 = vmatpush1.xpose.msra.mxu0 0.0
    %2191 = vmatprep.subr.mxu0 0.0
    %2192 = vmatpush1.xpose.msra.mxu0 0.0
    %2193 = vmatprep.subr.mxu0 0.0
    %2194 = vmatpush1.xpose.msra.mxu0 0.0
    %2195 = vmatprep.subr.mxu0 0.0
    %2196 = vmatpush1.xpose.msra.mxu0 0.0
    %2197 = vmatprep.subr.mxu0 0.0
    %2198 = vmatpush1.xpose.msra.mxu0 0.0
    %2199 = vmatprep.mubr.f32.mxu0 0.0
    %2200 = vmatmul.mubr.f32.gmra.mrb[0].mxu0 %v233
    %v2201 = vpop.f32.mrb[0].mxu0
    %v2202 = vadd.f32 0.0, %v2201
    %v2203 = vpop.f32.mrb[0].mxu0
    %2204 = vmatprep.mubr.f32.mxu0 0.0
    %2205 = vmatmul.mubr.f32.gmra.mrb[0].mxu0 %v236
    %v2206 = vpop.f32.mrb[0].mxu0
    %v2207 = vadd.f32 0.0, %v2206
    %v2208 = vpop.f32.mrb[0].mxu0
    %2209 = vmatprep.mubr.f32.mxu0 0.0
    %2210 = vmatmul.mubr.f32.gmra.mrb[0].mxu0 %v239
    %v2211 = vpop.f32.mrb[0].mxu0
    %v2212 = vadd.f32 0.0, %v2211
    %v2213 = vpop.f32.mrb[0].mxu0
    %2214 = vmatprep.mubr.f32.mxu0 0.0
    %2215 = vmatmul.mubr.f32.gmra.mrb[0].mxu0 %v242
    %v2216 = vpop.f32.mrb[0].mxu0
    %v2217 = vadd.f32 0.0, %v2216
    %v2218 = vpop.f32.mrb[0].mxu0
    %2219 = vdwg.mxu0
    %2220 = vmatprep.subr.mxu0 0.0
    %2221 = vmatpush1.msra.mxu0 %v2009
    %2222 = vmatprep.subr.mxu0 0.0
    %2223 = vmatpush1.msra.mxu0 %v2014
    %2224 = vmatprep.subr.mxu0 0.0
    %2225 = vmatpush1.msra.mxu0 %v2019
    %2226 = vmatprep.subr.mxu0 0.0
    %2227 = vmatpush1.msra.mxu0 %v2024
    %2228 = vmatprep.subr.mxu0 0.0
    %2229 = vmatpush1.msra.mxu0 0.0
    %2230 = vmatprep.subr.mxu0 0.0
    %2231 = vmatpush1.msra.mxu0 0.0
    %2232 = vmatprep.subr.mxu0 0.0
    %2233 = vmatpush1.msra.mxu0 0.0
    %2234 = vmatprep.subr.mxu0 0.0
    %2235 = vmatpush1.msra.mxu0 0.0
    %2236 = vmatprep.subr.mxu0 0.0
    %2237 = vmatpush1.msra.mxu0 0.0
    %2238 = vmatprep.subr.mxu0 0.0
    %2239 = vmatpush1.msra.mxu0 0.0
    %2240 = vmatprep.subr.mxu0 0.0
    %2241 = vmatpush1.msra.mxu0 0.0
    %2242 = vmatprep.subr.mxu0 0.0
    %2243 = vmatpush1.msra.mxu0 0.0
    %2244 = vmatprep.subr.mxu0 0.0
    %2245 = vmatpush1.msra.mxu0 0.0
    %2246 = vmatprep.subr.mxu0 0.0
    %2247 = vmatpush1.msra.mxu0 0.0
    %2248 = vmatprep.subr.mxu0 0.0
    %2249 = vmatpush1.msra.mxu0 0.0
    %2250 = vmatprep.subr.mxu0 0.0
    %2251 = vmatpush1.msra.mxu0 0.0
    %2252 = vmatprep.subr.mxu0 0.0
    %2253 = vmatpush1.msra.mxu0 0.0
    %2254 = vmatprep.subr.mxu0 0.0
    %2255 = vmatpush1.msra.mxu0 0.0
    %2256 = vmatprep.subr.mxu0 0.0
    %2257 = vmatpush1.msra.mxu0 0.0
    %2258 = vmatprep.subr.mxu0 0.0
    %2259 = vmatpush1.msra.mxu0 0.0
    %2260 = vmatprep.subr.mxu0 0.0
    %2261 = vmatpush1.msra.mxu0 0.0
    %2262 = vmatprep.subr.mxu0 0.0
    %2263 = vmatpush1.msra.mxu0 0.0
    %2264 = vmatprep.subr.mxu0 0.0
    %2265 = vmatpush1.msra.mxu0 0.0
    %2266 = vmatprep.subr.mxu0 0.0
    %2267 = vmatpush1.msra.mxu0 0.0
    %2268 = vmatprep.subr.mxu0 0.0
    %2269 = vmatpush1.msra.mxu0 0.0
    %2270 = vmatprep.subr.mxu0 0.0
    %2271 = vmatpush1.msra.mxu0 0.0
    %2272 = vmatprep.subr.mxu0 0.0
    %2273 = vmatpush1.msra.mxu0 0.0
    %2274 = vmatprep.subr.mxu0 0.0
    %2275 = vmatpush1.msra.mxu0 0.0
    %2276 = vmatprep.subr.mxu0 0.0
    %2277 = vmatpush1.msra.mxu0 0.0
    %2278 = vmatprep.subr.mxu0 0.0
    %2279 = vmatpush1.msra.mxu0 0.0
    %2280 = vmatprep.subr.mxu0 0.0
    %2281 = vmatpush1.msra.mxu0 0.0
    %2282 = vmatprep.subr.mxu0 0.0
    %2283 = vmatpush1.msra.mxu0 0.0
    %2284 = vmatprep.mubr.f32.mxu0 0.0
    %2285 = vmatmul.mubr.f32.gmra.mrb[0].mxu0 %v2060
    %v2286 = vpop.f32.mrb[0].mxu0
    %v2287 = vadd.f32 2e-08, %v2286
    %v2288 = vpop.f32.mrb[0].mxu0
    %2289 = vdwg.mxu0
    %v2290 = vrcp.pop %v2287
    %v2291 = vmul.f32 %v2129, %v2290
    %v2292 = vmul.f32 %v1820, %v2291
    %v2294 = vsel %vm158, %v2009, 0
    %v2297 = vsel %vm158, %v2014, 0
    %v2300 = vsel %vm158, %v2019, 0
    %v2303 = vsel %vm158, %v2024, 0
    %2305 = vmatprep.subr.mxu0 0.0
    %2306 = vmatpush1.xpose.msra.mxu0 %v2133
    %2307 = vmatprep.subr.mxu0 0.0
    %2308 = vmatpush1.xpose.msra.mxu0 0.0
    %2309 = vmatprep.subr.mxu0 0.0
    %2310 = vmatpush1.xpose.msra.mxu0 0.0
    %2311 = vmatprep.subr.mxu0 0.0
    %2312 = vmatpush1.xpose.msra.mxu0 0.0
    %2313 = vmatprep.subr.mxu0 0.0
    %2314 = vmatpush1.xpose.msra.mxu0 0.0
    %2315 = vmatprep.subr.mxu0 0.0
    %2316 = vmatpush1.xpose.msra.mxu0 0.0
    %2317 = vmatprep.subr.mxu0 0.0
    %2318 = vmatpush1.xpose.msra.mxu0 0.0
    %2319 = vmatprep.subr.mxu0 0.0
    %2320 = vmatpush1.xpose.msra.mxu0 0.0
    %2321 = vmatprep.subr.mxu0 0.0
    %2322 = vmatpush1.xpose.msra.mxu0 0.0
    %2323 = vmatprep.subr.mxu0 0.0
    %2324 = vmatpush1.xpose.msra.mxu0 0.0
    %2325 = vmatprep.subr.mxu0 0.0
    %2326 = vmatpush1.xpose.msra.mxu0 0.0
    %2327 = vmatprep.subr.mxu0 0.0
    %2328 = vmatpush1.xpose.msra.mxu0 0.0
    %2329 = vmatprep.subr.mxu0 0.0
    %2330 = vmatpush1.xpose.msra.mxu0 0.0
    %2331 = vmatprep.subr.mxu0 0.0
    %2332 = vmatpush1.xpose.msra.mxu0 0.0
    %2333 = vmatprep.subr.mxu0 0.0
    %2334 = vmatpush1.xpose.msra.mxu0 0.0
    %2335 = vmatprep.subr.mxu0 0.0
    %2336 = vmatpush1.xpose.msra.mxu0 0.0
    %2337 = vmatprep.subr.mxu0 0.0
    %2338 = vmatpush1.xpose.msra.mxu0 0.0
    %2339 = vmatprep.subr.mxu0 0.0
    %2340 = vmatpush1.xpose.msra.mxu0 0.0
    %2341 = vmatprep.subr.mxu0 0.0
    %2342 = vmatpush1.xpose.msra.mxu0 0.0
    %2343 = vmatprep.subr.mxu0 0.0
    %2344 = vmatpush1.xpose.msra.mxu0 0.0
    %2345 = vmatprep.subr.mxu0 0.0
    %2346 = vmatpush1.xpose.msra.mxu0 0.0
    %2347 = vmatprep.subr.mxu0 0.0
    %2348 = vmatpush1.xpose.msra.mxu0 0.0
    %2349 = vmatprep.subr.mxu0 0.0
    %2350 = vmatpush1.xpose.msra.mxu0 0.0
    %2351 = vmatprep.subr.mxu0 0.0
    %2352 = vmatpush1.xpose.msra.mxu0 0.0
    %2353 = vmatprep.subr.mxu0 0.0
    %2354 = vmatpush1.xpose.msra.mxu0 0.0
    %2355 = vmatprep.subr.mxu0 0.0
    %2356 = vmatpush1.xpose.msra.mxu0 0.0
    %2357 = vmatprep.subr.mxu0 0.0
    %2358 = vmatpush1.xpose.msra.mxu0 0.0
    %2359 = vmatprep.subr.mxu0 0.0
    %2360 = vmatpush1.xpose.msra.mxu0 0.0
    %2361 = vmatprep.subr.mxu0 0.0
    %2362 = vmatpush1.xpose.msra.mxu0 0.0
    %2363 = vmatprep.subr.mxu0 0.0
    %2364 = vmatpush1.xpose.msra.mxu0 0.0
    %2365 = vmatprep.subr.mxu0 0.0
    %2366 = vmatpush1.xpose.msra.mxu0 0.0
    %2367 = vmatprep.subr.mxu0 0.0
    %2368 = vmatpush1.xpose.msra.mxu0 0.0
    %2369 = vmatprep.mubr.f32.mxu0 0.0
    %2370 = vmatmul.mubr.f32.gmra.mrb[0].mxu0 %v2294
    %v2371 = vpop.f32.mrb[0].mxu0
    %v2372 = vadd.f32 2e-08, %v2371
    %v2373 = vpop.f32.mrb[0].mxu0
    %2374 = vmatprep.mubr.f32.mxu0 0.0
    %2375 = vmatmul.mubr.f32.gmra.mrb[0].mxu0 %v2297
    %v2376 = vpop.f32.mrb[0].mxu0
    %v2377 = vadd.f32 2e-08, %v2376
    %v2378 = vpop.f32.mrb[0].mxu0
    %2379 = vmatprep.mubr.f32.mxu0 0.0
    %2380 = vmatmul.mubr.f32.gmra.mrb[0].mxu0 %v2300
    %v2381 = vpop.f32.mrb[0].mxu0
    %v2382 = vadd.f32 2e-08, %v2381
    %v2383 = vpop.f32.mrb[0].mxu0
    %2384 = vmatprep.mubr.f32.mxu0 0.0
    %2385 = vmatmul.mubr.f32.gmra.mrb[0].mxu0 %v2303
    %v2386 = vpop.f32.mrb[0].mxu0
    %v2387 = vadd.f32 2e-08, %v2386
    %v2388 = vpop.f32.mrb[0].mxu0
    %2389 = vdwg.mxu0
    %v2390 = vrcp.pop %v2372
    %v2391 = vmul.f32 %v2202, %v2390
    %v2392 = vrcp.pop %v2377
    %v2393 = vmul.f32 %v2207, %v2392
    %v2394 = vrcp.pop %v2382
    %v2395 = vmul.f32 %v2212, %v2394
    %v2396 = vrcp.pop %v2387
    %v2397 = vmul.f32 %v2217, %v2396
    %v2398 = vmul.f32 %v1926, %v2391
    %v2399 = vmul.f32 %v1927, %v2393
    %v2400 = vmul.f32 %v1928, %v2395
    %v2401 = vmul.f32 %v1929, %v2397
    %v2403 = vsel %vm28, %v2398, 0
    %v2406 = vsel %vm28, %v2399, 0
    %v2409 = vsel %vm28, %v2400, 0
    %v2412 = vsel %vm28, %v2401, 0
    %2414 = vmatprep.subr.mxu0 0.0
    %2415 = vmatpush1.msra.mxu0 %v2292
    %2416 = vmatprep.subr.mxu0 0.0
    %2417 = vmatpush1.msra.mxu0 0.0
    %2418 = vmatprep.subr.mxu0 0.0
    %2419 = vmatpush1.msra.mxu0 0.0
    %2420 = vmatprep.subr.mxu0 0.0
    %2421 = vmatpush1.msra.mxu0 0.0
    %2422 = vmatprep.subr.mxu0 0.0
    %2423 = vmatpush1.msra.mxu0 0.0
    %2424 = vmatprep.subr.mxu0 0.0
    %2425 = vmatpush1.msra.mxu0 0.0
    %2426 = vmatprep.subr.mxu0 0.0
    %2427 = vmatpush1.msra.mxu0 0.0
    %2428 = vmatprep.subr.mxu0 0.0
    %2429 = vmatpush1.msra.mxu0 0.0
    %2430 = vmatprep.subr.mxu0 0.0
    %2431 = vmatpush1.msra.mxu0 0.0
    %2432 = vmatprep.subr.mxu0 0.0
    %2433 = vmatpush1.msra.mxu0 0.0
    %2434 = vmatprep.subr.mxu0 0.0
    %2435 = vmatpush1.msra.mxu0 0.0
    %2436 = vmatprep.subr.mxu0 0.0
    %2437 = vmatpush1.msra.mxu0 0.0
    %2438 = vmatprep.subr.mxu0 0.0
    %2439 = vmatpush1.msra.mxu0 0.0
    %2440 = vmatprep.subr.mxu0 0.0
    %2441 = vmatpush1.msra.mxu0 0.0
    %2442 = vmatprep.subr.mxu0 0.0
    %2443 = vmatpush1.msra.mxu0 0.0
    %2444 = vmatprep.subr.mxu0 0.0
    %2445 = vmatpush1.msra.mxu0 0.0
    %2446 = vmatprep.subr.mxu0 0.0
    %2447 = vmatpush1.msra.mxu0 0.0
    %2448 = vmatprep.subr.mxu0 0.0
    %2449 = vmatpush1.msra.mxu0 0.0
    %2450 = vmatprep.subr.mxu0 0.0
    %2451 = vmatpush1.msra.mxu0 0.0
    %2452 = vmatprep.subr.mxu0 0.0
    %2453 = vmatpush1.msra.mxu0 0.0
    %2454 = vmatprep.subr.mxu0 0.0
    %2455 = vmatpush1.msra.mxu0 0.0
    %2456 = vmatprep.subr.mxu0 0.0
    %2457 = vmatpush1.msra.mxu0 0.0
    %2458 = vmatprep.subr.mxu0 0.0
    %2459 = vmatpush1.msra.mxu0 0.0
    %2460 = vmatprep.subr.mxu0 0.0
    %2461 = vmatpush1.msra.mxu0 0.0
    %2462 = vmatprep.subr.mxu0 0.0
    %2463 = vmatpush1.msra.mxu0 0.0
    %2464 = vmatprep.subr.mxu0 0.0
    %2465 = vmatpush1.msra.mxu0 0.0
    %2466 = vmatprep.subr.mxu0 0.0
    %2467 = vmatpush1.msra.mxu0 0.0
    %2468 = vmatprep.subr.mxu0 0.0
    %2469 = vmatpush1.msra.mxu0 0.0
    %2470 = vmatprep.subr.mxu0 0.0
    %2471 = vmatpush1.msra.mxu0 0.0
    %2472 = vmatprep.subr.mxu0 0.0
    %2473 = vmatpush1.msra.mxu0 0.0
    %2474 = vmatprep.subr.mxu0 0.0
    %2475 = vmatpush1.msra.mxu0 0.0
    %2476 = vmatprep.subr.mxu0 0.0
    %2477 = vmatpush1.msra.mxu0 0.0
    %2478 = vmatprep.mubr.f32.mxu0 0.0
    %2479 = vmatmul.mubr.f32.gmra.mrb[0].mxu0 %v2403
    %v2480 = vpop.f32.mrb[0].mxu0
    %v2481 = vadd.f32 0.0, %v2480
    %v2482 = vpop.f32.mrb[0].mxu0
    %2483 = vmatprep.mubr.f32.mxu0 0.0
    %2484 = vmatmul.mubr.f32.gmra.mrb[0].mxu0 %v2406
    %v2485 = vpop.f32.mrb[0].mxu0
    %v2486 = vadd.f32 0.0, %v2485
    %v2487 = vpop.f32.mrb[0].mxu0
    %2488 = vmatprep.mubr.f32.mxu0 0.0
    %2489 = vmatmul.mubr.f32.gmra.mrb[0].mxu0 %v2409
    %v2490 = vpop.f32.mrb[0].mxu0
    %v2491 = vadd.f32 0.0, %v2490
    %v2492 = vpop.f32.mrb[0].mxu0
    %2493 = vmatprep.mubr.f32.mxu0 0.0
    %2494 = vmatmul.mubr.f32.gmra.mrb[0].mxu0 %v2412
    %v2495 = vpop.f32.mrb[0].mxu0
    %v2496 = vadd.f32 0.0, %v2495
    %v2497 = vpop.f32.mrb[0].mxu0
    %2498 = vdwg.mxu0
    %2499 = vxpose.xlu0.b32.start [1/16] %v2398, 128
    %2500 = vxpose.xlu0.b32.cont [2/16] %v2399, 128
    %2501 = vxpose.xlu0.b32.cont [3/16] %v2400, 128
    %2502 = vxpose.xlu0.b32.cont [4/16] %v2401, 128
    %2503 = vxpose.xlu0.b32.cont [5/16] 0.0, 128
    %2504 = vxpose.xlu0.b32.cont [6/16] 0.0, 128
    %2505 = vxpose.xlu0.b32.cont [7/16] 0.0, 128
    %2506 = vxpose.xlu0.b32.cont [8/16] 0.0, 128
    %2507 = vxpose.xlu0.b32.cont [9/16] 0.0, 128
    %2508 = vxpose.xlu0.b32.cont [10/16] 0.0, 128
    %2509 = vxpose.xlu0.b32.cont [11/16] 0.0, 128
    %2510 = vxpose.xlu0.b32.cont [12/16] 0.0, 128
    %2511 = vxpose.xlu0.b32.cont [13/16] 0.0, 128
    %2512 = vxpose.xlu0.b32.cont [14/16] 0.0, 128
    %2513 = vxpose.xlu0.b32.cont [15/16] 0.0, 128
    %2514 = vxpose.xlu0.b32.end [16/16] 0.0, 128
    %v2515 = vpop.trf.xlu0
    %v2516 = vpop.trf.xlu0
    %v2517 = vpop.trf.xlu0
    %v2518 = vpop.trf.xlu0
    %v2519 = vpop.trf.xlu0
    %v2520 = vpop.trf.xlu0
    %v2521 = vpop.trf.xlu0
    %v2522 = vpop.trf.xlu0
    %v2523 = vpop.trf.xlu0
    %v2524 = vpop.trf.xlu0
    %v2525 = vpop.trf.xlu0
    %v2526 = vpop.trf.xlu0
    %v2527 = vpop.trf.xlu0
    %v2528 = vpop.trf.xlu0
    %v2529 = vpop.trf.xlu0
    %v2530 = vpop.trf.xlu0
    %v2532 = vsel %vm158, %v2515, 0
    %2534 = vmatprep.subr.mxu0 0.0
    %2535 = vmatpush1.msra.mxu0 %v19
    %2536 = vmatprep.subr.mxu0 0.0
    %2537 = vmatpush1.msra.mxu0 %v20
    %2538 = vmatprep.subr.mxu0 0.0
    %2539 = vmatpush1.msra.mxu0 %v21
    %2540 = vmatprep.subr.mxu0 0.0
    %2541 = vmatpush1.msra.mxu0 %v22
    %2542 = vmatprep.subr.mxu0 0.0
    %2543 = vmatpush1.msra.mxu0 0.0
    %2544 = vmatprep.subr.mxu0 0.0
    %2545 = vmatpush1.msra.mxu0 0.0
    %2546 = vmatprep.subr.mxu0 0.0
    %2547 = vmatpush1.msra.mxu0 0.0
    %2548 = vmatprep.subr.mxu0 0.0
    %2549 = vmatpush1.msra.mxu0 0.0
    %2550 = vmatprep.subr.mxu0 0.0
    %2551 = vmatpush1.msra.mxu0 0.0
    %2552 = vmatprep.subr.mxu0 0.0
    %2553 = vmatpush1.msra.mxu0 0.0
    %2554 = vmatprep.subr.mxu0 0.0
    %2555 = vmatpush1.msra.mxu0 0.0
    %2556 = vmatprep.subr.mxu0 0.0
    %2557 = vmatpush1.msra.mxu0 0.0
    %2558 = vmatprep.subr.mxu0 0.0
    %2559 = vmatpush1.msra.mxu0 0.0
    %2560 = vmatprep.subr.mxu0 0.0
    %2561 = vmatpush1.msra.mxu0 0.0
    %2562 = vmatprep.subr.mxu0 0.0
    %2563 = vmatpush1.msra.mxu0 0.0
    %2564 = vmatprep.subr.mxu0 0.0
    %2565 = vmatpush1.msra.mxu0 0.0
    %2566 = vmatprep.subr.mxu0 0.0
    %2567 = vmatpush1.msra.mxu0 0.0
    %2568 = vmatprep.subr.mxu0 0.0
    %2569 = vmatpush1.msra.mxu0 0.0
    %2570 = vmatprep.subr.mxu0 0.0
    %2571 = vmatpush1.msra.mxu0 0.0
    %2572 = vmatprep.subr.mxu0 0.0
    %2573 = vmatpush1.msra.mxu0 0.0
    %2574 = vmatprep.subr.mxu0 0.0
    %2575 = vmatpush1.msra.mxu0 0.0
    %2576 = vmatprep.subr.mxu0 0.0
    %2577 = vmatpush1.msra.mxu0 0.0
    %2578 = vmatprep.subr.mxu0 0.0
    %2579 = vmatpush1.msra.mxu0 0.0
    %2580 = vmatprep.subr.mxu0 0.0
    %2581 = vmatpush1.msra.mxu0 0.0
    %2582 = vmatprep.subr.mxu0 0.0
    %2583 = vmatpush1.msra.mxu0 0.0
    %2584 = vmatprep.subr.mxu0 0.0
    %2585 = vmatpush1.msra.mxu0 0.0
    %2586 = vmatprep.subr.mxu0 0.0
    %2587 = vmatpush1.msra.mxu0 0.0
    %2588 = vmatprep.subr.mxu0 0.0
    %2589 = vmatpush1.msra.mxu0 0.0
    %2590 = vmatprep.subr.mxu0 0.0
    %2591 = vmatpush1.msra.mxu0 0.0
    %2592 = vmatprep.subr.mxu0 0.0
    %2593 = vmatpush1.msra.mxu0 0.0
    %2594 = vmatprep.subr.mxu0 0.0
    %2595 = vmatpush1.msra.mxu0 0.0
    %2596 = vmatprep.subr.mxu0 0.0
    %2597 = vmatpush1.msra.mxu0 0.0
    %2598 = vmatprep.mubr.f32.mxu0 0.0
    %2599 = vmatmul.mubr.f32.gmra.mrb[0].mxu0 %v2532
    %v2600 = vpop.f32.mrb[0].mxu0
    %v2601 = vadd.f32 0.0, %v2600
    %v2602 = vpop.f32.mrb[0].mxu0
    %2603 = vdwg.mxu0
    %v2605 = vsel %vm158, %v2292, 0
    %2607 = vmatprep.subr.mxu0 0.0
    %2608 = vmatpush1.xpose.msra.mxu0 %v2605
    %2609 = vmatprep.subr.mxu0 0.0
    %2610 = vmatpush1.xpose.msra.mxu0 0.0
    %2611 = vmatprep.subr.mxu0 0.0
    %2612 = vmatpush1.xpose.msra.mxu0 0.0
    %2613 = vmatprep.subr.mxu0 0.0
    %2614 = vmatpush1.xpose.msra.mxu0 0.0
    %2615 = vmatprep.subr.mxu0 0.0
    %2616 = vmatpush1.xpose.msra.mxu0 0.0
    %2617 = vmatprep.subr.mxu0 0.0
    %2618 = vmatpush1.xpose.msra.mxu0 0.0
    %2619 = vmatprep.subr.mxu0 0.0
    %2620 = vmatpush1.xpose.msra.mxu0 0.0
    %2621 = vmatprep.subr.mxu0 0.0
    %2622 = vmatpush1.xpose.msra.mxu0 0.0
    %2623 = vmatprep.subr.mxu0 0.0
    %2624 = vmatpush1.xpose.msra.mxu0 0.0
    %2625 = vmatprep.subr.mxu0 0.0
    %2626 = vmatpush1.xpose.msra.mxu0 0.0
    %2627 = vmatprep.subr.mxu0 0.0
    %2628 = vmatpush1.xpose.msra.mxu0 0.0
    %2629 = vmatprep.subr.mxu0 0.0
    %2630 = vmatpush1.xpose.msra.mxu0 0.0
    %2631 = vmatprep.subr.mxu0 0.0
    %2632 = vmatpush1.xpose.msra.mxu0 0.0
    %2633 = vmatprep.subr.mxu0 0.0
    %2634 = vmatpush1.xpose.msra.mxu0 0.0
    %2635 = vmatprep.subr.mxu0 0.0
    %2636 = vmatpush1.xpose.msra.mxu0 0.0
    %2637 = vmatprep.subr.mxu0 0.0
    %2638 = vmatpush1.xpose.msra.mxu0 0.0
    %2639 = vmatprep.subr.mxu0 0.0
    %2640 = vmatpush1.xpose.msra.mxu0 0.0
    %2641 = vmatprep.subr.mxu0 0.0
    %2642 = vmatpush1.xpose.msra.mxu0 0.0
    %2643 = vmatprep.subr.mxu0 0.0
    %2644 = vmatpush1.xpose.msra.mxu0 0.0
    %2645 = vmatprep.subr.mxu0 0.0
    %2646 = vmatpush1.xpose.msra.mxu0 0.0
    %2647 = vmatprep.subr.mxu0 0.0
    %2648 = vmatpush1.xpose.msra.mxu0 0.0
    %2649 = vmatprep.subr.mxu0 0.0
    %2650 = vmatpush1.xpose.msra.mxu0 0.0
    %2651 = vmatprep.subr.mxu0 0.0
    %2652 = vmatpush1.xpose.msra.mxu0 0.0
    %2653 = vmatprep.subr.mxu0 0.0
    %2654 = vmatpush1.xpose.msra.mxu0 0.0
    %2655 = vmatprep.subr.mxu0 0.0
    %2656 = vmatpush1.xpose.msra.mxu0 0.0
    %2657 = vmatprep.subr.mxu0 0.0
    %2658 = vmatpush1.xpose.msra.mxu0 0.0
    %2659 = vmatprep.subr.mxu0 0.0
    %2660 = vmatpush1.xpose.msra.mxu0 0.0
    %2661 = vmatprep.subr.mxu0 0.0
    %2662 = vmatpush1.xpose.msra.mxu0 0.0
    %2663 = vmatprep.subr.mxu0 0.0
    %2664 = vmatpush1.xpose.msra.mxu0 0.0
    %2665 = vmatprep.subr.mxu0 0.0
    %2666 = vmatpush1.xpose.msra.mxu0 0.0
    %2667 = vmatprep.subr.mxu0 0.0
    %2668 = vmatpush1.xpose.msra.mxu0 0.0
    %2669 = vmatprep.subr.mxu0 0.0
    %2670 = vmatpush1.xpose.msra.mxu0 0.0
    %2671 = vmatprep.mubr.f32.mxu0 0.0
    %2672 = vmatmul.mubr.f32.gmra.mrb[0].mxu0 %v233
    %v2673 = vpop.f32.mrb[0].mxu0
    %v2674 = vadd.f32 0.0, %v2673
    %v2675 = vpop.f32.mrb[0].mxu0
    %2676 = vmatprep.mubr.f32.mxu0 0.0
    %2677 = vmatmul.mubr.f32.gmra.mrb[0].mxu0 %v236
    %v2678 = vpop.f32.mrb[0].mxu0
    %v2679 = vadd.f32 0.0, %v2678
    %v2680 = vpop.f32.mrb[0].mxu0
    %2681 = vmatprep.mubr.f32.mxu0 0.0
    %2682 = vmatmul.mubr.f32.gmra.mrb[0].mxu0 %v239
    %v2683 = vpop.f32.mrb[0].mxu0
    %v2684 = vadd.f32 0.0, %v2683
    %v2685 = vpop.f32.mrb[0].mxu0
    %2686 = vmatprep.mubr.f32.mxu0 0.0
    %2687 = vmatmul.mubr.f32.gmra.mrb[0].mxu0 %v242
    %v2688 = vpop.f32.mrb[0].mxu0
    %v2689 = vadd.f32 0.0, %v2688
    %v2690 = vpop.f32.mrb[0].mxu0
    %2691 = vdwg.mxu0
    %2692 = vmatprep.subr.mxu0 0.0
    %2693 = vmatpush1.msra.mxu0 %v2481
    %2694 = vmatprep.subr.mxu0 0.0
    %2695 = vmatpush1.msra.mxu0 %v2486
    %2696 = vmatprep.subr.mxu0 0.0
    %2697 = vmatpush1.msra.mxu0 %v2491
    %2698 = vmatprep.subr.mxu0 0.0
    %2699 = vmatpush1.msra.mxu0 %v2496
    %2700 = vmatprep.subr.mxu0 0.0
    %2701 = vmatpush1.msra.mxu0 0.0
    %2702 = vmatprep.subr.mxu0 0.0
    %2703 = vmatpush1.msra.mxu0 0.0
    %2704 = vmatprep.subr.mxu0 0.0
    %2705 = vmatpush1.msra.mxu0 0.0
    %2706 = vmatprep.subr.mxu0 0.0
    %2707 = vmatpush1.msra.mxu0 0.0
    %2708 = vmatprep.subr.mxu0 0.0
    %2709 = vmatpush1.msra.mxu0 0.0
    %2710 = vmatprep.subr.mxu0 0.0
    %2711 = vmatpush1.msra.mxu0 0.0
    %2712 = vmatprep.subr.mxu0 0.0
    %2713 = vmatpush1.msra.mxu0 0.0
    %2714 = vmatprep.subr.mxu0 0.0
    %2715 = vmatpush1.msra.mxu0 0.0
    %2716 = vmatprep.subr.mxu0 0.0
    %2717 = vmatpush1.msra.mxu0 0.0
    %2718 = vmatprep.subr.mxu0 0.0
    %2719 = vmatpush1.msra.mxu0 0.0
    %2720 = vmatprep.subr.mxu0 0.0
    %2721 = vmatpush1.msra.mxu0 0.0
    %2722 = vmatprep.subr.mxu0 0.0
    %2723 = vmatpush1.msra.mxu0 0.0
    %2724 = vmatprep.subr.mxu0 0.0
    %2725 = vmatpush1.msra.mxu0 0.0
    %2726 = vmatprep.subr.mxu0 0.0
    %2727 = vmatpush1.msra.mxu0 0.0
    %2728 = vmatprep.subr.mxu0 0.0
    %2729 = vmatpush1.msra.mxu0 0.0
    %2730 = vmatprep.subr.mxu0 0.0
    %2731 = vmatpush1.msra.mxu0 0.0
    %2732 = vmatprep.subr.mxu0 0.0
    %2733 = vmatpush1.msra.mxu0 0.0
    %2734 = vmatprep.subr.mxu0 0.0
    %2735 = vmatpush1.msra.mxu0 0.0
    %2736 = vmatprep.subr.mxu0 0.0
    %2737 = vmatpush1.msra.mxu0 0.0
    %2738 = vmatprep.subr.mxu0 0.0
    %2739 = vmatpush1.msra.mxu0 0.0
    %2740 = vmatprep.subr.mxu0 0.0
    %2741 = vmatpush1.msra.mxu0 0.0
    %2742 = vmatprep.subr.mxu0 0.0
    %2743 = vmatpush1.msra.mxu0 0.0
    %2744 = vmatprep.subr.mxu0 0.0
    %2745 = vmatpush1.msra.mxu0 0.0
    %2746 = vmatprep.subr.mxu0 0.0
    %2747 = vmatpush1.msra.mxu0 0.0
    %2748 = vmatprep.subr.mxu0 0.0
    %2749 = vmatpush1.msra.mxu0 0.0
    %2750 = vmatprep.subr.mxu0 0.0
    %2751 = vmatpush1.msra.mxu0 0.0
    %2752 = vmatprep.subr.mxu0 0.0
    %2753 = vmatpush1.msra.mxu0 0.0
    %2754 = vmatprep.subr.mxu0 0.0
    %2755 = vmatpush1.msra.mxu0 0.0
    %2756 = vmatprep.mubr.f32.mxu0 0.0
    %2757 = vmatmul.mubr.f32.gmra.mrb[0].mxu0 %v2532
    %v2758 = vpop.f32.mrb[0].mxu0
    %v2759 = vadd.f32 2e-08, %v2758
    %v2760 = vpop.f32.mrb[0].mxu0
    %2761 = vdwg.mxu0
    %v2762 = vrcp.pop %v2759
    %v2763 = vmul.f32 %v2601, %v2762
    %v2764 = vmul.f32 %v2292, %v2763
    %v2766 = vsel %vm158, %v2481, 0
    %v2769 = vsel %vm158, %v2486, 0
    %v2772 = vsel %vm158, %v2491, 0
    %v2775 = vsel %vm158, %v2496, 0
    %2777 = vmatprep.subr.mxu0 0.0
    %2778 = vmatpush1.xpose.msra.mxu0 %v2605
    %2779 = vmatprep.subr.mxu0 0.0
    %2780 = vmatpush1.xpose.msra.mxu0 0.0
    %2781 = vmatprep.subr.mxu0 0.0
    %2782 = vmatpush1.xpose.msra.mxu0 0.0
    %2783 = vmatprep.subr.mxu0 0.0
    %2784 = vmatpush1.xpose.msra.mxu0 0.0
    %2785 = vmatprep.subr.mxu0 0.0
    %2786 = vmatpush1.xpose.msra.mxu0 0.0
    %2787 = vmatprep.subr.mxu0 0.0
    %2788 = vmatpush1.xpose.msra.mxu0 0.0
    %2789 = vmatprep.subr.mxu0 0.0
    %2790 = vmatpush1.xpose.msra.mxu0 0.0
    %2791 = vmatprep.subr.mxu0 0.0
    %2792 = vmatpush1.xpose.msra.mxu0 0.0
    %2793 = vmatprep.subr.mxu0 0.0
    %2794 = vmatpush1.xpose.msra.mxu0 0.0
    %2795 = vmatprep.subr.mxu0 0.0
    %2796 = vmatpush1.xpose.msra.mxu0 0.0
    %2797 = vmatprep.subr.mxu0 0.0
    %2798 = vmatpush1.xpose.msra.mxu0 0.0
    %2799 = vmatprep.subr.mxu0 0.0
    %2800 = vmatpush1.xpose.msra.mxu0 0.0
    %2801 = vmatprep.subr.mxu0 0.0
    %2802 = vmatpush1.xpose.msra.mxu0 0.0
    %2803 = vmatprep.subr.mxu0 0.0
    %2804 = vmatpush1.xpose.msra.mxu0 0.0
    %2805 = vmatprep.subr.mxu0 0.0
    %2806 = vmatpush1.xpose.msra.mxu0 0.0
    %2807 = vmatprep.subr.mxu0 0.0
    %2808 = vmatpush1.xpose.msra.mxu0 0.0
    %2809 = vmatprep.subr.mxu0 0.0
    %2810 = vmatpush1.xpose.msra.mxu0 0.0
    %2811 = vmatprep.subr.mxu0 0.0
    %2812 = vmatpush1.xpose.msra.mxu0 0.0
    %2813 = vmatprep.subr.mxu0 0.0
    %2814 = vmatpush1.xpose.msra.mxu0 0.0
    %2815 = vmatprep.subr.mxu0 0.0
    %2816 = vmatpush1.xpose.msra.mxu0 0.0
    %2817 = vmatprep.subr.mxu0 0.0
    %2818 = vmatpush1.xpose.msra.mxu0 0.0
    %2819 = vmatprep.subr.mxu0 0.0
    %2820 = vmatpush1.xpose.msra.mxu0 0.0
    %2821 = vmatprep.subr.mxu0 0.0
    %2822 = vmatpush1.xpose.msra.mxu0 0.0
    %2823 = vmatprep.subr.mxu0 0.0
    %2824 = vmatpush1.xpose.msra.mxu0 0.0
    %2825 = vmatprep.subr.mxu0 0.0
    %2826 = vmatpush1.xpose.msra.mxu0 0.0
    %2827 = vmatprep.subr.mxu0 0.0
    %2828 = vmatpush1.xpose.msra.mxu0 0.0
    %2829 = vmatprep.subr.mxu0 0.0
    %2830 = vmatpush1.xpose.msra.mxu0 0.0
    %2831 = vmatprep.subr.mxu0 0.0
    %2832 = vmatpush1.xpose.msra.mxu0 0.0
    %2833 = vmatprep.subr.mxu0 0.0
    %2834 = vmatpush1.xpose.msra.mxu0 0.0
    %2835 = vmatprep.subr.mxu0 0.0
    %2836 = vmatpush1.xpose.msra.mxu0 0.0
    %2837 = vmatprep.subr.mxu0 0.0
    %2838 = vmatpush1.xpose.msra.mxu0 0.0
    %2839 = vmatprep.subr.mxu0 0.0
    %2840 = vmatpush1.xpose.msra.mxu0 0.0
    %2841 = vmatprep.mubr.f32.mxu0 0.0
    %2842 = vmatmul.mubr.f32.gmra.mrb[0].mxu0 %v2766
    %v2843 = vpop.f32.mrb[0].mxu0
    %v2844 = vadd.f32 2e-08, %v2843
    %v2845 = vpop.f32.mrb[0].mxu0
    %2846 = vmatprep.mubr.f32.mxu0 0.0
    %2847 = vmatmul.mubr.f32.gmra.mrb[0].mxu0 %v2769
    %v2848 = vpop.f32.mrb[0].mxu0
    %v2849 = vadd.f32 2e-08, %v2848
    %v2850 = vpop.f32.mrb[0].mxu0
    %2851 = vmatprep.mubr.f32.mxu0 0.0
    %2852 = vmatmul.mubr.f32.gmra.mrb[0].mxu0 %v2772
    %v2853 = vpop.f32.mrb[0].mxu0
    %v2854 = vadd.f32 2e-08, %v2853
    %v2855 = vpop.f32.mrb[0].mxu0
    %2856 = vmatprep.mubr.f32.mxu0 0.0
    %2857 = vmatmul.mubr.f32.gmra.mrb[0].mxu0 %v2775
    %v2858 = vpop.f32.mrb[0].mxu0
    %v2859 = vadd.f32 2e-08, %v2858
    %v2860 = vpop.f32.mrb[0].mxu0
    %2861 = vdwg.mxu0
    %v2862 = vrcp.pop %v2844
    %v2863 = vmul.f32 %v2674, %v2862
    %v2864 = vrcp.pop %v2849
    %v2865 = vmul.f32 %v2679, %v2864
    %v2866 = vrcp.pop %v2854
    %v2867 = vmul.f32 %v2684, %v2866
    %v2868 = vrcp.pop %v2859
    %v2869 = vmul.f32 %v2689, %v2868
    %v2870 = vmul.f32 %v2398, %v2863
    %v2871 = vmul.f32 %v2399, %v2865
    %v2872 = vmul.f32 %v2400, %v2867
    %v2873 = vmul.f32 %v2401, %v2869
    %v2875 = vsel %vm28, %v2870, 0
    %v2878 = vsel %vm28, %v2871, 0
    %v2881 = vsel %vm28, %v2872, 0
    %v2884 = vsel %vm28, %v2873, 0
    %2886 = vmatprep.subr.mxu0 0.0
    %2887 = vmatpush1.msra.mxu0 %v2764
    %2888 = vmatprep.subr.mxu0 0.0
    %2889 = vmatpush1.msra.mxu0 0.0
    %2890 = vmatprep.subr.mxu0 0.0
    %2891 = vmatpush1.msra.mxu0 0.0
    %2892 = vmatprep.subr.mxu0 0.0
    %2893 = vmatpush1.msra.mxu0 0.0
    %2894 = vmatprep.subr.mxu0 0.0
    %2895 = vmatpush1.msra.mxu0 0.0
    %2896 = vmatprep.subr.mxu0 0.0
    %2897 = vmatpush1.msra.mxu0 0.0
    %2898 = vmatprep.subr.mxu0 0.0
    %2899 = vmatpush1.msra.mxu0 0.0
    %2900 = vmatprep.subr.mxu0 0.0
    %2901 = vmatpush1.msra.mxu0 0.0
    %2902 = vmatprep.subr.mxu0 0.0
    %2903 = vmatpush1.msra.mxu0 0.0
    %2904 = vmatprep.subr.mxu0 0.0
    %2905 = vmatpush1.msra.mxu0 0.0
    %2906 = vmatprep.subr.mxu0 0.0
    %2907 = vmatpush1.msra.mxu0 0.0
    %2908 = vmatprep.subr.mxu0 0.0
    %2909 = vmatpush1.msra.mxu0 0.0
    %2910 = vmatprep.subr.mxu0 0.0
    %2911 = vmatpush1.msra.mxu0 0.0
    %2912 = vmatprep.subr.mxu0 0.0
    %2913 = vmatpush1.msra.mxu0 0.0
    %2914 = vmatprep.subr.mxu0 0.0
    %2915 = vmatpush1.msra.mxu0 0.0
    %2916 = vmatprep.subr.mxu0 0.0
    %2917 = vmatpush1.msra.mxu0 0.0
    %2918 = vmatprep.subr.mxu0 0.0
    %2919 = vmatpush1.msra.mxu0 0.0
    %2920 = vmatprep.subr.mxu0 0.0
    %2921 = vmatpush1.msra.mxu0 0.0
    %2922 = vmatprep.subr.mxu0 0.0
    %2923 = vmatpush1.msra.mxu0 0.0
    %2924 = vmatprep.subr.mxu0 0.0
    %2925 = vmatpush1.msra.mxu0 0.0
    %2926 = vmatprep.subr.mxu0 0.0
    %2927 = vmatpush1.msra.mxu0 0.0
    %2928 = vmatprep.subr.mxu0 0.0
    %2929 = vmatpush1.msra.mxu0 0.0
    %2930 = vmatprep.subr.mxu0 0.0
    %2931 = vmatpush1.msra.mxu0 0.0
    %2932 = vmatprep.subr.mxu0 0.0
    %2933 = vmatpush1.msra.mxu0 0.0
    %2934 = vmatprep.subr.mxu0 0.0
    %2935 = vmatpush1.msra.mxu0 0.0
    %2936 = vmatprep.subr.mxu0 0.0
    %2937 = vmatpush1.msra.mxu0 0.0
    %2938 = vmatprep.subr.mxu0 0.0
    %2939 = vmatpush1.msra.mxu0 0.0
    %2940 = vmatprep.subr.mxu0 0.0
    %2941 = vmatpush1.msra.mxu0 0.0
    %2942 = vmatprep.subr.mxu0 0.0
    %2943 = vmatpush1.msra.mxu0 0.0
    %2944 = vmatprep.subr.mxu0 0.0
    %2945 = vmatpush1.msra.mxu0 0.0
    %2946 = vmatprep.subr.mxu0 0.0
    %2947 = vmatpush1.msra.mxu0 0.0
    %2948 = vmatprep.subr.mxu0 0.0
    %2949 = vmatpush1.msra.mxu0 0.0
    %2950 = vmatprep.mubr.f32.mxu0 0.0
    %2951 = vmatmul.mubr.f32.gmra.mrb[0].mxu0 %v2875
    %v2952 = vpop.f32.mrb[0].mxu0
    %v2953 = vadd.f32 0.0, %v2952
    %v2954 = vpop.f32.mrb[0].mxu0
    %2955 = vmatprep.mubr.f32.mxu0 0.0
    %2956 = vmatmul.mubr.f32.gmra.mrb[0].mxu0 %v2878
    %v2957 = vpop.f32.mrb[0].mxu0
    %v2958 = vadd.f32 0.0, %v2957
    %v2959 = vpop.f32.mrb[0].mxu0
    %2960 = vmatprep.mubr.f32.mxu0 0.0
    %2961 = vmatmul.mubr.f32.gmra.mrb[0].mxu0 %v2881
    %v2962 = vpop.f32.mrb[0].mxu0
    %v2963 = vadd.f32 0.0, %v2962
    %v2964 = vpop.f32.mrb[0].mxu0
    %2965 = vmatprep.mubr.f32.mxu0 0.0
    %2966 = vmatmul.mubr.f32.gmra.mrb[0].mxu0 %v2884
    %v2967 = vpop.f32.mrb[0].mxu0
    %v2968 = vadd.f32 0.0, %v2967
    %v2969 = vpop.f32.mrb[0].mxu0
    %2970 = vdwg.mxu0
    %2971 = vst.msk [vmem:[#allocation2] sm:$0xff] %vm158, %v2953
    %2972 = vst.msk [vmem:[#allocation2 + $0x8] sm:$0xff] %vm158, %v2958
    %2973 = vst.msk [vmem:[#allocation2 + $0x10] sm:$0xff] %vm158, %v2963
    %2974 = vst.msk [vmem:[#allocation2 + $0x18] sm:$0xff] %vm158, %v2968
    // Predicated region
    $region14: #{tpu_custom_call.1} parent=1 // pred_check
      _
    $region15: #{tpu_custom_call.1} parent=1 // pred_check_branch
      %2976 = sbr.rel (0) target = $region17
    $region16: #{tpu_custom_call.1} parent=1 // pred_region
      %s2978 = ssub.s32 512, 512
      %2979 = vsyncadd [#allocation3], %s2978
      %s2980 = sshll.u32 [#allocation2], 4
      %s2981 = int_to_ptr.vmem [resolvable:$true] %s2980
      %2986 = dma.vmem_to_hbm [thread:$0]  %s2981, 512, %s3, [#allocation3], 128, 128, 8
    $region17: #{tpu_custom_call.1} parent=1 // pred_fallthru
      _
    // Predicated region
    $region18: #{tpu_custom_call.1} parent=1 // pred_check
      _
    $region19: #{tpu_custom_call.1} parent=1 // pred_check_branch
      %2988 = sbr.rel (0) target = $region21
    $region20: #{tpu_custom_call.1} parent=1 // pred_region
      %2989 = dma.done [#allocation3], 512
    $region21: #{tpu_custom_call.1} parent=1 // pred_fallthru
      _
    %2990 = vsyncpa [#allocation3], 1

</llo_original>
